<compile_context>
chip_gen: v6e
topology: v6e:2x2x1
jax: 0.10.0
libtpu: 0.0.40
codegen_flags: <defaults>
</compile_context>

<pallas_src>
import functools

import jax
import jax.numpy as jnp
import numpy as np
from jax.experimental import pallas as pl
from jax.experimental.pallas import tpu as pltpu

LN_EPS = 1e-12            # BertLayerNorm default eps
INV_SQRT2 = 0.7071067811865475
SQRT_2_OVER_PI = 0.7978845608028654

# Flags (per perf review: tanh GELU + approx reciprocal on v6e/v7x; exact paths kept for parity).
GELU_TANH_APPROX = True
SOFTMAX_EXACT_RECIPROCAL = False


def _layer_norm(x, g, b):
    # matches pytorch_pretrained_bert BertLayerNorm (biased variance, eps inside rsqrt)
    u = jnp.mean(x, axis=-1, keepdims=True)
    s = jnp.mean((x - u) ** 2, axis=-1, keepdims=True)
    return (x - u) * jax.lax.rsqrt(s + LN_EPS) * g + b


def _gelu_exact(x):
    # exact (erf-based) GELU used by BertIntermediate — reference / parity formula
    return x * 0.5 * (1.0 + jax.lax.erf(x * INV_SQRT2))


def _gelu(x):
    if GELU_TANH_APPROX:
        # tanh approximation: runs on the EUP slot, co-issues with MXU/VALU (v6e/v7x perf).
        return 0.5 * x * (1.0 + jnp.tanh(SQRT_2_OVER_PI * (x + 0.044715 * x * x * x)))
    return _gelu_exact(x)


def sub_bert_kernel(nh, hd, Bt,
                    x_ref, mask_ref, eg_ref, eb_ref,
                    wqkv_ref, bqkv_ref, wo_ref, bo_ref, g1_ref, b1_ref,
                    wi_ref, bi_ref, wp_ref, bp_ref, g2_ref, b2_ref,
                    wc_ref, bc_ref,
                    out_ref, x_sc):
    """Grid point (b, l): apply BertLayer l to the Bt batch rows of block b.

    The residual stream for the Bt rows is carried across the l axis in the (Bt*S, H)
    VMEM scratch x_sc; layer-l weights are the only per-step HBM traffic.
    """
    l = pl.program_id(1)
    n_layers = pl.num_programs(1)
    H = nh * hd
    S = x_ref.shape[1]
    M = Bt * S

    # --- layer 0 only: BertEmbeddings.LayerNorm (hidden dropout = 0.0 -> identity) ---
    @pl.when(l == 0)
    def _():
        x0 = x_ref[...].reshape(M, H)
        x_sc[...] = _layer_norm(x0, eg_ref[...], eb_ref[...])

    x = x_sc[...]                                   # (Bt*S, H) f32 residual stream

    # --- self-attention ---
    # fused QKV projection: one (Bt*S,H)x(H,3H) MXU pass, bf16 in / f32 accumulation
    x_bf = x.astype(jnp.bfloat16)
    qkv = jnp.dot(x_bf, wqkv_ref[0], preferred_element_type=jnp.float32) + bqkv_ref[0]

    # fold 1/sqrt(hd) into q (Bt*S*H elements, not nh*S*S). NOTE: this rounds the scaled q to
    # bf16 before the scores matmul (standard flash-attention practice; tiny parity divergence
    # vs. scaling the f32 scores afterwards).
    scale = 1.0 / float(hd) ** 0.5
    q = (qkv[:, :H] * scale).astype(jnp.bfloat16)
    k = qkv[:, H:2 * H].astype(jnp.bfloat16)
    v = qkv[:, 2 * H:].astype(jnp.bfloat16)

    ctx_rows = []
    for bi in range(Bt):                            # Bt is small (1-8): static unroll
        r0 = bi * S
        mask_row = mask_ref[bi]                     # (1, S) additive mask; implicit row broadcast
        # head-batched scores / softmax / context (single leading-batch-dim contractions)
        q3 = jnp.stack([q[r0:r0 + S, h * hd:(h + 1) * hd] for h in range(nh)])   # (nh,S,hd)
        k3 = jnp.stack([k[r0:r0 + S, h * hd:(h + 1) * hd] for h in range(nh)])
        v3 = jnp.stack([v[r0:r0 + S, h * hd:(h + 1) * hd] for h in range(nh)])
        s = jnp.einsum('hqd,hkd->hqk', q3, k3,
                       preferred_element_type=jnp.float32)                        # (nh,S,S)
        s = s + mask_row                            # no (S,S) materialization
        s = s - jnp.max(s, axis=-1, keepdims=True)
        p = jnp.exp(s)
        denom = jnp.sum(p, axis=-1, keepdims=True)
        if SOFTMAX_EXACT_RECIPROCAL:
            p = p / denom
        else:
            p = p * pl.reciprocal(denom, approx=True)    # EUP slot
        # attention dropout prob = 0.0 -> identity
        ctx3 = jnp.einsum('hqk,hkd->hqd', p.astype(jnp.bfloat16), v3,
                          preferred_element_type=jnp.float32)                     # (nh,S,hd)
        ctx_rows.append(jnp.concatenate([ctx3[h] for h in range(nh)], axis=-1))   # (S, H)
    ctx = ctx_rows[0] if Bt == 1 else jnp.concatenate(ctx_rows, axis=0)           # (Bt*S, H)

    # single K=H output projection (replaces nh K=hd GEMMs + serial f32 accumulation)
    attn = jnp.dot(ctx.astype(jnp.bfloat16), wo_ref[0],
                   preferred_element_type=jnp.float32) + bo_ref[0]

    x = _layer_norm(attn + x, g1_ref[0], b1_ref[0])                               # BertSelfOutput

    # --- feed-forward ---
    inter = jnp.dot(x.astype(jnp.bfloat16), wi_ref[0],
                    preferred_element_type=jnp.float32) + bi_ref[0]
    inter = _gelu(inter)
    ffn = jnp.dot(inter.astype(jnp.bfloat16), wp_ref[0],
                  preferred_element_type=jnp.float32) + bp_ref[0]
    x = _layer_norm(ffn + x, g2_ref[0], b2_ref[0])                                # BertOutput

    x_sc[...] = x

    # --- last layer only: dropout(0.0) -> identity, classifier into lane-dense padded slab.
    # NOTE: out_ref's block index is constant across the (arbitrary) l axis, so the output block
    # stays resident and only the final write matters. Do NOT reorder the grid to (L, B) or mark
    # the layer axis "parallel" — the write-once-at-l==L-1 pattern relies on revisit semantics.
    @pl.when(l == n_layers - 1)
    def _():
        logits = jnp.dot(x.astype(jnp.bfloat16), wc_ref[...],
                         preferred_element_type=jnp.float32) + bc_ref[...]
        out_ref[...] = logits.reshape(Bt, S, out_ref.shape[-1])


def sub_bert_forward(emb_sum, mask_ext, params, *, batch_tile=None):
    B, S, H = emb_sum.shape
    L = params["wq"].shape[0]
    I = params["wi"].shape[2]
    C = params["wc"].shape[1]
    nh = params["num_heads"]
    hd = H // nh
    C_pad = max(128, ((C + 127) // 128) * 128)     # lane-dense classifier / output slab

    # ---- batch fusion (weight reuse): fold Bt batch rows into the GEMM M dimension ----
    # v5e/v6e (128 MiB VMEM): 4-8 works at S=512; v7x (64 MiB/TC): 2-4 (pair with FFN chunking).
    if batch_tile is None:
        batch_tile = 4
    Bt = max(d for d in range(1, min(B, batch_tile) + 1) if B % d == 0)

    # ---- chip-aware VMEM budget / buffering depth ----
    try:
        info = pltpu.get_tpu_info()
        vmem_cap = int(getattr(info, "vmem_capacity_bytes", 0)) or 64 * 1024 * 1024
    except Exception:  # pragma: no cover - trace-time query not available
        vmem_cap = 64 * 1024 * 1024
    vmem_limit = min(int(vmem_cap * 0.75), 110 * 1024 * 1024)   # ~96 MiB v5e/v6e, ~48 MiB v7x
    # deeper weight buffering only when VMEM allows and the layer axis is long enough (v6e DMA hiding)
    deep = pl.Buffered(3) if (vmem_cap >= 96 * 1024 * 1024 and L >= 4) else None

    bf16 = jnp.bfloat16
    f32 = jnp.float32

    # ---- wrapper-side weight packing (all Linear weights pre-transposed to [in, out]) ----
    wqkv = jnp.concatenate([params["wq"], params["wk"], params["wv"]], axis=2).astype(bf16)  # (L,H,3H)
    bqkv = jnp.concatenate([params["bq"], params["bk"], params["bv"]], axis=2).astype(f32)   # (L,1,3H)
    wo = params["wo"].astype(bf16)                                                           # (L,H,H)
    wi = params["wi"].astype(bf16)
    wp = params["wp"].astype(bf16)
    wc = jnp.zeros((H, C_pad), f32).at[:, :C].set(params["wc"]).astype(bf16)
    bc = jnp.zeros((1, C_pad), f32).at[:, :C].set(params["bc"])

    kernel = functools.partial(sub_bert_kernel, nh, hd, Bt)

    def const(shape):
        n = len(shape)
        return pl.BlockSpec(shape, lambda b, l, n=n: (0,) * n)

    def per_layer(shape, mode=None):
        n = len(shape)
        idx = lambda b, l, n=n: (l,) + (0,) * (n - 1)
        if mode is None:
            return pl.BlockSpec(shape, idx)
        return pl.BlockSpec(shape, idx, pipeline_mode=mode)

    in_specs = [
        pl.BlockSpec((Bt, S, H), lambda b, l: (b, 0, 0)),      # summed embeddings (Bt rows)
        pl.BlockSpec((Bt, 1, S), lambda b, l: (b, 0, 0)),      # extended attention mask
        const((1, H)), const((1, H)),                          # embedding LN gamma/beta
        per_layer((1, H, 3 * H), deep), per_layer((1, 1, 3 * H)),   # fused QKV dense
        per_layer((1, H, H)), per_layer((1, 1, H)),            # attention output dense + bias
        per_layer((1, 1, H)), per_layer((1, 1, H)),            # LN1 gamma/beta
        per_layer((1, H, I), deep), per_layer((1, 1, I)),      # intermediate dense
        per_layer((1, I, H), deep), per_layer((1, 1, H)),      # FFN output dense
        per_layer((1, 1, H)), per_layer((1, 1, H)),            # LN2 gamma/beta
        const((H, C_pad)), const((1, C_pad)),                  # classifier (lane-dense padded)
    ]

    out_padded = pl.pallas_call(
        kernel,
        out_shape=jax.ShapeDtypeStruct((B, S, C_pad), jnp.float32),
        grid=(B // Bt, L),
        in_specs=in_specs,
        out_specs=pl.BlockSpec((Bt, S, C_pad), lambda b, l: (b, 0, 0)),
        scratch_shapes=[pltpu.VMEM((Bt * S, H), jnp.float32)],   # residual stream carried over l
        compiler_params=pltpu.CompilerParams(
            dimension_semantics=("parallel", "arbitrary"),
            vmem_limit_bytes=vmem_limit),
    )(emb_sum, mask_ext,
      params["emb_ln_g"], params["emb_ln_b"],
      wqkv, bqkv, wo, params["bo"],
      params["ln1_g"], params["ln1_b"],
      wi, params["bi"], wp, params["bp"],
      params["ln2_g"], params["ln2_b"],
      wc, bc)

    return out_padded[..., :C]


def sub_bert_reference(emb_sum, mask_ext, params):
    """Pure-JAX f32 mirror of the module math (exact erf GELU, exact softmax) for verification."""
    B, S, H = emb_sum.shape
    L = params["wq"].shape[0]
    nh = params["num_heads"]
    hd = H // nh
    scale = 1.0 / float(hd) ** 0.5

    out = []
    for b in range(B):
        x = emb_sum[b]
        mask = mask_ext[b]
        x = _layer_norm(x, params["emb_ln_g"], params["emb_ln_b"])
        for l in range(L):
            q = x @ params["wq"][l] + params["bq"][l]
            k = x @ params["wk"][l] + params["bk"][l]
            v = x @ params["wv"][l] + params["bv"][l]
            heads = []
            for h in range(nh):
                qs = q[:, h * hd:(h + 1) * hd]
                ks = k[:, h * hd:(h + 1) * hd]
                vs = v[:, h * hd:(h + 1) * hd]
                s = (qs @ ks.T) * scale + mask
                s = s - jnp.max(s, axis=-1, keepdims=True)
                p = jnp.exp(s)
                p = p / jnp.sum(p, axis=-1, keepdims=True)
                heads.append(p @ vs)
            ctx = jnp.concatenate(heads, axis=-1)
            attn = ctx @ params["wo"][l] + params["bo"][l]
            x = _layer_norm(attn + x, params["ln1_g"][l], params["ln1_b"][l])
            inter = _gelu_exact(x @ params["wi"][l] + params["bi"][l])
            ffn = inter @ params["wp"][l] + params["bp"][l]
            x = _layer_norm(ffn + x, params["ln2_g"][l], params["ln2_b"][l])
        out.append(x @ params["wc"] + params["bc"])
    return jnp.stack(out, axis=0)


if __name__ == "__main__":
    # small config consistent with the module (start=0, end=-1)
    VOCAB, MAXPOS, NTYPES = 50, 16, 2
    B, S, H, NH, I, L, C = 2, 8, 32, 4, 64, 2, 9

    key = jax.random.PRNGKey(0)
    ks = jax.random.split(key, 32)
    n = lambda k, shape: (0.02 * jax.random.normal(k, shape)).astype(jnp.float32)

    # embedding tables (init_bert_weights: normal(0, 0.02))
    word_emb = n(ks[0], (VOCAB, H))
    pos_emb = n(ks[1], (MAXPOS, H))
    tok_emb = n(ks[2], (NTYPES, H))

    params = {
        "num_heads": NH,
        "emb_ln_g": jnp.ones((1, H), jnp.float32),
        "emb_ln_b": jnp.zeros((1, H), jnp.float32),
        "wq": n(ks[3], (L, H, H)), "bq": jnp.zeros((L, 1, H), jnp.float32),
        "wk": n(ks[4], (L, H, H)), "bk": jnp.zeros((L, 1, H), jnp.float32),
        "wv": n(ks[5], (L, H, H)), "bv": jnp.zeros((L, 1, H), jnp.float32),
        "wo": n(ks[6], (L, H, H)), "bo": jnp.zeros((L, 1, H), jnp.float32),
        "ln1_g": jnp.ones((L, 1, H), jnp.float32), "ln1_b": jnp.zeros((L, 1, H), jnp.float32),
        "wi": n(ks[7], (L, H, I)), "bi": jnp.zeros((L, 1, I), jnp.float32),
        "wp": n(ks[8], (L, I, H)), "bp": jnp.zeros((L, 1, H), jnp.float32),
        "ln2_g": jnp.ones((L, 1, H), jnp.float32), "ln2_b": jnp.zeros((L, 1, H), jnp.float32),
        "wc": n(ks[9], (H, C)), "bc": jnp.zeros((1, C), jnp.float32),
    }

    # inputs (dict path of forward: input_ids / token_type_ids / attention_mask)
    input_ids = jax.random.randint(ks[10], (B, S), 0, VOCAB)
    token_type_ids = jnp.zeros((B, S), jnp.int32)
    attention_mask = jnp.ones((B, S), jnp.float32).at[1, S - 2:].set(0.0)

    # glue: embedding gathers and additive extended mask
    emb_sum = (word_emb[input_ids]
               + pos_emb[jnp.arange(S)][None, :, :]
               + tok_emb[token_type_ids]).astype(jnp.float32)        # (B, S, H)
    mask_ext = ((1.0 - attention_mask) * -10000.0).reshape(B, 1, S)  # (B, 1, S)

    logits = sub_bert_forward(emb_sum, mask_ext, params)
    logits = jax.block_until_ready(logits)

    ref = jax.block_until_ready(sub_bert_reference(emb_sum, mask_ext, params))

    assert logits.shape == (B, S, C)
    assert np.all(np.isfinite(np.asarray(logits)))
    np.testing.assert_allclose(np.asarray(logits), np.asarray(ref), rtol=2e-2, atol=2e-2)

    print("KERNEL_OK")
</pallas_src>

<mosaic_0001>
module attributes {stable_mosaic.version = 11 : i64} {
  func.func @sub_bert_kernel(%arg0: i32, %arg1: i32, %arg2: memref<2x8x32xf32, #tpu.memory_space<vmem>>, %arg3: memref<2x1x8xf32, #tpu.memory_space<vmem>>, %arg4: memref<1x32xf32, #tpu.memory_space<vmem>>, %arg5: memref<1x32xf32, #tpu.memory_space<vmem>>, %arg6: memref<1x32x96xbf16, #tpu.memory_space<vmem>>, %arg7: memref<1x1x96xf32, #tpu.memory_space<vmem>>, %arg8: memref<1x32x32xbf16, #tpu.memory_space<vmem>>, %arg9: memref<1x1x32xf32, #tpu.memory_space<vmem>>, %arg10: memref<1x1x32xf32, #tpu.memory_space<vmem>>, %arg11: memref<1x1x32xf32, #tpu.memory_space<vmem>>, %arg12: memref<1x32x64xbf16, #tpu.memory_space<vmem>>, %arg13: memref<1x1x64xf32, #tpu.memory_space<vmem>>, %arg14: memref<1x64x32xbf16, #tpu.memory_space<vmem>>, %arg15: memref<1x1x32xf32, #tpu.memory_space<vmem>>, %arg16: memref<1x1x32xf32, #tpu.memory_space<vmem>>, %arg17: memref<1x1x32xf32, #tpu.memory_space<vmem>>, %arg18: memref<32x128xbf16, #tpu.memory_space<vmem>>, %arg19: memref<1x128xf32, #tpu.memory_space<vmem>>, %arg20: memref<2x8x128xf32, #tpu.memory_space<vmem>>, %arg21: memref<16x32xf32, #tpu.memory_space<vmem>>) attributes {dimension_semantics = [#tpu.dimension_semantics<parallel>, #tpu.dimension_semantics<arbitrary>], iteration_bounds = array<i64: 1, 2>, scalar_prefetch = 0 : i64, scratch_operands = 1 : i64, tpu.core_type = #tpu.core_type<tc>, window_params = [{transform_indices = @transform_0, window_bounds = array<i64: 2, 8, 32>}, {transform_indices = @transform_1, window_bounds = array<i64: 2, 1, 8>}, {pipeline_mode = #tpu.pipeline_mode<synchronous>, transform_indices = @transform_2, window_bounds = array<i64: 1, 32>}, {pipeline_mode = #tpu.pipeline_mode<synchronous>, transform_indices = @transform_3, window_bounds = array<i64: 1, 32>}, {transform_indices = @transform_4, window_bounds = array<i64: 1, 32, 96>}, {transform_indices = @transform_5, window_bounds = array<i64: 1, 1, 96>}, {transform_indices = @transform_6, window_bounds = array<i64: 1, 32, 32>}, {transform_indices = @transform_7, window_bounds = array<i64: 1, 1, 32>}, {transform_indices = @transform_8, window_bounds = array<i64: 1, 1, 32>}, {transform_indices = @transform_9, window_bounds = array<i64: 1, 1, 32>}, {transform_indices = @transform_10, window_bounds = array<i64: 1, 32, 64>}, {transform_indices = @transform_11, window_bounds = array<i64: 1, 1, 64>}, {transform_indices = @transform_12, window_bounds = array<i64: 1, 64, 32>}, {transform_indices = @transform_13, window_bounds = array<i64: 1, 1, 32>}, {transform_indices = @transform_14, window_bounds = array<i64: 1, 1, 32>}, {transform_indices = @transform_15, window_bounds = array<i64: 1, 1, 32>}, {pipeline_mode = #tpu.pipeline_mode<synchronous>, transform_indices = @transform_16, window_bounds = array<i64: 32, 128>}, {pipeline_mode = #tpu.pipeline_mode<synchronous>, transform_indices = @transform_17, window_bounds = array<i64: 1, 128>}, {transform_indices = @transform_18, window_bounds = array<i64: 2, 8, 128>}]} {
    %c0_i32 = arith.constant 0 : i32
    %0 = arith.cmpi eq, %arg1, %c0_i32 : i32
    %1 = arith.extui %0 : i1 to i32
    %c0_i32_0 = arith.constant 0 : i32
    %2 = arith.cmpi ne, %1, %c0_i32_0 : i32
    scf.if %2 {
      %c0_72 = arith.constant 0 : index
      %c0_73 = arith.constant 0 : index
      %c0_74 = arith.constant 0 : index
      %224 = vector.load %arg2[%c0_72, %c0_73, %c0_74] : memref<2x8x32xf32, #tpu.memory_space<vmem>>, vector<2x8x32xf32>
      %225 = vector.shape_cast %224 : vector<2x8x32xf32> to vector<16x32xf32>
      %c0_75 = arith.constant 0 : index
      %c0_76 = arith.constant 0 : index
      %226 = vector.load %arg4[%c0_75, %c0_76] : memref<1x32xf32, #tpu.memory_space<vmem>>, vector<1x32xf32>
      %c0_77 = arith.constant 0 : index
      %c0_78 = arith.constant 0 : index
      %227 = vector.load %arg5[%c0_77, %c0_78] : memref<1x32xf32, #tpu.memory_space<vmem>>, vector<1x32xf32>
      %cst_79 = arith.constant dense<0.000000e+00> : vector<16xf32>
      %228 = vector.multi_reduction <add>, %225, %cst_79 [1] : vector<16x32xf32> to vector<16xf32>
      %229 = vector.shape_cast %228 : vector<16xf32> to vector<16x1xf32>
      %cst_80 = arith.constant 3.200000e+01 : f32
      %230 = vector.broadcast %cst_80 : f32 to vector<16x1xf32>
      %231 = arith.divf %229, %230 : vector<16x1xf32>
      %232 = vector.broadcast %231 : vector<16x1xf32> to vector<16x32xf32>
      %233 = arith.subf %225, %232 : vector<16x32xf32>
      %234 = arith.mulf %233, %233 : vector<16x32xf32>
      %cst_81 = arith.constant dense<0.000000e+00> : vector<16xf32>
      %235 = vector.multi_reduction <add>, %234, %cst_81 [1] : vector<16x32xf32> to vector<16xf32>
      %236 = vector.shape_cast %235 : vector<16xf32> to vector<16x1xf32>
      %cst_82 = arith.constant 3.200000e+01 : f32
      %237 = vector.broadcast %cst_82 : f32 to vector<16x1xf32>
      %238 = arith.divf %236, %237 : vector<16x1xf32>
      %239 = vector.broadcast %231 : vector<16x1xf32> to vector<16x32xf32>
      %240 = arith.subf %225, %239 : vector<16x32xf32>
      %cst_83 = arith.constant 9.99999996E-13 : f32
      %241 = vector.broadcast %cst_83 : f32 to vector<16x1xf32>
      %242 = arith.addf %238, %241 : vector<16x1xf32>
      %243 = math.rsqrt %242 : vector<16x1xf32>
      %244 = vector.broadcast %243 : vector<16x1xf32> to vector<16x32xf32>
      %245 = arith.mulf %240, %244 : vector<16x32xf32>
      %246 = vector.broadcast %226 : vector<1x32xf32> to vector<16x32xf32>
      %247 = arith.mulf %245, %246 : vector<16x32xf32>
      %248 = vector.broadcast %227 : vector<1x32xf32> to vector<16x32xf32>
      %249 = arith.addf %247, %248 : vector<16x32xf32>
      %c0_84 = arith.constant 0 : index
      %c0_85 = arith.constant 0 : index
      %250 = vector.load %arg21[%c0_84, %c0_85] : memref<16x32xf32, #tpu.memory_space<vmem>>, vector<16x32xf32>
      tpu.vector_store %arg21[%c0_84, %c0_85], %249 {strides = array<i32>} : memref<16x32xf32, #tpu.memory_space<vmem>>, vector<16x32xf32>,
    } else {
    }
    %c0 = arith.constant 0 : index
    %c0_1 = arith.constant 0 : index
    %3 = vector.load %arg21[%c0, %c0_1] : memref<16x32xf32, #tpu.memory_space<vmem>>, vector<16x32xf32>
    %4 = arith.truncf %3 : vector<16x32xf32> to vector<16x32xbf16>
    %c0_2 = arith.constant 0 : index
    %c0_3 = arith.constant 0 : index
    %c0_4 = arith.constant 0 : index
    %5 = vector.load %arg6[%c0_2, %c0_3, %c0_4] : memref<1x32x96xbf16, #tpu.memory_space<vmem>>, vector<1x32x96xbf16>
    %6 = vector.shape_cast %5 : vector<1x32x96xbf16> to vector<32x96xbf16>
    %cst = arith.constant dense<0.000000e+00> : vector<16x96xf32>
    %7 = tpu.matmul %4, %6, %cst {dimension_numbers = #tpu.dot_dimension_numbers<[1], [0], [0], [1], [0, 0, 1, 1], [], []>} : vector<16x32xbf16>, vector<32x96xbf16>, vector<16x96xf32> -> vector<16x96xf32>
    %c0_5 = arith.constant 0 : index
    %c0_6 = arith.constant 0 : index
    %c0_7 = arith.constant 0 : index
    %8 = vector.load %arg7[%c0_5, %c0_6, %c0_7] : memref<1x1x96xf32, #tpu.memory_space<vmem>>, vector<1x1x96xf32>
    %9 = vector.shape_cast %8 : vector<1x1x96xf32> to vector<1x96xf32>
    %10 = vector.broadcast %9 : vector<1x96xf32> to vector<16x96xf32>
    %11 = arith.addf %7, %10 : vector<16x96xf32>
    %12 = vector.extract_strided_slice %11 {offsets = [0, 0], sizes = [16, 32], strides = [1, 1]} : vector<16x96xf32> to vector<16x32xf32>
    %cst_8 = arith.constant 0.353553385 : f32
    %13 = vector.broadcast %cst_8 : f32 to vector<16x32xf32>
    %14 = arith.mulf %12, %13 : vector<16x32xf32>
    %15 = arith.truncf %14 : vector<16x32xf32> to vector<16x32xbf16>
    %16 = vector.extract_strided_slice %11 {offsets = [0, 32], sizes = [16, 32], strides = [1, 1]} : vector<16x96xf32> to vector<16x32xf32>
    %17 = arith.truncf %16 : vector<16x32xf32> to vector<16x32xbf16>
    %18 = vector.extract_strided_slice %11 {offsets = [0, 64], sizes = [16, 32], strides = [1, 1]} : vector<16x96xf32> to vector<16x32xf32>
    %19 = arith.truncf %18 : vector<16x32xf32> to vector<16x32xbf16>
    %c0_9 = arith.constant 0 : index
    %c0_10 = arith.constant 0 : index
    %c0_11 = arith.constant 0 : index
    %20 = vector.load %arg3[%c0_9, %c0_10, %c0_11] : memref<2x1x8xf32, #tpu.memory_space<vmem>>, vector<1x1x8xf32>
    %21 = vector.shape_cast %20 : vector<1x1x8xf32> to vector<1x8xf32>
    %22 = vector.extract_strided_slice %15 {offsets = [0, 0], sizes = [8, 8], strides = [1, 1]} : vector<16x32xbf16> to vector<8x8xbf16>
    %23 = vector.extract_strided_slice %15 {offsets = [0, 8], sizes = [8, 8], strides = [1, 1]} : vector<16x32xbf16> to vector<8x8xbf16>
    %24 = vector.extract_strided_slice %15 {offsets = [0, 16], sizes = [8, 8], strides = [1, 1]} : vector<16x32xbf16> to vector<8x8xbf16>
    %25 = vector.extract_strided_slice %15 {offsets = [0, 24], sizes = [8, 8], strides = [1, 1]} : vector<16x32xbf16> to vector<8x8xbf16>
    %26 = vector.shape_cast %22 : vector<8x8xbf16> to vector<1x8x8xbf16>
    %27 = vector.shape_cast %23 : vector<8x8xbf16> to vector<1x8x8xbf16>
    %28 = vector.shape_cast %24 : vector<8x8xbf16> to vector<1x8x8xbf16>
    %29 = vector.shape_cast %25 : vector<8x8xbf16> to vector<1x8x8xbf16>
    %30 = tpu.concatenate %26, %27, %28, %29 in 0 : vector<1x8x8xbf16>, vector<1x8x8xbf16>, vector<1x8x8xbf16>, vector<1x8x8xbf16> -> vector<4x8x8xbf16>
    %31 = vector.extract_strided_slice %17 {offsets = [0, 0], sizes = [8, 8], strides = [1, 1]} : vector<16x32xbf16> to vector<8x8xbf16>
    %32 = vector.extract_strided_slice %17 {offsets = [0, 8], sizes = [8, 8], strides = [1, 1]} : vector<16x32xbf16> to vector<8x8xbf16>
    %33 = vector.extract_strided_slice %17 {offsets = [0, 16], sizes = [8, 8], strides = [1, 1]} : vector<16x32xbf16> to vector<8x8xbf16>
    %34 = vector.extract_strided_slice %17 {offsets = [0, 24], sizes = [8, 8], strides = [1, 1]} : vector<16x32xbf16> to vector<8x8xbf16>
    %35 = vector.shape_cast %31 : vector<8x8xbf16> to vector<1x8x8xbf16>
    %36 = vector.shape_cast %32 : vector<8x8xbf16> to vector<1x8x8xbf16>
    %37 = vector.shape_cast %33 : vector<8x8xbf16> to vector<1x8x8xbf16>
    %38 = vector.shape_cast %34 : vector<8x8xbf16> to vector<1x8x8xbf16>
    %39 = tpu.concatenate %35, %36, %37, %38 in 0 : vector<1x8x8xbf16>, vector<1x8x8xbf16>, vector<1x8x8xbf16>, vector<1x8x8xbf16> -> vector<4x8x8xbf16>
    %40 = vector.extract_strided_slice %19 {offsets = [0, 0], sizes = [8, 8], strides = [1, 1]} : vector<16x32xbf16> to vector<8x8xbf16>
    %41 = vector.extract_strided_slice %19 {offsets = [0, 8], sizes = [8, 8], strides = [1, 1]} : vector<16x32xbf16> to vector<8x8xbf16>
    %42 = vector.extract_strided_slice %19 {offsets = [0, 16], sizes = [8, 8], strides = [1, 1]} : vector<16x32xbf16> to vector<8x8xbf16>
    %43 = vector.extract_strided_slice %19 {offsets = [0, 24], sizes = [8, 8], strides = [1, 1]} : vector<16x32xbf16> to vector<8x8xbf16>
    %44 = vector.shape_cast %40 : vector<8x8xbf16> to vector<1x8x8xbf16>
    %45 = vector.shape_cast %41 : vector<8x8xbf16> to vector<1x8x8xbf16>
    %46 = vector.shape_cast %42 : vector<8x8xbf16> to vector<1x8x8xbf16>
    %47 = vector.shape_cast %43 : vector<8x8xbf16> to vector<1x8x8xbf16>
    %48 = tpu.concatenate %44, %45, %46, %47 in 0 : vector<1x8x8xbf16>, vector<1x8x8xbf16>, vector<1x8x8xbf16>, vector<1x8x8xbf16> -> vector<4x8x8xbf16>
    "tpu.trace_start"() <{level = 10 : i32, message = "hqd,hkd->hqk"}> : () -> ()
    %cst_12 = arith.constant dense<0.000000e+00> : vector<4x8x8xf32>
    %49 = tpu.matmul %30, %39, %cst_12 {dimension_numbers = #tpu.dot_dimension_numbers<[2], [2], [1], [1], [0, 0, 0, 1, 1, 1], [0], [0]>} : vector<4x8x8xbf16>, vector<4x8x8xbf16>, vector<4x8x8xf32> -> vector<4x8x8xf32>
    "tpu.trace_stop"() : () -> ()
    %50 = vector.shape_cast %21 : vector<1x8xf32> to vector<1x1x8xf32>
    %51 = vector.broadcast %50 : vector<1x1x8xf32> to vector<4x8x8xf32>
    %52 = arith.addf %49, %51 : vector<4x8x8xf32>
    %cst_13 = arith.constant dense<0xFF800000> : vector<4x8xf32>
    %53 = vector.multi_reduction <maximumf>, %52, %cst_13 [2] : vector<4x8x8xf32> to vector<4x8xf32>
    %54 = vector.shape_cast %53 : vector<4x8xf32> to vector<4x8x1xf32>
    %55 = vector.broadcast %54 : vector<4x8x1xf32> to vector<4x8x8xf32>
    %56 = arith.subf %52, %55 : vector<4x8x8xf32>
    %57 = math.exp %56 : vector<4x8x8xf32>
    %cst_14 = arith.constant dense<0.000000e+00> : vector<4x8xf32>
    %58 = vector.multi_reduction <add>, %57, %cst_14 [2] : vector<4x8x8xf32> to vector<4x8xf32>
    %59 = vector.shape_cast %58 : vector<4x8xf32> to vector<4x8x1xf32>
    %60 = tpu.reciprocal %59 {approx = true} : vector<4x8x1xf32> -> vector<4x8x1xf32>
    %61 = vector.broadcast %60 : vector<4x8x1xf32> to vector<4x8x8xf32>
    %62 = arith.mulf %57, %61 : vector<4x8x8xf32>
    %63 = arith.truncf %62 : vector<4x8x8xf32> to vector<4x8x8xbf16>
    "tpu.trace_start"() <{level = 10 : i32, message = "hqk,hkd->hqd"}> : () -> ()
    %cst_15 = arith.constant dense<0.000000e+00> : vector<4x8x8xf32>
    %64 = tpu.matmul %63, %48, %cst_15 {dimension_numbers = #tpu.dot_dimension_numbers<[2], [1], [1], [2], [0, 0, 0, 1, 1, 2], [0], [0]>} : vector<4x8x8xbf16>, vector<4x8x8xbf16>, vector<4x8x8xf32> -> vector<4x8x8xf32>
    "tpu.trace_stop"() : () -> ()
    %65 = vector.extract_strided_slice %64 {offsets = [0, 0, 0], sizes = [1, 8, 8], strides = [1, 1, 1]} : vector<4x8x8xf32> to vector<1x8x8xf32>
    %66 = vector.shape_cast %65 : vector<1x8x8xf32> to vector<8x8xf32>
    %67 = vector.extract_strided_slice %64 {offsets = [1, 0, 0], sizes = [1, 8, 8], strides = [1, 1, 1]} : vector<4x8x8xf32> to vector<1x8x8xf32>
    %68 = vector.shape_cast %67 : vector<1x8x8xf32> to vector<8x8xf32>
    %69 = vector.extract_strided_slice %64 {offsets = [2, 0, 0], sizes = [1, 8, 8], strides = [1, 1, 1]} : vector<4x8x8xf32> to vector<1x8x8xf32>
    %70 = vector.shape_cast %69 : vector<1x8x8xf32> to vector<8x8xf32>
    %71 = vector.extract_strided_slice %64 {offsets = [3, 0, 0], sizes = [1, 8, 8], strides = [1, 1, 1]} : vector<4x8x8xf32> to vector<1x8x8xf32>
    %72 = vector.shape_cast %71 : vector<1x8x8xf32> to vector<8x8xf32>
    %73 = tpu.concatenate %66, %68, %70, %72 in 1 : vector<8x8xf32>, vector<8x8xf32>, vector<8x8xf32>, vector<8x8xf32> -> vector<8x32xf32>
    %c1 = arith.constant 1 : index
    %c0_16 = arith.constant 0 : index
    %c0_17 = arith.constant 0 : index
    %74 = vector.load %arg3[%c1, %c0_16, %c0_17] : memref<2x1x8xf32, #tpu.memory_space<vmem>>, vector<1x1x8xf32>
    %75 = vector.shape_cast %74 : vector<1x1x8xf32> to vector<1x8xf32>
    %76 = vector.extract_strided_slice %15 {offsets = [8, 0], sizes = [8, 8], strides = [1, 1]} : vector<16x32xbf16> to vector<8x8xbf16>
    %77 = vector.extract_strided_slice %15 {offsets = [8, 8], sizes = [8, 8], strides = [1, 1]} : vector<16x32xbf16> to vector<8x8xbf16>
    %78 = vector.extract_strided_slice %15 {offsets = [8, 16], sizes = [8, 8], strides = [1, 1]} : vector<16x32xbf16> to vector<8x8xbf16>
    %79 = vector.extract_strided_slice %15 {offsets = [8, 24], sizes = [8, 8], strides = [1, 1]} : vector<16x32xbf16> to vector<8x8xbf16>
    %80 = vector.shape_cast %76 : vector<8x8xbf16> to vector<1x8x8xbf16>
    %81 = vector.shape_cast %77 : vector<8x8xbf16> to vector<1x8x8xbf16>
    %82 = vector.shape_cast %78 : vector<8x8xbf16> to vector<1x8x8xbf16>
    %83 = vector.shape_cast %79 : vector<8x8xbf16> to vector<1x8x8xbf16>
    %84 = tpu.concatenate %80, %81, %82, %83 in 0 : vector<1x8x8xbf16>, vector<1x8x8xbf16>, vector<1x8x8xbf16>, vector<1x8x8xbf16> -> vector<4x8x8xbf16>
    %85 = vector.extract_strided_slice %17 {offsets = [8, 0], sizes = [8, 8], strides = [1, 1]} : vector<16x32xbf16> to vector<8x8xbf16>
    %86 = vector.extract_strided_slice %17 {offsets = [8, 8], sizes = [8, 8], strides = [1, 1]} : vector<16x32xbf16> to vector<8x8xbf16>
    %87 = vector.extract_strided_slice %17 {offsets = [8, 16], sizes = [8, 8], strides = [1, 1]} : vector<16x32xbf16> to vector<8x8xbf16>
    %88 = vector.extract_strided_slice %17 {offsets = [8, 24], sizes = [8, 8], strides = [1, 1]} : vector<16x32xbf16> to vector<8x8xbf16>
    %89 = vector.shape_cast %85 : vector<8x8xbf16> to vector<1x8x8xbf16>
    %90 = vector.shape_cast %86 : vector<8x8xbf16> to vector<1x8x8xbf16>
    %91 = vector.shape_cast %87 : vector<8x8xbf16> to vector<1x8x8xbf16>
    %92 = vector.shape_cast %88 : vector<8x8xbf16> to vector<1x8x8xbf16>
    %93 = tpu.concatenate %89, %90, %91, %92 in 0 : vector<1x8x8xbf16>, vector<1x8x8xbf16>, vector<1x8x8xbf16>, vector<1x8x8xbf16> -> vector<4x8x8xbf16>
    %94 = vector.extract_strided_slice %19 {offsets = [8, 0], sizes = [8, 8], strides = [1, 1]} : vector<16x32xbf16> to vector<8x8xbf16>
    %95 = vector.extract_strided_slice %19 {offsets = [8, 8], sizes = [8, 8], strides = [1, 1]} : vector<16x32xbf16> to vector<8x8xbf16>
    %96 = vector.extract_strided_slice %19 {offsets = [8, 16], sizes = [8, 8], strides = [1, 1]} : vector<16x32xbf16> to vector<8x8xbf16>
    %97 = vector.extract_strided_slice %19 {offsets = [8, 24], sizes = [8, 8], strides = [1, 1]} : vector<16x32xbf16> to vector<8x8xbf16>
    %98 = vector.shape_cast %94 : vector<8x8xbf16> to vector<1x8x8xbf16>
    %99 = vector.shape_cast %95 : vector<8x8xbf16> to vector<1x8x8xbf16>
    %100 = vector.shape_cast %96 : vector<8x8xbf16> to vector<1x8x8xbf16>
    %101 = vector.shape_cast %97 : vector<8x8xbf16> to vector<1x8x8xbf16>
    %102 = tpu.concatenate %98, %99, %100, %101 in 0 : vector<1x8x8xbf16>, vector<1x8x8xbf16>, vector<1x8x8xbf16>, vector<1x8x8xbf16> -> vector<4x8x8xbf16>
    "tpu.trace_start"() <{level = 10 : i32, message = "hqd,hkd->hqk"}> : () -> ()
    %cst_18 = arith.constant dense<0.000000e+00> : vector<4x8x8xf32>
    %103 = tpu.matmul %84, %93, %cst_18 {dimension_numbers = #tpu.dot_dimension_numbers<[2], [2], [1], [1], [0, 0, 0, 1, 1, 1], [0], [0]>} : vector<4x8x8xbf16>, vector<4x8x8xbf16>, vector<4x8x8xf32> -> vector<4x8x8xf32>
    "tpu.trace_stop"() : () -> ()
    %104 = vector.shape_cast %75 : vector<1x8xf32> to vector<1x1x8xf32>
    %105 = vector.broadcast %104 : vector<1x1x8xf32> to vector<4x8x8xf32>
    %106 = arith.addf %103, %105 : vector<4x8x8xf32>
    %cst_19 = arith.constant dense<0xFF800000> : vector<4x8xf32>
    %107 = vector.multi_reduction <maximumf>, %106, %cst_19 [2] : vector<4x8x8xf32> to vector<4x8xf32>
    %108 = vector.shape_cast %107 : vector<4x8xf32> to vector<4x8x1xf32>
    %109 = vector.broadcast %108 : vector<4x8x1xf32> to vector<4x8x8xf32>
    %110 = arith.subf %106, %109 : vector<4x8x8xf32>
    %111 = math.exp %110 : vector<4x8x8xf32>
    %cst_20 = arith.constant dense<0.000000e+00> : vector<4x8xf32>
    %112 = vector.multi_reduction <add>, %111, %cst_20 [2] : vector<4x8x8xf32> to vector<4x8xf32>
    %113 = vector.shape_cast %112 : vector<4x8xf32> to vector<4x8x1xf32>
    %114 = tpu.reciprocal %113 {approx = true} : vector<4x8x1xf32> -> vector<4x8x1xf32>
    %115 = vector.broadcast %114 : vector<4x8x1xf32> to vector<4x8x8xf32>
    %116 = arith.mulf %111, %115 : vector<4x8x8xf32>
    %117 = arith.truncf %116 : vector<4x8x8xf32> to vector<4x8x8xbf16>
    "tpu.trace_start"() <{level = 10 : i32, message = "hqk,hkd->hqd"}> : () -> ()
    %cst_21 = arith.constant dense<0.000000e+00> : vector<4x8x8xf32>
    %118 = tpu.matmul %117, %102, %cst_21 {dimension_numbers = #tpu.dot_dimension_numbers<[2], [1], [1], [2], [0, 0, 0, 1, 1, 2], [0], [0]>} : vector<4x8x8xbf16>, vector<4x8x8xbf16>, vector<4x8x8xf32> -> vector<4x8x8xf32>
    "tpu.trace_stop"() : () -> ()
    %119 = vector.extract_strided_slice %118 {offsets = [0, 0, 0], sizes = [1, 8, 8], strides = [1, 1, 1]} : vector<4x8x8xf32> to vector<1x8x8xf32>
    %120 = vector.shape_cast %119 : vector<1x8x8xf32> to vector<8x8xf32>
    %121 = vector.extract_strided_slice %118 {offsets = [1, 0, 0], sizes = [1, 8, 8], strides = [1, 1, 1]} : vector<4x8x8xf32> to vector<1x8x8xf32>
    %122 = vector.shape_cast %121 : vector<1x8x8xf32> to vector<8x8xf32>
    %123 = vector.extract_strided_slice %118 {offsets = [2, 0, 0], sizes = [1, 8, 8], strides = [1, 1, 1]} : vector<4x8x8xf32> to vector<1x8x8xf32>
    %124 = vector.shape_cast %123 : vector<1x8x8xf32> to vector<8x8xf32>
    %125 = vector.extract_strided_slice %118 {offsets = [3, 0, 0], sizes = [1, 8, 8], strides = [1, 1, 1]} : vector<4x8x8xf32> to vector<1x8x8xf32>
    %126 = vector.shape_cast %125 : vector<1x8x8xf32> to vector<8x8xf32>
    %127 = tpu.concatenate %120, %122, %124, %126 in 1 : vector<8x8xf32>, vector<8x8xf32>, vector<8x8xf32>, vector<8x8xf32> -> vector<8x32xf32>
    %128 = tpu.concatenate %73, %127 in 0 : vector<8x32xf32>, vector<8x32xf32> -> vector<16x32xf32>
    %129 = arith.truncf %128 : vector<16x32xf32> to vector<16x32xbf16>
    %c0_22 = arith.constant 0 : index
    %c0_23 = arith.constant 0 : index
    %c0_24 = arith.constant 0 : index
    %130 = vector.load %arg8[%c0_22, %c0_23, %c0_24] : memref<1x32x32xbf16, #tpu.memory_space<vmem>>, vector<1x32x32xbf16>
    %131 = vector.shape_cast %130 : vector<1x32x32xbf16> to vector<32x32xbf16>
    %cst_25 = arith.constant dense<0.000000e+00> : vector<16x32xf32>
    %132 = tpu.matmul %129, %131, %cst_25 {dimension_numbers = #tpu.dot_dimension_numbers<[1], [0], [0], [1], [0, 0, 1, 1], [], []>} : vector<16x32xbf16>, vector<32x32xbf16>, vector<16x32xf32> -> vector<16x32xf32>
    %c0_26 = arith.constant 0 : index
    %c0_27 = arith.constant 0 : index
    %c0_28 = arith.constant 0 : index
    %133 = vector.load %arg9[%c0_26, %c0_27, %c0_28] : memref<1x1x32xf32, #tpu.memory_space<vmem>>, vector<1x1x32xf32>
    %134 = vector.shape_cast %133 : vector<1x1x32xf32> to vector<1x32xf32>
    %135 = vector.broadcast %134 : vector<1x32xf32> to vector<16x32xf32>
    %136 = arith.addf %132, %135 : vector<16x32xf32>
    %137 = arith.addf %136, %3 : vector<16x32xf32>
    %c0_29 = arith.constant 0 : index
    %c0_30 = arith.constant 0 : index
    %c0_31 = arith.constant 0 : index
    %138 = vector.load %arg10[%c0_29, %c0_30, %c0_31] : memref<1x1x32xf32, #tpu.memory_space<vmem>>, vector<1x1x32xf32>
    %139 = vector.shape_cast %138 : vector<1x1x32xf32> to vector<1x32xf32>
    %c0_32 = arith.constant 0 : index
    %c0_33 = arith.constant 0 : index
    %c0_34 = arith.constant 0 : index
    %140 = vector.load %arg11[%c0_32, %c0_33, %c0_34] : memref<1x1x32xf32, #tpu.memory_space<vmem>>, vector<1x1x32xf32>
    %141 = vector.shape_cast %140 : vector<1x1x32xf32> to vector<1x32xf32>
    %cst_35 = arith.constant dense<0.000000e+00> : vector<16xf32>
    %142 = vector.multi_reduction <add>, %137, %cst_35 [1] : vector<16x32xf32> to vector<16xf32>
    %143 = vector.shape_cast %142 : vector<16xf32> to vector<16x1xf32>
    %cst_36 = arith.constant 3.200000e+01 : f32
    %144 = vector.broadcast %cst_36 : f32 to vector<16x1xf32>
    %145 = arith.divf %143, %144 : vector<16x1xf32>
    %146 = vector.broadcast %145 : vector<16x1xf32> to vector<16x32xf32>
    %147 = arith.subf %137, %146 : vector<16x32xf32>
    %148 = arith.mulf %147, %147 : vector<16x32xf32>
    %cst_37 = arith.constant dense<0.000000e+00> : vector<16xf32>
    %149 = vector.multi_reduction <add>, %148, %cst_37 [1] : vector<16x32xf32> to vector<16xf32>
    %150 = vector.shape_cast %149 : vector<16xf32> to vector<16x1xf32>
    %cst_38 = arith.constant 3.200000e+01 : f32
    %151 = vector.broadcast %cst_38 : f32 to vector<16x1xf32>
    %152 = arith.divf %150, %151 : vector<16x1xf32>
    %153 = vector.broadcast %145 : vector<16x1xf32> to vector<16x32xf32>
    %154 = arith.subf %137, %153 : vector<16x32xf32>
    %cst_39 = arith.constant 9.99999996E-13 : f32
    %155 = vector.broadcast %cst_39 : f32 to vector<16x1xf32>
    %156 = arith.addf %152, %155 : vector<16x1xf32>
    %157 = math.rsqrt %156 : vector<16x1xf32>
    %158 = vector.broadcast %157 : vector<16x1xf32> to vector<16x32xf32>
    %159 = arith.mulf %154, %158 : vector<16x32xf32>
    %160 = vector.broadcast %139 : vector<1x32xf32> to vector<16x32xf32>
    %161 = arith.mulf %159, %160 : vector<16x32xf32>
    %162 = vector.broadcast %141 : vector<1x32xf32> to vector<16x32xf32>
    %163 = arith.addf %161, %162 : vector<16x32xf32>
    %164 = arith.truncf %163 : vector<16x32xf32> to vector<16x32xbf16>
    %c0_40 = arith.constant 0 : index
    %c0_41 = arith.constant 0 : index
    %c0_42 = arith.constant 0 : index
    %165 = vector.load %arg12[%c0_40, %c0_41, %c0_42] : memref<1x32x64xbf16, #tpu.memory_space<vmem>>, vector<1x32x64xbf16>
    %166 = vector.shape_cast %165 : vector<1x32x64xbf16> to vector<32x64xbf16>
    %cst_43 = arith.constant dense<0.000000e+00> : vector<16x64xf32>
    %167 = tpu.matmul %164, %166, %cst_43 {dimension_numbers = #tpu.dot_dimension_numbers<[1], [0], [0], [1], [0, 0, 1, 1], [], []>} : vector<16x32xbf16>, vector<32x64xbf16>, vector<16x64xf32> -> vector<16x64xf32>
    %c0_44 = arith.constant 0 : index
    %c0_45 = arith.constant 0 : index
    %c0_46 = arith.constant 0 : index
    %168 = vector.load %arg13[%c0_44, %c0_45, %c0_46] : memref<1x1x64xf32, #tpu.memory_space<vmem>>, vector<1x1x64xf32>
    %169 = vector.shape_cast %168 : vector<1x1x64xf32> to vector<1x64xf32>
    %170 = vector.broadcast %169 : vector<1x64xf32> to vector<16x64xf32>
    %171 = arith.addf %167, %170 : vector<16x64xf32>
    %cst_47 = arith.constant 5.000000e-01 : f32
    %172 = vector.broadcast %cst_47 : f32 to vector<16x64xf32>
    %173 = arith.mulf %172, %171 : vector<16x64xf32>
    %cst_48 = arith.constant 4.471500e-02 : f32
    %174 = vector.broadcast %cst_48 : f32 to vector<16x64xf32>
    %175 = arith.mulf %174, %171 : vector<16x64xf32>
    %176 = arith.mulf %175, %171 : vector<16x64xf32>
    %177 = arith.mulf %176, %171 : vector<16x64xf32>
    %178 = arith.addf %171, %177 : vector<16x64xf32>
    %cst_49 = arith.constant 0.797884583 : f32
    %179 = vector.broadcast %cst_49 : f32 to vector<16x64xf32>
    %180 = arith.mulf %179, %178 : vector<16x64xf32>
    %181 = math.tanh %180 : vector<16x64xf32>
    %cst_50 = arith.constant 1.000000e+00 : f32
    %182 = vector.broadcast %cst_50 : f32 to vector<16x64xf32>
    %183 = arith.addf %182, %181 : vector<16x64xf32>
    %184 = arith.mulf %173, %183 : vector<16x64xf32>
    %185 = arith.truncf %184 : vector<16x64xf32> to vector<16x64xbf16>
    %c0_51 = arith.constant 0 : index
    %c0_52 = arith.constant 0 : index
    %c0_53 = arith.constant 0 : index
    %186 = vector.load %arg14[%c0_51, %c0_52, %c0_53] : memref<1x64x32xbf16, #tpu.memory_space<vmem>>, vector<1x64x32xbf16>
    %187 = vector.shape_cast %186 : vector<1x64x32xbf16> to vector<64x32xbf16>
    %cst_54 = arith.constant dense<0.000000e+00> : vector<16x32xf32>
    %188 = tpu.matmul %185, %187, %cst_54 {dimension_numbers = #tpu.dot_dimension_numbers<[1], [0], [0], [1], [0, 0, 1, 1], [], []>} : vector<16x64xbf16>, vector<64x32xbf16>, vector<16x32xf32> -> vector<16x32xf32>
    %c0_55 = arith.constant 0 : index
    %c0_56 = arith.constant 0 : index
    %c0_57 = arith.constant 0 : index
    %189 = vector.load %arg15[%c0_55, %c0_56, %c0_57] : memref<1x1x32xf32, #tpu.memory_space<vmem>>, vector<1x1x32xf32>
    %190 = vector.shape_cast %189 : vector<1x1x32xf32> to vector<1x32xf32>
    %191 = vector.broadcast %190 : vector<1x32xf32> to vector<16x32xf32>
    %192 = arith.addf %188, %191 : vector<16x32xf32>
    %193 = arith.addf %192, %163 : vector<16x32xf32>
    %c0_58 = arith.constant 0 : index
    %c0_59 = arith.constant 0 : index
    %c0_60 = arith.constant 0 : index
    %194 = vector.load %arg16[%c0_58, %c0_59, %c0_60] : memref<1x1x32xf32, #tpu.memory_space<vmem>>, vector<1x1x32xf32>
    %195 = vector.shape_cast %194 : vector<1x1x32xf32> to vector<1x32xf32>
    %c0_61 = arith.constant 0 : index
    %c0_62 = arith.constant 0 : index
    %c0_63 = arith.constant 0 : index
    %196 = vector.load %arg17[%c0_61, %c0_62, %c0_63] : memref<1x1x32xf32, #tpu.memory_space<vmem>>, vector<1x1x32xf32>
    %197 = vector.shape_cast %196 : vector<1x1x32xf32> to vector<1x32xf32>
    %cst_64 = arith.constant dense<0.000000e+00> : vector<16xf32>
    %198 = vector.multi_reduction <add>, %193, %cst_64 [1] : vector<16x32xf32> to vector<16xf32>
    %199 = vector.shape_cast %198 : vector<16xf32> to vector<16x1xf32>
    %cst_65 = arith.constant 3.200000e+01 : f32
    %200 = vector.broadcast %cst_65 : f32 to vector<16x1xf32>
    %201 = arith.divf %199, %200 : vector<16x1xf32>
    %202 = vector.broadcast %201 : vector<16x1xf32> to vector<16x32xf32>
    %203 = arith.subf %193, %202 : vector<16x32xf32>
    %204 = arith.mulf %203, %203 : vector<16x32xf32>
    %cst_66 = arith.constant dense<0.000000e+00> : vector<16xf32>
    %205 = vector.multi_reduction <add>, %204, %cst_66 [1] : vector<16x32xf32> to vector<16xf32>
    %206 = vector.shape_cast %205 : vector<16xf32> to vector<16x1xf32>
    %cst_67 = arith.constant 3.200000e+01 : f32
    %207 = vector.broadcast %cst_67 : f32 to vector<16x1xf32>
    %208 = arith.divf %206, %207 : vector<16x1xf32>
    %209 = vector.broadcast %201 : vector<16x1xf32> to vector<16x32xf32>
    %210 = arith.subf %193, %209 : vector<16x32xf32>
    %cst_68 = arith.constant 9.99999996E-13 : f32
    %211 = vector.broadcast %cst_68 : f32 to vector<16x1xf32>
    %212 = arith.addf %208, %211 : vector<16x1xf32>
    %213 = math.rsqrt %212 : vector<16x1xf32>
    %214 = vector.broadcast %213 : vector<16x1xf32> to vector<16x32xf32>
    %215 = arith.mulf %210, %214 : vector<16x32xf32>
    %216 = vector.broadcast %195 : vector<1x32xf32> to vector<16x32xf32>
    %217 = arith.mulf %215, %216 : vector<16x32xf32>
    %218 = vector.broadcast %197 : vector<1x32xf32> to vector<16x32xf32>
    %219 = arith.addf %217, %218 : vector<16x32xf32>
    %c0_69 = arith.constant 0 : index
    %c0_70 = arith.constant 0 : index
    %220 = vector.load %arg21[%c0_69, %c0_70] : memref<16x32xf32, #tpu.memory_space<vmem>>, vector<16x32xf32>
    tpu.vector_store %arg21[%c0_69, %c0_70], %219 {strides = array<i32>} : memref<16x32xf32, #tpu.memory_space<vmem>>, vector<16x32xf32>,
    %c1_i32 = arith.constant 1 : i32
    %221 = arith.cmpi eq, %arg1, %c1_i32 : i32
    %222 = arith.extui %221 : i1 to i32
    %c0_i32_71 = arith.constant 0 : i32
    %223 = arith.cmpi ne, %222, %c0_i32_71 : i32
    scf.if %223 {
      %224 = arith.truncf %219 : vector<16x32xf32> to vector<16x32xbf16>
      %c0_72 = arith.constant 0 : index
      %c0_73 = arith.constant 0 : index
      %225 = vector.load %arg18[%c0_72, %c0_73] : memref<32x128xbf16, #tpu.memory_space<vmem>>, vector<32x128xbf16>
      %cst_74 = arith.constant dense<0.000000e+00> : vector<16x128xf32>
      %226 = tpu.matmul %224, %225, %cst_74 {dimension_numbers = #tpu.dot_dimension_numbers<[1], [0], [0], [1], [0, 0, 1, 1], [], []>} : vector<16x32xbf16>, vector<32x128xbf16>, vector<16x128xf32> -> vector<16x128xf32>
      %c0_75 = arith.constant 0 : index
      %c0_76 = arith.constant 0 : index
      %227 = vector.load %arg19[%c0_75, %c0_76] : memref<1x128xf32, #tpu.memory_space<vmem>>, vector<1x128xf32>
      %228 = vector.broadcast %227 : vector<1x128xf32> to vector<16x128xf32>
      %229 = arith.addf %226, %228 : vector<16x128xf32>
      %230 = vector.shape_cast %229 : vector<16x128xf32> to vector<2x8x128xf32>
      %c0_77 = arith.constant 0 : index
      %c0_78 = arith.constant 0 : index
      %c0_79 = arith.constant 0 : index
      %231 = vector.load %arg20[%c0_77, %c0_78, %c0_79] : memref<2x8x128xf32, #tpu.memory_space<vmem>>, vector<2x8x128xf32>
      tpu.vector_store %arg20[%c0_77, %c0_78, %c0_79], %230 {strides = array<i32>} : memref<2x8x128xf32, #tpu.memory_space<vmem>>, vector<2x8x128xf32>,
    } else {
    }
    return
  }
  func.func @transform_0(%arg0: i32, %arg1: i32) -> (i32, i32, i32) {
    %c0_i32 = arith.constant 0 : i32
    %c0_i32_0 = arith.constant 0 : i32
    %c0_i32_1 = arith.constant 0 : i32
    return %arg0, %c0_i32, %c0_i32_0 : i32, i32, i32
  }
  func.func @transform_1(%arg0: i32, %arg1: i32) -> (i32, i32, i32) {
    %c0_i32 = arith.constant 0 : i32
    %c0_i32_0 = arith.constant 0 : i32
    %c0_i32_1 = arith.constant 0 : i32
    return %arg0, %c0_i32, %c0_i32_0 : i32, i32, i32
  }
  func.func @transform_2(%arg0: i32, %arg1: i32) -> (i32, i32) {
    %c0_i32 = arith.constant 0 : i32
    %c0_i32_0 = arith.constant 0 : i32
    %c0_i32_1 = arith.constant 0 : i32
    return %c0_i32, %c0_i32_0 : i32, i32
  }
  func.func @transform_3(%arg0: i32, %arg1: i32) -> (i32, i32) {
    %c0_i32 = arith.constant 0 : i32
    %c0_i32_0 = arith.constant 0 : i32
    %c0_i32_1 = arith.constant 0 : i32
    return %c0_i32, %c0_i32_0 : i32, i32
  }
  func.func @transform_4(%arg0: i32, %arg1: i32) -> (i32, i32, i32) {
    %c0_i32 = arith.constant 0 : i32
    %c0_i32_0 = arith.constant 0 : i32
    %c0_i32_1 = arith.constant 0 : i32
    return %arg1, %c0_i32, %c0_i32_0 : i32, i32, i32
  }
  func.func @transform_5(%arg0: i32, %arg1: i32) -> (i32, i32, i32) {
    %c0_i32 = arith.constant 0 : i32
    %c0_i32_0 = arith.constant 0 : i32
    %c0_i32_1 = arith.constant 0 : i32
    return %arg1, %c0_i32, %c0_i32_0 : i32, i32, i32
  }
  func.func @transform_6(%arg0: i32, %arg1: i32) -> (i32, i32, i32) {
    %c0_i32 = arith.constant 0 : i32
    %c0_i32_0 = arith.constant 0 : i32
    %c0_i32_1 = arith.constant 0 : i32
    return %arg1, %c0_i32, %c0_i32_0 : i32, i32, i32
  }
  func.func @transform_7(%arg0: i32, %arg1: i32) -> (i32, i32, i32) {
    %c0_i32 = arith.constant 0 : i32
    %c0_i32_0 = arith.constant 0 : i32
    %c0_i32_1 = arith.constant 0 : i32
    return %arg1, %c0_i32, %c0_i32_0 : i32, i32, i32
  }
  func.func @transform_8(%arg0: i32, %arg1: i32) -> (i32, i32, i32) {
    %c0_i32 = arith.constant 0 : i32
    %c0_i32_0 = arith.constant 0 : i32
    %c0_i32_1 = arith.constant 0 : i32
    return %arg1, %c0_i32, %c0_i32_0 : i32, i32, i32
  }
  func.func @transform_9(%arg0: i32, %arg1: i32) -> (i32, i32, i32) {
    %c0_i32 = arith.constant 0 : i32
    %c0_i32_0 = arith.constant 0 : i32
    %c0_i32_1 = arith.constant 0 : i32
    return %arg1, %c0_i32, %c0_i32_0 : i32, i32, i32
  }
  func.func @transform_10(%arg0: i32, %arg1: i32) -> (i32, i32, i32) {
    %c0_i32 = arith.constant 0 : i32
    %c0_i32_0 = arith.constant 0 : i32
    %c0_i32_1 = arith.constant 0 : i32
    return %arg1, %c0_i32, %c0_i32_0 : i32, i32, i32
  }
  func.func @transform_11(%arg0: i32, %arg1: i32) -> (i32, i32, i32) {
    %c0_i32 = arith.constant 0 : i32
    %c0_i32_0 = arith.constant 0 : i32
    %c0_i32_1 = arith.constant 0 : i32
    return %arg1, %c0_i32, %c0_i32_0 : i32, i32, i32
  }
  func.func @transform_12(%arg0: i32, %arg1: i32) -> (i32, i32, i32) {
    %c0_i32 = arith.constant 0 : i32
    %c0_i32_0 = arith.constant 0 : i32
    %c0_i32_1 = arith.constant 0 : i32
    return %arg1, %c0_i32, %c0_i32_0 : i32, i32, i32
  }
  func.func @transform_13(%arg0: i32, %arg1: i32) -> (i32, i32, i32) {
    %c0_i32 = arith.constant 0 : i32
    %c0_i32_0 = arith.constant 0 : i32
    %c0_i32_1 = arith.constant 0 : i32
    return %arg1, %c0_i32, %c0_i32_0 : i32, i32, i32
  }
  func.func @transform_14(%arg0: i32, %arg1: i32) -> (i32, i32, i32) {
    %c0_i32 = arith.constant 0 : i32
    %c0_i32_0 = arith.constant 0 : i32
    %c0_i32_1 = arith.constant 0 : i32
    return %arg1, %c0_i32, %c0_i32_0 : i32, i32, i32
  }
  func.func @transform_15(%arg0: i32, %arg1: i32) -> (i32, i32, i32) {
    %c0_i32 = arith.constant 0 : i32
    %c0_i32_0 = arith.constant 0 : i32
    %c0_i32_1 = arith.constant 0 : i32
    return %arg1, %c0_i32, %c0_i32_0 : i32, i32, i32
  }
  func.func @transform_16(%arg0: i32, %arg1: i32) -> (i32, i32) {
    %c0_i32 = arith.constant 0 : i32
    %c0_i32_0 = arith.constant 0 : i32
    %c0_i32_1 = arith.constant 0 : i32
    return %c0_i32, %c0_i32_0 : i32, i32
  }
  func.func @transform_17(%arg0: i32, %arg1: i32) -> (i32, i32) {
    %c0_i32 = arith.constant 0 : i32
    %c0_i32_0 = arith.constant 0 : i32
    %c0_i32_1 = arith.constant 0 : i32
    return %c0_i32, %c0_i32_0 : i32, i32
  }
  func.func @transform_18(%arg0: i32, %arg1: i32) -> (i32, i32, i32) {
    %c0_i32 = arith.constant 0 : i32
    %c0_i32_0 = arith.constant 0 : i32
    %c0_i32_1 = arith.constant 0 : i32
    return %arg0, %c0_i32, %c0_i32_0 : i32, i32, i32
  }
}

</mosaic_0001>

<llo_original>
// kernel: tpu_custom_call.1
$region0: #{tpu_custom_call.1}
  #allocation0 [shape = 'u32[]', space=smem, size = 0x4, offset = 0x4, fixed_abs, tag = 'smem constant byte address 0x4 - core index']
  #allocation1 [shape = 'u32[144,128]{1,0:T(1,128)}', space=vmem, size = 0x12000, scoped, tag = 'internal scratch']
  #allocation2 [shape = 'f32[16,32]{1,0:T(8,128)}', space=vmem, size = 0x2000, scoped, tag = 'scratch operand']
  %s0 = inlined_call_operand.hbm [shape: f32[2,8,32], index: 0, kind: input, shape index: {}]
  %s1 = inlined_call_operand.hbm [shape: f32[2,1,8], index: 1, kind: input, shape index: {}]
  %s2 = inlined_call_operand.hbm [shape: f32[1,32], index: 2, kind: input, shape index: {}]
  %s3 = inlined_call_operand.hbm [shape: f32[1,32], index: 3, kind: input, shape index: {}]
  %s4 = inlined_call_operand.vmem [shape: bf16[2,32,96], index: 4, kind: input, shape index: {}]
  %s5 = inlined_call_operand.hbm [shape: f32[2,1,96], index: 5, kind: input, shape index: {}]
  %s6 = inlined_call_operand.vmem [shape: bf16[2,32,32], index: 6, kind: input, shape index: {}]
  %s7 = inlined_call_operand.hbm [shape: f32[2,1,32], index: 7, kind: input, shape index: {}]
  %s8 = inlined_call_operand.hbm [shape: f32[2,1,32], index: 8, kind: input, shape index: {}]
  %s9 = inlined_call_operand.hbm [shape: f32[2,1,32], index: 9, kind: input, shape index: {}]
  %s10 = inlined_call_operand.vmem [shape: bf16[2,32,64], index: 10, kind: input, shape index: {}]
  %s11 = inlined_call_operand.vmem [shape: f32[2,1,64], index: 11, kind: input, shape index: {}]
  %s12 = inlined_call_operand.vmem [shape: bf16[2,64,32], index: 12, kind: input, shape index: {}]
  %s13 = inlined_call_operand.vmem [shape: f32[2,1,32], index: 13, kind: input, shape index: {}]
  %s14 = inlined_call_operand.vmem [shape: f32[2,1,32], index: 14, kind: input, shape index: {}]
  %s15 = inlined_call_operand.vmem [shape: f32[2,1,32], index: 15, kind: input, shape index: {}]
  %s16 = inlined_call_operand.vmem [shape: bf16[32,128], index: 16, kind: input, shape index: {}]
  %s17 = inlined_call_operand.vmem [shape: f32[1,128], index: 17, kind: input, shape index: {}]
  %s18 = inlined_call_operand.hbm [shape: f32[2,8,128], index: 18, kind: output, shape index: {}]
  %s19 = sld [smem:[#allocation0]]
  $region145: #{tpu_custom_call.1} parent=0
    _
  %s21 = ssub.s32 1, %s19
  %s22 = scalar_select 0, %s21, %s19
  $region1: #{tpu_custom_call.1} parent=0
    #allocation3 [shape = 'u8[8192]{0}', space=vmem, size = 0x2000, scoped, tag = 'input window, operand 0, single buffered']
    #allocation4 [shape = 's32[2]{0}', space=sflag, size = 0x8, scoped, tag = 'scoped memory for tpu_custom_call.1']
    #allocation5 [shape = 's32[2]{0}', space=sflag, size = 0x8, scoped, tag = 'scoped memory for tpu_custom_call.1']
    #allocation6 [shape = 'u8[1024]{0}', space=vmem, size = 0x400, scoped, tag = 'input window, operand 1, single buffered']
    #allocation7 [shape = 's32[1]{0}', space=sflag, size = 0x4, scoped, tag = 'scoped memory for tpu_custom_call.1']
    #allocation8 [shape = 'u8[512]{0}', space=vmem, size = 0x400, scoped, tag = 'input window, operand 2, single buffered']
    #allocation9 [shape = 'u8[512]{0}', space=vmem, size = 0x400, scoped, tag = 'input window, operand 3, single buffered']
    #allocation10 [shape = 's32[1]{0}', space=sflag, size = 0x4, scoped, tag = 'scoped memory for tpu_custom_call.1']
    #allocation11 [shape = 'u8[1024]{0}', space=vmem, size = 0x400, scoped, tag = 'input window, operand 5']
    #allocation12 [shape = 'u8[1024]{0}', space=vmem, size = 0x400, scoped, tag = 'input window, operand 7']
    #allocation13 [shape = 'u8[1024]{0}', space=vmem, size = 0x400, scoped, tag = 'input window, operand 8']
    #allocation14 [shape = 'u8[1024]{0}', space=vmem, size = 0x400, scoped, tag = 'input window, operand 9']
    #allocation15 [shape = 'u8[8192]{0}', space=vmem, size = 0x2000, scoped, tag = 'output window, operand 0, single buffered']
    %23 = vsyncpa [#allocation4], 0
    %24 = vsyncpa [#allocation7], 0
    %25 = vsyncpa [#allocation10], 0
    %26 = vsyncpa [#allocation5], 0
    loop: start=0, step=1, limit=4
    $region2: #{tpu_custom_call.1} parent=1 // loop_pre_header
      _
    $region3: #{tpu_custom_call.1} parent=1 // loop_header
      %s28 = sphi 0, %s32
      %p29 = scmp.ge.s32.totalorder %s28, 4
      %s35 = sphi 0, %s47
      %s36 = sphi 0, %s43
      %s37 = sphi 0, %s35
      %s38 = sphi 0, %s36
      %s39 = sphi 0, %s37
      %s40 = sphi 0, %s38
      %s50 = sphi 0, %s52
      %s53 = sphi 0, %s50
      %s54 = sphi 0, %s53
      %s70 = sphi 0, %s54
      %s76 = sphi 0, %s78
      %s79 = sphi 0, %s76
      %s80 = sphi 0, %s79
      %s96 = sphi 0, %s80
      %s100 = sphi 0, %s100
      %s102 = sphi 0, %s100
      %s103 = sphi 0, %s102
      %s117 = sphi 0, %s103
      %s121 = sphi 0, %s121
      %s123 = sphi 0, %s121
      %s124 = sphi 0, %s123
      %s138 = sphi 0, %s124
      %s144 = sphi 0, %s146
      %s147 = sphi 0, %s144
      %s148 = sphi 0, %s147
      %s164 = sphi 0, %s148
      %s170 = sphi 0, %s172
      %s173 = sphi 0, %s170
      %s174 = sphi 0, %s173
      %s190 = sphi 0, %s174
      %s196 = sphi 0, %s198
      %s199 = sphi 0, %s196
      %s200 = sphi 0, %s199
      %s216 = sphi 0, %s200
      %s222 = sphi 0, %s224
      %s225 = sphi 0, %s222
      %s226 = sphi 0, %s225
      %s242 = sphi 0, %s226
      %s248 = sphi 0, %s250
      %s251 = sphi 0, %s248
      %s252 = sphi 0, %s251
      %s268 = sphi 0, %s252
      %s274 = sphi 0, %s276
      %s277 = sphi 0, %s274
      %s278 = sphi 0, %s277
      %s294 = sphi 0, %s278
      %s300 = sphi 0, %s302
      %s303 = sphi 0, %s300
      %s304 = sphi 0, %s303
      %s320 = sphi 0, %s304
      %s326 = sphi 0, %s328
      %s329 = sphi 0, %s326
      %s330 = sphi 0, %s329
      %s346 = sphi 0, %s330
      %s352 = sphi 0, %s354
      %s355 = sphi 0, %s352
      %s356 = sphi 0, %s355
      %s372 = sphi 0, %s356
      %s378 = sphi 0, %s380
      %s381 = sphi 0, %s378
      %s382 = sphi 0, %s381
      %s398 = sphi 0, %s382
      %s404 = sphi 0, %s406
      %s407 = sphi 0, %s404
      %s408 = sphi 0, %s407
      %s424 = sphi 0, %s408
      %s430 = sphi 0, %s432
      %s433 = sphi 0, %s430
      %s434 = sphi 0, %s433
      %s450 = sphi 0, %s434
      %s454 = sphi 0, %s454
      %s456 = sphi 0, %s454
      %s457 = sphi 0, %s456
      %s471 = sphi 0, %s457
      %s475 = sphi 0, %s475
      %s477 = sphi 0, %s475
      %s478 = sphi 0, %s477
      %s492 = sphi 0, %s478
      %s498 = sphi 0, %s500
      %s501 = sphi 0, %s498
      %s502 = sphi 0, %s501
      %s518 = sphi 0, %s502
    $region4: #{tpu_custom_call.1} parent=1 // loop_header_branch
      %31 = sbr.rel (%p29) target = $region8
    $region5: #{tpu_custom_call.1} parent=1 // loop_body
      %s33 = ssub.s32 %s28, 1
      %s34 = ssub.s32 %s28, 2
      %s41 = sadd.s32 1, %s36
      %p42 = scmp.ge.s32.totalorder %s41, 2
      %s43 = scalar_select %p42, 0, %s41
      %s44 = sadd.s32 1, %s35
      %s45 = scalar_select %p42, %s44, %s35
      %p46 = scmp.ge.s32.totalorder %s45, 1
      %s47 = scalar_select %p46, 0, %s45
      %s48 = ssub.s32 %s35, %s47
      %p49 = scmp.eq.s32.totalorder %s48, 0
      %s51 = sadd.s32 %s50, 1
      %s52 = scalar_select %p49, %s50, %s51
      %p55 = pneg %p49
      %p56 = scmp.eq.s32.totalorder %s28, 1
      %p57 = por %p55, %p56
      %p58 = scmp.ne.s32.totalorder %s50, %s53
      %p59 = scmp.eq.s32.totalorder %s28, 0
      %p60 = por %p58, %p59
      %p61 = scmp.ne.s32.totalorder %s50, %s53
      %p62 = scmp.eq.s32.totalorder %s33, 1
      %p63 = por %p61, %p62
      %p64 = scmp.ne.s32.totalorder %s53, %s54
      %p65 = scmp.eq.s32.totalorder %s33, 0
      %p66 = por %p64, %p65
      %p67 = scmp.ne.s32.totalorder %s53, %s54
      %p68 = scmp.eq.s32.totalorder %s34, 1
      %p69 = por %p67, %p68
      %p71 = scmp.ne.s32.totalorder %s54, %s70
      %p72 = scmp.eq.s32.totalorder %s34, 0
      %p73 = por %p71, %p72
      %s74 = ssub.s32 %s35, %s47
      %p75 = scmp.eq.s32.totalorder %s74, 0
      %s77 = sadd.s32 %s76, 1
      %s78 = scalar_select %p75, %s76, %s77
      %p81 = pneg %p75
      %p82 = scmp.eq.s32.totalorder %s28, 1
      %p83 = por %p81, %p82
      %p84 = scmp.ne.s32.totalorder %s76, %s79
      %p85 = scmp.eq.s32.totalorder %s28, 0
      %p86 = por %p84, %p85
      %p87 = scmp.ne.s32.totalorder %s76, %s79
      %p88 = scmp.eq.s32.totalorder %s33, 1
      %p89 = por %p87, %p88
      %p90 = scmp.ne.s32.totalorder %s79, %s80
      %p91 = scmp.eq.s32.totalorder %s33, 0
      %p92 = por %p90, %p91
      %p93 = scmp.ne.s32.totalorder %s79, %s80
      %p94 = scmp.eq.s32.totalorder %s34, 1
      %p95 = por %p93, %p94
      %p97 = scmp.ne.s32.totalorder %s80, %s96
      %p98 = scmp.eq.s32.totalorder %s34, 0
      %p99 = por %p97, %p98
      %s101 = sadd.s32 %s100, 1
      %p104 = scmp.eq.s32.totalorder %s28, 1
      %p105 = scmp.ne.s32.totalorder %s100, %s102
      %p106 = scmp.eq.s32.totalorder %s28, 0
      %p107 = por %p105, %p106
      %p108 = scmp.ne.s32.totalorder %s100, %s102
      %p109 = scmp.eq.s32.totalorder %s33, 1
      %p110 = por %p108, %p109
      %p111 = scmp.ne.s32.totalorder %s102, %s103
      %p112 = scmp.eq.s32.totalorder %s33, 0
      %p113 = por %p111, %p112
      %p114 = scmp.ne.s32.totalorder %s102, %s103
      %p115 = scmp.eq.s32.totalorder %s34, 1
      %p116 = por %p114, %p115
      %p118 = scmp.ne.s32.totalorder %s103, %s117
      %p119 = scmp.eq.s32.totalorder %s34, 0
      %p120 = por %p118, %p119
      %s122 = sadd.s32 %s121, 1
      %p125 = scmp.eq.s32.totalorder %s28, 1
      %p126 = scmp.ne.s32.totalorder %s121, %s123
      %p127 = scmp.eq.s32.totalorder %s28, 0
      %p128 = por %p126, %p127
      %p129 = scmp.ne.s32.totalorder %s121, %s123
      %p130 = scmp.eq.s32.totalorder %s33, 1
      %p131 = por %p129, %p130
      %p132 = scmp.ne.s32.totalorder %s123, %s124
      %p133 = scmp.eq.s32.totalorder %s33, 0
      %p134 = por %p132, %p133
      %p135 = scmp.ne.s32.totalorder %s123, %s124
      %p136 = scmp.eq.s32.totalorder %s34, 1
      %p137 = por %p135, %p136
      %p139 = scmp.ne.s32.totalorder %s124, %s138
      %p140 = scmp.eq.s32.totalorder %s34, 0
      %p141 = por %p139, %p140
      %s142 = ssub.s32 %s36, %s43
      %p143 = scmp.eq.s32.totalorder %s142, 0
      %s145 = sadd.s32 %s144, 1
      %s146 = scalar_select %p143, %s144, %s145
      %p149 = pneg %p143
      %p150 = scmp.eq.s32.totalorder %s28, 1
      %p151 = por %p149, %p150
      %p152 = scmp.ne.s32.totalorder %s144, %s147
      %p153 = scmp.eq.s32.totalorder %s28, 0
      %p154 = por %p152, %p153
      %p155 = scmp.ne.s32.totalorder %s144, %s147
      %p156 = scmp.eq.s32.totalorder %s33, 1
      %p157 = por %p155, %p156
      %p158 = scmp.ne.s32.totalorder %s147, %s148
      %p159 = scmp.eq.s32.totalorder %s33, 0
      %p160 = por %p158, %p159
      %p161 = scmp.ne.s32.totalorder %s147, %s148
      %p162 = scmp.eq.s32.totalorder %s34, 1
      %p163 = por %p161, %p162
      %p165 = scmp.ne.s32.totalorder %s148, %s164
      %p166 = scmp.eq.s32.totalorder %s34, 0
      %p167 = por %p165, %p166
      %s168 = ssub.s32 %s36, %s43
      %p169 = scmp.eq.s32.totalorder %s168, 0
      %s171 = sadd.s32 %s170, 1
      %s172 = scalar_select %p169, %s170, %s171
      %p175 = pneg %p169
      %p176 = scmp.eq.s32.totalorder %s28, 1
      %p177 = por %p175, %p176
      %p178 = scmp.ne.s32.totalorder %s170, %s173
      %p179 = scmp.eq.s32.totalorder %s28, 0
      %p180 = por %p178, %p179
      %p181 = scmp.ne.s32.totalorder %s170, %s173
      %p182 = scmp.eq.s32.totalorder %s33, 1
      %p183 = por %p181, %p182
      %p184 = scmp.ne.s32.totalorder %s173, %s174
      %p185 = scmp.eq.s32.totalorder %s33, 0
      %p186 = por %p184, %p185
      %p187 = scmp.ne.s32.totalorder %s173, %s174
      %p188 = scmp.eq.s32.totalorder %s34, 1
      %p189 = por %p187, %p188
      %p191 = scmp.ne.s32.totalorder %s174, %s190
      %p192 = scmp.eq.s32.totalorder %s34, 0
      %p193 = por %p191, %p192
      %s194 = ssub.s32 %s36, %s43
      %p195 = scmp.eq.s32.totalorder %s194, 0
      %s197 = sadd.s32 %s196, 1
      %s198 = scalar_select %p195, %s196, %s197
      %p201 = pneg %p195
      %p202 = scmp.eq.s32.totalorder %s28, 1
      %p203 = por %p201, %p202
      %p204 = scmp.ne.s32.totalorder %s196, %s199
      %p205 = scmp.eq.s32.totalorder %s28, 0
      %p206 = por %p204, %p205
      %p207 = scmp.ne.s32.totalorder %s196, %s199
      %p208 = scmp.eq.s32.totalorder %s33, 1
      %p209 = por %p207, %p208
      %p210 = scmp.ne.s32.totalorder %s199, %s200
      %p211 = scmp.eq.s32.totalorder %s33, 0
      %p212 = por %p210, %p211
      %p213 = scmp.ne.s32.totalorder %s199, %s200
      %p214 = scmp.eq.s32.totalorder %s34, 1
      %p215 = por %p213, %p214
      %p217 = scmp.ne.s32.totalorder %s200, %s216
      %p218 = scmp.eq.s32.totalorder %s34, 0
      %p219 = por %p217, %p218
      %s220 = ssub.s32 %s36, %s43
      %p221 = scmp.eq.s32.totalorder %s220, 0
      %s223 = sadd.s32 %s222, 1
      %s224 = scalar_select %p221, %s222, %s223
      %p227 = pneg %p221
      %p228 = scmp.eq.s32.totalorder %s28, 1
      %p229 = por %p227, %p228
      %p230 = scmp.ne.s32.totalorder %s222, %s225
      %p231 = scmp.eq.s32.totalorder %s28, 0
      %p232 = por %p230, %p231
      %p233 = scmp.ne.s32.totalorder %s222, %s225
      %p234 = scmp.eq.s32.totalorder %s33, 1
      %p235 = por %p233, %p234
      %p236 = scmp.ne.s32.totalorder %s225, %s226
      %p237 = scmp.eq.s32.totalorder %s33, 0
      %p238 = por %p236, %p237
      %p239 = scmp.ne.s32.totalorder %s225, %s226
      %p240 = scmp.eq.s32.totalorder %s34, 1
      %p241 = por %p239, %p240
      %p243 = scmp.ne.s32.totalorder %s226, %s242
      %p244 = scmp.eq.s32.totalorder %s34, 0
      %p245 = por %p243, %p244
      %s246 = ssub.s32 %s36, %s43
      %p247 = scmp.eq.s32.totalorder %s246, 0
      %s249 = sadd.s32 %s248, 1
      %s250 = scalar_select %p247, %s248, %s249
      %p253 = pneg %p247
      %p254 = scmp.eq.s32.totalorder %s28, 1
      %p255 = por %p253, %p254
      %p256 = scmp.ne.s32.totalorder %s248, %s251
      %p257 = scmp.eq.s32.totalorder %s28, 0
      %p258 = por %p256, %p257
      %p259 = scmp.ne.s32.totalorder %s248, %s251
      %p260 = scmp.eq.s32.totalorder %s33, 1
      %p261 = por %p259, %p260
      %p262 = scmp.ne.s32.totalorder %s251, %s252
      %p263 = scmp.eq.s32.totalorder %s33, 0
      %p264 = por %p262, %p263
      %p265 = scmp.ne.s32.totalorder %s251, %s252
      %p266 = scmp.eq.s32.totalorder %s34, 1
      %p267 = por %p265, %p266
      %p269 = scmp.ne.s32.totalorder %s252, %s268
      %p270 = scmp.eq.s32.totalorder %s34, 0
      %p271 = por %p269, %p270
      %s272 = ssub.s32 %s36, %s43
      %p273 = scmp.eq.s32.totalorder %s272, 0
      %s275 = sadd.s32 %s274, 1
      %s276 = scalar_select %p273, %s274, %s275
      %p279 = pneg %p273
      %p280 = scmp.eq.s32.totalorder %s28, 1
      %p281 = por %p279, %p280
      %p282 = scmp.ne.s32.totalorder %s274, %s277
      %p283 = scmp.eq.s32.totalorder %s28, 0
      %p284 = por %p282, %p283
      %p285 = scmp.ne.s32.totalorder %s274, %s277
      %p286 = scmp.eq.s32.totalorder %s33, 1
      %p287 = por %p285, %p286
      %p288 = scmp.ne.s32.totalorder %s277, %s278
      %p289 = scmp.eq.s32.totalorder %s33, 0
      %p290 = por %p288, %p289
      %p291 = scmp.ne.s32.totalorder %s277, %s278
      %p292 = scmp.eq.s32.totalorder %s34, 1
      %p293 = por %p291, %p292
      %p295 = scmp.ne.s32.totalorder %s278, %s294
      %p296 = scmp.eq.s32.totalorder %s34, 0
      %p297 = por %p295, %p296
      %s298 = ssub.s32 %s36, %s43
      %p299 = scmp.eq.s32.totalorder %s298, 0
      %s301 = sadd.s32 %s300, 1
      %s302 = scalar_select %p299, %s300, %s301
      %p305 = pneg %p299
      %p306 = scmp.eq.s32.totalorder %s28, 1
      %p307 = por %p305, %p306
      %p308 = scmp.ne.s32.totalorder %s300, %s303
      %p309 = scmp.eq.s32.totalorder %s28, 0
      %p310 = por %p308, %p309
      %p311 = scmp.ne.s32.totalorder %s300, %s303
      %p312 = scmp.eq.s32.totalorder %s33, 1
      %p313 = por %p311, %p312
      %p314 = scmp.ne.s32.totalorder %s303, %s304
      %p315 = scmp.eq.s32.totalorder %s33, 0
      %p316 = por %p314, %p315
      %p317 = scmp.ne.s32.totalorder %s303, %s304
      %p318 = scmp.eq.s32.totalorder %s34, 1
      %p319 = por %p317, %p318
      %p321 = scmp.ne.s32.totalorder %s304, %s320
      %p322 = scmp.eq.s32.totalorder %s34, 0
      %p323 = por %p321, %p322
      %s324 = ssub.s32 %s36, %s43
      %p325 = scmp.eq.s32.totalorder %s324, 0
      %s327 = sadd.s32 %s326, 1
      %s328 = scalar_select %p325, %s326, %s327
      %p331 = pneg %p325
      %p332 = scmp.eq.s32.totalorder %s28, 1
      %p333 = por %p331, %p332
      %p334 = scmp.ne.s32.totalorder %s326, %s329
      %p335 = scmp.eq.s32.totalorder %s28, 0
      %p336 = por %p334, %p335
      %p337 = scmp.ne.s32.totalorder %s326, %s329
      %p338 = scmp.eq.s32.totalorder %s33, 1
      %p339 = por %p337, %p338
      %p340 = scmp.ne.s32.totalorder %s329, %s330
      %p341 = scmp.eq.s32.totalorder %s33, 0
      %p342 = por %p340, %p341
      %p343 = scmp.ne.s32.totalorder %s329, %s330
      %p344 = scmp.eq.s32.totalorder %s34, 1
      %p345 = por %p343, %p344
      %p347 = scmp.ne.s32.totalorder %s330, %s346
      %p348 = scmp.eq.s32.totalorder %s34, 0
      %p349 = por %p347, %p348
      %s350 = ssub.s32 %s36, %s43
      %p351 = scmp.eq.s32.totalorder %s350, 0
      %s353 = sadd.s32 %s352, 1
      %s354 = scalar_select %p351, %s352, %s353
      %p357 = pneg %p351
      %p358 = scmp.eq.s32.totalorder %s28, 1
      %p359 = por %p357, %p358
      %p360 = scmp.ne.s32.totalorder %s352, %s355
      %p361 = scmp.eq.s32.totalorder %s28, 0
      %p362 = por %p360, %p361
      %p363 = scmp.ne.s32.totalorder %s352, %s355
      %p364 = scmp.eq.s32.totalorder %s33, 1
      %p365 = por %p363, %p364
      %p366 = scmp.ne.s32.totalorder %s355, %s356
      %p367 = scmp.eq.s32.totalorder %s33, 0
      %p368 = por %p366, %p367
      %p369 = scmp.ne.s32.totalorder %s355, %s356
      %p370 = scmp.eq.s32.totalorder %s34, 1
      %p371 = por %p369, %p370
      %p373 = scmp.ne.s32.totalorder %s356, %s372
      %p374 = scmp.eq.s32.totalorder %s34, 0
      %p375 = por %p373, %p374
      %s376 = ssub.s32 %s36, %s43
      %p377 = scmp.eq.s32.totalorder %s376, 0
      %s379 = sadd.s32 %s378, 1
      %s380 = scalar_select %p377, %s378, %s379
      %p383 = pneg %p377
      %p384 = scmp.eq.s32.totalorder %s28, 1
      %p385 = por %p383, %p384
      %p386 = scmp.ne.s32.totalorder %s378, %s381
      %p387 = scmp.eq.s32.totalorder %s28, 0
      %p388 = por %p386, %p387
      %p389 = scmp.ne.s32.totalorder %s378, %s381
      %p390 = scmp.eq.s32.totalorder %s33, 1
      %p391 = por %p389, %p390
      %p392 = scmp.ne.s32.totalorder %s381, %s382
      %p393 = scmp.eq.s32.totalorder %s33, 0
      %p394 = por %p392, %p393
      %p395 = scmp.ne.s32.totalorder %s381, %s382
      %p396 = scmp.eq.s32.totalorder %s34, 1
      %p397 = por %p395, %p396
      %p399 = scmp.ne.s32.totalorder %s382, %s398
      %p400 = scmp.eq.s32.totalorder %s34, 0
      %p401 = por %p399, %p400
      %s402 = ssub.s32 %s36, %s43
      %p403 = scmp.eq.s32.totalorder %s402, 0
      %s405 = sadd.s32 %s404, 1
      %s406 = scalar_select %p403, %s404, %s405
      %p409 = pneg %p403
      %p410 = scmp.eq.s32.totalorder %s28, 1
      %p411 = por %p409, %p410
      %p412 = scmp.ne.s32.totalorder %s404, %s407
      %p413 = scmp.eq.s32.totalorder %s28, 0
      %p414 = por %p412, %p413
      %p415 = scmp.ne.s32.totalorder %s404, %s407
      %p416 = scmp.eq.s32.totalorder %s33, 1
      %p417 = por %p415, %p416
      %p418 = scmp.ne.s32.totalorder %s407, %s408
      %p419 = scmp.eq.s32.totalorder %s33, 0
      %p420 = por %p418, %p419
      %p421 = scmp.ne.s32.totalorder %s407, %s408
      %p422 = scmp.eq.s32.totalorder %s34, 1
      %p423 = por %p421, %p422
      %p425 = scmp.ne.s32.totalorder %s408, %s424
      %p426 = scmp.eq.s32.totalorder %s34, 0
      %p427 = por %p425, %p426
      %s428 = ssub.s32 %s36, %s43
      %p429 = scmp.eq.s32.totalorder %s428, 0
      %s431 = sadd.s32 %s430, 1
      %s432 = scalar_select %p429, %s430, %s431
      %p435 = pneg %p429
      %p436 = scmp.eq.s32.totalorder %s28, 1
      %p437 = por %p435, %p436
      %p438 = scmp.ne.s32.totalorder %s430, %s433
      %p439 = scmp.eq.s32.totalorder %s28, 0
      %p440 = por %p438, %p439
      %p441 = scmp.ne.s32.totalorder %s430, %s433
      %p442 = scmp.eq.s32.totalorder %s33, 1
      %p443 = por %p441, %p442
      %p444 = scmp.ne.s32.totalorder %s433, %s434
      %p445 = scmp.eq.s32.totalorder %s33, 0
      %p446 = por %p444, %p445
      %p447 = scmp.ne.s32.totalorder %s433, %s434
      %p448 = scmp.eq.s32.totalorder %s34, 1
      %p449 = por %p447, %p448
      %p451 = scmp.ne.s32.totalorder %s434, %s450
      %p452 = scmp.eq.s32.totalorder %s34, 0
      %p453 = por %p451, %p452
      %s455 = sadd.s32 %s454, 1
      %p458 = scmp.eq.s32.totalorder %s28, 1
      %p459 = scmp.ne.s32.totalorder %s454, %s456
      %p460 = scmp.eq.s32.totalorder %s28, 0
      %p461 = por %p459, %p460
      %p462 = scmp.ne.s32.totalorder %s454, %s456
      %p463 = scmp.eq.s32.totalorder %s33, 1
      %p464 = por %p462, %p463
      %p465 = scmp.ne.s32.totalorder %s456, %s457
      %p466 = scmp.eq.s32.totalorder %s33, 0
      %p467 = por %p465, %p466
      %p468 = scmp.ne.s32.totalorder %s456, %s457
      %p469 = scmp.eq.s32.totalorder %s34, 1
      %p470 = por %p468, %p469
      %p472 = scmp.ne.s32.totalorder %s457, %s471
      %p473 = scmp.eq.s32.totalorder %s34, 0
      %p474 = por %p472, %p473
      %s476 = sadd.s32 %s475, 1
      %p479 = scmp.eq.s32.totalorder %s28, 1
      %p480 = scmp.ne.s32.totalorder %s475, %s477
      %p481 = scmp.eq.s32.totalorder %s28, 0
      %p482 = por %p480, %p481
      %p483 = scmp.ne.s32.totalorder %s475, %s477
      %p484 = scmp.eq.s32.totalorder %s33, 1
      %p485 = por %p483, %p484
      %p486 = scmp.ne.s32.totalorder %s477, %s478
      %p487 = scmp.eq.s32.totalorder %s33, 0
      %p488 = por %p486, %p487
      %p489 = scmp.ne.s32.totalorder %s477, %s478
      %p490 = scmp.eq.s32.totalorder %s34, 1
      %p491 = por %p489, %p490
      %p493 = scmp.ne.s32.totalorder %s478, %s492
      %p494 = scmp.eq.s32.totalorder %s34, 0
      %p495 = por %p493, %p494
      %s496 = ssub.s32 %s35, %s47
      %p497 = scmp.eq.s32.totalorder %s496, 0
      %s499 = sadd.s32 %s498, 1
      %s500 = scalar_select %p497, %s498, %s499
      %p503 = pneg %p497
      %p504 = scmp.eq.s32.totalorder %s28, 1
      %p505 = por %p503, %p504
      %p506 = scmp.ne.s32.totalorder %s498, %s501
      %p507 = scmp.eq.s32.totalorder %s28, 0
      %p508 = por %p506, %p507
      %p509 = scmp.ne.s32.totalorder %s498, %s501
      %p510 = scmp.eq.s32.totalorder %s33, 1
      %p511 = por %p509, %p510
      %p512 = scmp.ne.s32.totalorder %s501, %s502
      %p513 = scmp.eq.s32.totalorder %s33, 0
      %p514 = por %p512, %p513
      %p515 = scmp.ne.s32.totalorder %s501, %s502
      %p516 = scmp.eq.s32.totalorder %s34, 1
      %p517 = por %p515, %p516
      %p519 = scmp.ne.s32.totalorder %s502, %s518
      %p520 = scmp.eq.s32.totalorder %s34, 0
      %p521 = por %p519, %p520
      %p522 = scmp.le.s32.totalorder 1, %s28
      %p523 = scmp.lt.s32.totalorder %s28, 3
      %p524 = pnand %p522, %p523
      %p525 = pneg %p524
      // Predicated region
      $region9: #{tpu_custom_call.1} parent=5 // pred_check
        _
      $region10: #{tpu_custom_call.1} parent=5 // pred_check_branch
        %527 = sbr.rel (%p524) target = $region12
      $region11: #{tpu_custom_call.1} parent=5 // pred_region
        %s528 = ssub.s32 %s28, 1
        // Predicated region
        $region13: #{tpu_custom_call.1} parent=11 // pred_check
          %p529 = pneg %p66
        $region14: #{tpu_custom_call.1} parent=11 // pred_check_branch
          %531 = sbr.rel (%p529) target = $region16
        $region15: #{tpu_custom_call.1} parent=11 // pred_region
          %s532 = smul.u32 2, %s37
          %s534 = ssub.s32 256, 256
          %535 = vsyncadd [#allocation4], %s534
          %s536 = smul.addr %s532, 128
          %s537 = scalar_lea.hbm %s0, %s536
          %s538 = sshll.u32 [#allocation3], 4
          %s539 = int_to_ptr.vmem [resolvable:$true] %s538
          %544 = dma.hbm_to_vmem [thread:$0]  %s537, 256, %s539, [#allocation4], 128, 128, 8
        $region16: #{tpu_custom_call.1} parent=11 // pred_fallthru
          _
        // Predicated region
        $region17: #{tpu_custom_call.1} parent=11 // pred_check
          %p545 = pneg %p92
        $region18: #{tpu_custom_call.1} parent=11 // pred_check_branch
          %547 = sbr.rel (%p545) target = $region20
        $region19: #{tpu_custom_call.1} parent=11 // pred_region
          %s548 = smul.u32 2, %s37
          %s550 = ssub.s32 32, 32
          %551 = vsyncadd [#allocation7], %s550
          %s552 = smul.addr %s548, 16
          %s553 = scalar_lea.hbm %s1, %s552
          %s554 = sshll.u32 [#allocation6], 4
          %s555 = int_to_ptr.vmem [resolvable:$true] %s554
          %560 = dma.hbm_to_vmem [thread:$0]  %s553, 32, %s555, [#allocation7], 16, 16, 1
        $region20: #{tpu_custom_call.1} parent=11 // pred_fallthru
          _
        // Predicated region
        $region21: #{tpu_custom_call.1} parent=11 // pred_check
          %p561 = pneg %p113
        $region22: #{tpu_custom_call.1} parent=11 // pred_check_branch
          %563 = sbr.rel (%p561) target = $region24
        $region23: #{tpu_custom_call.1} parent=11 // pred_region
          %s565 = ssub.s32 16, 16
          %566 = vsyncadd [#allocation7], %s565
          %s568 = sshll.u32 [#allocation8], 4
          %s569 = int_to_ptr.vmem [resolvable:$true] %s568
          %571 = dma.hbm_to_vmem [thread:$0]  %s2, 16, %s569, [#allocation7]
        $region24: #{tpu_custom_call.1} parent=11 // pred_fallthru
          _
        // Predicated region
        $region25: #{tpu_custom_call.1} parent=11 // pred_check
          %p572 = pneg %p134
        $region26: #{tpu_custom_call.1} parent=11 // pred_check_branch
          %574 = sbr.rel (%p572) target = $region28
        $region27: #{tpu_custom_call.1} parent=11 // pred_region
          %s576 = ssub.s32 16, 16
          %577 = vsyncadd [#allocation10], %s576
          %s579 = sshll.u32 [#allocation9], 4
          %s580 = int_to_ptr.vmem [resolvable:$true] %s579
          %582 = dma.hbm_to_vmem [thread:$0]  %s3, 16, %s580, [#allocation10]
        $region28: #{tpu_custom_call.1} parent=11 // pred_fallthru
          _
        // Predicated region
        $region29: #{tpu_custom_call.1} parent=11 // pred_check
          %p583 = pneg %p467
        $region30: #{tpu_custom_call.1} parent=11 // pred_check_branch
          %585 = sbr.rel (%p583) target = $region32
        $region31: #{tpu_custom_call.1} parent=11 // pred_region
          _
        $region32: #{tpu_custom_call.1} parent=11 // pred_fallthru
          _
        // Predicated region
        $region33: #{tpu_custom_call.1} parent=11 // pred_check
          %p586 = pneg %p488
        $region34: #{tpu_custom_call.1} parent=11 // pred_check_branch
          %588 = sbr.rel (%p586) target = $region36
        $region35: #{tpu_custom_call.1} parent=11 // pred_region
          _
        $region36: #{tpu_custom_call.1} parent=11 // pred_fallthru
          _
      $region12: #{tpu_custom_call.1} parent=5 // pred_fallthru
        _
      %p589 = scmp.lt.s32.totalorder %s28, 2
      // Predicated region
      $region37: #{tpu_custom_call.1} parent=5 // pred_check
        %p590 = pneg %p589
      $region38: #{tpu_custom_call.1} parent=5 // pred_check_branch
        %592 = sbr.rel (%p590) target = $region40
      $region39: #{tpu_custom_call.1} parent=5 // pred_region
        // Predicated region
        $region41: #{tpu_custom_call.1} parent=39 // pred_check
          %p593 = pneg %p154
        $region42: #{tpu_custom_call.1} parent=39 // pred_check_branch
          %595 = sbr.rel (%p593) target = $region44
        $region43: #{tpu_custom_call.1} parent=39 // pred_region
          %p596 = scmp.lt.s32.totalorder %s36, 1
          %s597 = scalar_select %p596, %s36, 1
          %s598 = smul.addr %s597, 4
          %s599 = smul.addr %s598, 4
          %s600 = scalar_lea.vmem %s4, %s599
        $region44: #{tpu_custom_call.1} parent=39 // pred_fallthru
          _
        // Predicated region
        $region45: #{tpu_custom_call.1} parent=39 // pred_check
          %p601 = pneg %p180
        $region46: #{tpu_custom_call.1} parent=39 // pred_check_branch
          %603 = sbr.rel (%p601) target = $region48
        $region47: #{tpu_custom_call.1} parent=39 // pred_region
          %s604 = sand.u32 %s28, 1
          %s605 = scalar_lea.sflag [#allocation4], %s604
          %s606 = sand.u32 %s170, 1
          %s607 = scalar_lea.vmem [#allocation11], %s606
          %s609 = ssub.s32 16, 16
          %610 = vsyncadd %s605, %s609
          %s611 = smul.addr %s36, 16
          %s612 = scalar_lea.hbm %s5, %s611
          %s614 = sshll.u32 %s607, 4
          %s615 = int_to_ptr.vmem [resolvable:$true] %s614
          %617 = dma.hbm_to_vmem [thread:$0]  %s612, 16, %s615, %s605
        $region48: #{tpu_custom_call.1} parent=39 // pred_fallthru
          _
        // Predicated region
        $region49: #{tpu_custom_call.1} parent=39 // pred_check
          %p618 = pneg %p206
        $region50: #{tpu_custom_call.1} parent=39 // pred_check_branch
          %620 = sbr.rel (%p618) target = $region52
        $region51: #{tpu_custom_call.1} parent=39 // pred_region
          %p621 = scmp.lt.s32.totalorder %s36, 1
          %s622 = scalar_select %p621, %s36, 1
          %s623 = smul.addr %s622, 4
          %s624 = smul.addr %s623, 4
          %s625 = scalar_lea.vmem %s6, %s624
        $region52: #{tpu_custom_call.1} parent=39 // pred_fallthru
          _
        // Predicated region
        $region53: #{tpu_custom_call.1} parent=39 // pred_check
          %p626 = pneg %p232
        $region54: #{tpu_custom_call.1} parent=39 // pred_check_branch
          %628 = sbr.rel (%p626) target = $region56
        $region55: #{tpu_custom_call.1} parent=39 // pred_region
          %s629 = sand.u32 %s28, 1
          %s630 = scalar_lea.sflag [#allocation4], %s629
          %s631 = sand.u32 %s222, 1
          %s632 = scalar_lea.vmem [#allocation12], %s631
          %s634 = ssub.s32 16, 16
          %635 = vsyncadd %s630, %s634
          %s636 = smul.addr %s36, 16
          %s637 = scalar_lea.hbm %s7, %s636
          %s639 = sshll.u32 %s632, 4
          %s640 = int_to_ptr.vmem [resolvable:$true] %s639
          %642 = dma.hbm_to_vmem [thread:$0]  %s637, 16, %s640, %s630
        $region56: #{tpu_custom_call.1} parent=39 // pred_fallthru
          _
        // Predicated region
        $region57: #{tpu_custom_call.1} parent=39 // pred_check
          %p643 = pneg %p258
        $region58: #{tpu_custom_call.1} parent=39 // pred_check_branch
          %645 = sbr.rel (%p643) target = $region60
        $region59: #{tpu_custom_call.1} parent=39 // pred_region
          %s646 = sand.u32 %s28, 1
          %s647 = scalar_lea.sflag [#allocation4], %s646
          %s648 = sand.u32 %s248, 1
          %s649 = scalar_lea.vmem [#allocation13], %s648
          %s651 = ssub.s32 16, 16
          %652 = vsyncadd %s647, %s651
          %s653 = smul.addr %s36, 16
          %s654 = scalar_lea.hbm %s8, %s653
          %s656 = sshll.u32 %s649, 4
          %s657 = int_to_ptr.vmem [resolvable:$true] %s656
          %659 = dma.hbm_to_vmem [thread:$0]  %s654, 16, %s657, %s647
        $region60: #{tpu_custom_call.1} parent=39 // pred_fallthru
          _
        // Predicated region
        $region61: #{tpu_custom_call.1} parent=39 // pred_check
          %p660 = pneg %p284
        $region62: #{tpu_custom_call.1} parent=39 // pred_check_branch
          %662 = sbr.rel (%p660) target = $region64
        $region63: #{tpu_custom_call.1} parent=39 // pred_region
          %s663 = sand.u32 %s28, 1
          %s664 = scalar_lea.sflag [#allocation4], %s663
          %s665 = sand.u32 %s274, 1
          %s666 = scalar_lea.vmem [#allocation14], %s665
          %s668 = ssub.s32 16, 16
          %669 = vsyncadd %s664, %s668
          %s670 = smul.addr %s36, 16
          %s671 = scalar_lea.hbm %s9, %s670
          %s673 = sshll.u32 %s666, 4
          %s674 = int_to_ptr.vmem [resolvable:$true] %s673
          %676 = dma.hbm_to_vmem [thread:$0]  %s671, 16, %s674, %s664
        $region64: #{tpu_custom_call.1} parent=39 // pred_fallthru
          _
        // Predicated region
        $region65: #{tpu_custom_call.1} parent=39 // pred_check
          %p677 = pneg %p310
        $region66: #{tpu_custom_call.1} parent=39 // pred_check_branch
          %679 = sbr.rel (%p677) target = $region68
        $region67: #{tpu_custom_call.1} parent=39 // pred_region
          %p680 = scmp.lt.s32.totalorder %s36, 1
          %s681 = scalar_select %p680, %s36, 1
          %s682 = smul.addr %s681, 4
          %s683 = smul.addr %s682, 4
          %s684 = scalar_lea.vmem %s10, %s683
        $region68: #{tpu_custom_call.1} parent=39 // pred_fallthru
          _
        // Predicated region
        $region69: #{tpu_custom_call.1} parent=39 // pred_check
          %p685 = pneg %p336
        $region70: #{tpu_custom_call.1} parent=39 // pred_check_branch
          %687 = sbr.rel (%p685) target = $region72
        $region71: #{tpu_custom_call.1} parent=39 // pred_region
          %p688 = scmp.lt.s32.totalorder %s36, 1
          %s689 = scalar_select %p688, %s36, 1
          %s690 = scalar_lea.vmem %s11, %s689
        $region72: #{tpu_custom_call.1} parent=39 // pred_fallthru
          _
        // Predicated region
        $region73: #{tpu_custom_call.1} parent=39 // pred_check
          %p691 = pneg %p362
        $region74: #{tpu_custom_call.1} parent=39 // pred_check_branch
          %693 = sbr.rel (%p691) target = $region76
        $region75: #{tpu_custom_call.1} parent=39 // pred_region
          %p694 = scmp.lt.s32.totalorder %s36, 1
          %s695 = scalar_select %p694, %s36, 1
          %s696 = smul.addr %s695, 8
          %s697 = smul.addr %s696, 4
          %s698 = scalar_lea.vmem %s12, %s697
        $region76: #{tpu_custom_call.1} parent=39 // pred_fallthru
          _
        // Predicated region
        $region77: #{tpu_custom_call.1} parent=39 // pred_check
          %p699 = pneg %p388
        $region78: #{tpu_custom_call.1} parent=39 // pred_check_branch
          %701 = sbr.rel (%p699) target = $region80
        $region79: #{tpu_custom_call.1} parent=39 // pred_region
          %p702 = scmp.lt.s32.totalorder %s36, 1
          %s703 = scalar_select %p702, %s36, 1
          %s704 = scalar_lea.vmem %s13, %s703
        $region80: #{tpu_custom_call.1} parent=39 // pred_fallthru
          _
        // Predicated region
        $region81: #{tpu_custom_call.1} parent=39 // pred_check
          %p705 = pneg %p414
        $region82: #{tpu_custom_call.1} parent=39 // pred_check_branch
          %707 = sbr.rel (%p705) target = $region84
        $region83: #{tpu_custom_call.1} parent=39 // pred_region
          %p708 = scmp.lt.s32.totalorder %s36, 1
          %s709 = scalar_select %p708, %s36, 1
          %s710 = scalar_lea.vmem %s14, %s709
        $region84: #{tpu_custom_call.1} parent=39 // pred_fallthru
          _
        // Predicated region
        $region85: #{tpu_custom_call.1} parent=39 // pred_check
          %p711 = pneg %p440
        $region86: #{tpu_custom_call.1} parent=39 // pred_check_branch
          %713 = sbr.rel (%p711) target = $region88
        $region87: #{tpu_custom_call.1} parent=39 // pred_region
          %p714 = scmp.lt.s32.totalorder %s36, 1
          %s715 = scalar_select %p714, %s36, 1
          %s716 = scalar_lea.vmem %s15, %s715
        $region88: #{tpu_custom_call.1} parent=39 // pred_fallthru
          _
      $region40: #{tpu_custom_call.1} parent=5 // pred_fallthru
        _
      %p717 = scmp.le.s32.totalorder 1, %s28
      %p718 = scmp.lt.s32.totalorder %s28, 3
      %p719 = pnand %p717, %p718
      %p720 = pneg %p719
      // Predicated region
      $region89: #{tpu_custom_call.1} parent=5 // pred_check
        _
      $region90: #{tpu_custom_call.1} parent=5 // pred_check_branch
        %722 = sbr.rel (%p719) target = $region92
      $region91: #{tpu_custom_call.1} parent=5 // pred_region
        %s723 = ssub.s32 %s28, 1
        // Predicated region
        $region93: #{tpu_custom_call.1} parent=91 // pred_check
          %p724 = pneg %p66
        $region94: #{tpu_custom_call.1} parent=91 // pred_check_branch
          %726 = sbr.rel (%p724) target = $region96
        $region95: #{tpu_custom_call.1} parent=91 // pred_region
          %727 = dma.done [#allocation4], 256
        $region96: #{tpu_custom_call.1} parent=91 // pred_fallthru
          _
        // Predicated region
        $region97: #{tpu_custom_call.1} parent=91 // pred_check
          %p728 = pneg %p92
        $region98: #{tpu_custom_call.1} parent=91 // pred_check_branch
          %730 = sbr.rel (%p728) target = $region100
        $region99: #{tpu_custom_call.1} parent=91 // pred_region
          %731 = dma.done [#allocation7], 32
        $region100: #{tpu_custom_call.1} parent=91 // pred_fallthru
          _
        // Predicated region
        $region101: #{tpu_custom_call.1} parent=91 // pred_check
          %p732 = pneg %p113
        $region102: #{tpu_custom_call.1} parent=91 // pred_check_branch
          %734 = sbr.rel (%p732) target = $region104
        $region103: #{tpu_custom_call.1} parent=91 // pred_region
          %735 = dma.done [#allocation7], 16
        $region104: #{tpu_custom_call.1} parent=91 // pred_fallthru
          _
        // Predicated region
        $region105: #{tpu_custom_call.1} parent=91 // pred_check
          %p736 = pneg %p134
        $region106: #{tpu_custom_call.1} parent=91 // pred_check_branch
          %738 = sbr.rel (%p736) target = $region108
        $region107: #{tpu_custom_call.1} parent=91 // pred_region
          %739 = dma.done [#allocation10], 16
        $region108: #{tpu_custom_call.1} parent=91 // pred_fallthru
          _
        %s740 = sand.u32 %s33, 1
        %s741 = scalar_lea.sflag [#allocation4], %s740
        %s742 = sand.u32 %s173, 1
        %s743 = scalar_lea.vmem [#allocation11], %s742
        // Predicated region
        $region109: #{tpu_custom_call.1} parent=91 // pred_check
          %p744 = pneg %p186
        $region110: #{tpu_custom_call.1} parent=91 // pred_check_branch
          %746 = sbr.rel (%p744) target = $region112
        $region111: #{tpu_custom_call.1} parent=91 // pred_region
          %747 = dma.done %s741, 16
        $region112: #{tpu_custom_call.1} parent=91 // pred_fallthru
          _
        %s748 = sand.u32 %s33, 1
        %s749 = scalar_lea.sflag [#allocation4], %s748
        %s750 = sand.u32 %s225, 1
        %s751 = scalar_lea.vmem [#allocation12], %s750
        // Predicated region
        $region113: #{tpu_custom_call.1} parent=91 // pred_check
          %p752 = pneg %p238
        $region114: #{tpu_custom_call.1} parent=91 // pred_check_branch
          %754 = sbr.rel (%p752) target = $region116
        $region115: #{tpu_custom_call.1} parent=91 // pred_region
          %755 = dma.done %s749, 16
        $region116: #{tpu_custom_call.1} parent=91 // pred_fallthru
          _
        %s756 = sand.u32 %s33, 1
        %s757 = scalar_lea.sflag [#allocation4], %s756
        %s758 = sand.u32 %s251, 1
        %s759 = scalar_lea.vmem [#allocation13], %s758
        // Predicated region
        $region117: #{tpu_custom_call.1} parent=91 // pred_check
          %p760 = pneg %p264
        $region118: #{tpu_custom_call.1} parent=91 // pred_check_branch
          %762 = sbr.rel (%p760) target = $region120
        $region119: #{tpu_custom_call.1} parent=91 // pred_region
          %763 = dma.done %s757, 16
        $region120: #{tpu_custom_call.1} parent=91 // pred_fallthru
          _
        %s764 = sand.u32 %s33, 1
        %s765 = scalar_lea.sflag [#allocation4], %s764
        %s766 = sand.u32 %s277, 1
        %s767 = scalar_lea.vmem [#allocation14], %s766
        // Predicated region
        $region121: #{tpu_custom_call.1} parent=91 // pred_check
          %p768 = pneg %p290
        $region122: #{tpu_custom_call.1} parent=91 // pred_check_branch
          %770 = sbr.rel (%p768) target = $region124
        $region123: #{tpu_custom_call.1} parent=91 // pred_region
          %771 = dma.done %s765, 16
        $region124: #{tpu_custom_call.1} parent=91 // pred_fallthru
          _
        %p772 = pneg %p66
        %p773 = pneg %p63
        %p774 = pneg %p92
        %p775 = pneg %p89
        %p776 = pneg %p113
        %p777 = pneg %p110
        %p778 = pneg %p134
        %p779 = pneg %p131
        %p780 = scmp.lt.s32.totalorder %s38, 1
        %s781 = scalar_select %p780, %s38, 1
        %s782 = smul.addr %s781, 4
        %s783 = smul.addr %s782, 4
        %s784 = scalar_lea.vmem %s4, %s783
        %p785 = pneg %p160
        %p786 = pneg %p157
        %s787 = sand.u32 %s33, 1
        %s788 = scalar_lea.sflag [#allocation4], %s787
        %s789 = sand.u32 %s173, 1
        %s790 = scalar_lea.vmem [#allocation11], %s789
        %p791 = pneg %p186
        %p792 = pneg %p183
        %p793 = scmp.lt.s32.totalorder %s38, 1
        %s794 = scalar_select %p793, %s38, 1
        %s795 = smul.addr %s794, 4
        %s796 = smul.addr %s795, 4
        %s797 = scalar_lea.vmem %s6, %s796
        %p798 = pneg %p212
        %p799 = pneg %p209
        %s800 = sand.u32 %s33, 1
        %s801 = scalar_lea.sflag [#allocation4], %s800
        %s802 = sand.u32 %s225, 1
        %s803 = scalar_lea.vmem [#allocation12], %s802
        %p804 = pneg %p238
        %p805 = pneg %p235
        %s806 = sand.u32 %s33, 1
        %s807 = scalar_lea.sflag [#allocation4], %s806
        %s808 = sand.u32 %s251, 1
        %s809 = scalar_lea.vmem [#allocation13], %s808
        %p810 = pneg %p264
        %p811 = pneg %p261
        %s812 = sand.u32 %s33, 1
        %s813 = scalar_lea.sflag [#allocation4], %s812
        %s814 = sand.u32 %s277, 1
        %s815 = scalar_lea.vmem [#allocation14], %s814
        %p816 = pneg %p290
        %p817 = pneg %p287
        %p818 = scmp.lt.s32.totalorder %s38, 1
        %s819 = scalar_select %p818, %s38, 1
        %s820 = smul.addr %s819, 4
        %s821 = smul.addr %s820, 4
        %s822 = scalar_lea.vmem %s10, %s821
        %p823 = pneg %p316
        %p824 = pneg %p313
        %p825 = scmp.lt.s32.totalorder %s38, 1
        %s826 = scalar_select %p825, %s38, 1
        %s827 = scalar_lea.vmem %s11, %s826
        %p828 = pneg %p342
        %p829 = pneg %p339
        %p830 = scmp.lt.s32.totalorder %s38, 1
        %s831 = scalar_select %p830, %s38, 1
        %s832 = smul.addr %s831, 8
        %s833 = smul.addr %s832, 4
        %s834 = scalar_lea.vmem %s12, %s833
        %p835 = pneg %p368
        %p836 = pneg %p365
        %p837 = scmp.lt.s32.totalorder %s38, 1
        %s838 = scalar_select %p837, %s38, 1
        %s839 = scalar_lea.vmem %s13, %s838
        %p840 = pneg %p394
        %p841 = pneg %p391
        %p842 = scmp.lt.s32.totalorder %s38, 1
        %s843 = scalar_select %p842, %s38, 1
        %s844 = scalar_lea.vmem %s14, %s843
        %p845 = pneg %p420
        %p846 = pneg %p417
        %p847 = scmp.lt.s32.totalorder %s38, 1
        %s848 = scalar_select %p847, %s38, 1
        %s849 = scalar_lea.vmem %s15, %s848
        %p850 = pneg %p446
        %p851 = pneg %p443
        %p852 = pneg %p467
        %p853 = pneg %p464
        %p854 = pneg %p488
        %p855 = pneg %p485
        %p856 = pneg %p514
        %p857 = pneg %p511
        %s858 = smul.u32 2, %s37
        %s859 = smul.u32 2, %s37
        %p860 = scmp.lt.s32.totalorder %s38, 1
        %s861 = scalar_select %p860, %s38, 1
        %s862 = smul.addr %s861, 4
        %s863 = smul.addr %s862, 4
        %s864 = scalar_lea.vmem %s4, %s863
        %p865 = scmp.lt.s32.totalorder %s38, 1
        %s866 = scalar_select %p865, %s38, 1
        %s867 = smul.addr %s866, 4
        %s868 = smul.addr %s867, 4
        %s869 = scalar_lea.vmem %s6, %s868
        %p870 = scmp.lt.s32.totalorder %s38, 1
        %s871 = scalar_select %p870, %s38, 1
        %s872 = smul.addr %s871, 4
        %s873 = smul.addr %s872, 4
        %s874 = scalar_lea.vmem %s10, %s873
        %p875 = scmp.lt.s32.totalorder %s38, 1
        %s876 = scalar_select %p875, %s38, 1
        %s877 = scalar_lea.vmem %s11, %s876
        %p878 = scmp.lt.s32.totalorder %s38, 1
        %s879 = scalar_select %p878, %s38, 1
        %s880 = smul.addr %s879, 8
        %s881 = smul.addr %s880, 4
        %s882 = scalar_lea.vmem %s12, %s881
        %p883 = scmp.lt.s32.totalorder %s38, 1
        %s884 = scalar_select %p883, %s38, 1
        %s885 = scalar_lea.vmem %s13, %s884
        %p886 = scmp.lt.s32.totalorder %s38, 1
        %s887 = scalar_select %p886, %s38, 1
        %s888 = scalar_lea.vmem %s14, %s887
        %p889 = scmp.lt.s32.totalorder %s38, 1
        %s890 = scalar_select %p889, %s38, 1
        %s891 = scalar_lea.vmem %s15, %s890
        %s892 = smul.u32 2, %s37
        %p894 = scmp.eq.s32.totalorder %s38, 0
        // Predicated region
        $region125: #{tpu_custom_call.1} parent=91 // pred_check
          %p895 = pneg %p894
        $region126: #{tpu_custom_call.1} parent=91 // pred_check_branch
          %897 = sbr.rel (%p895) target = $region128
        $region127: #{tpu_custom_call.1} parent=91 // pred_region
          %v898 = vld [vmem:[#allocation3] sm:$0xff]
          %v899 = vld [vmem:[#allocation3 + $0x8] sm:$0xff]
          %v900 = vld [vmem:[#allocation8] sm:$0x1]
          %v901 = vld [vmem:[#allocation9] sm:$0x1]
          %vm902 = vcmask 261120
          %v903 = vsel %vm902, %v898, 0.0
          %904 = vadd.xlane.f32.xlu0 %v903
          %v905 = vpop.xlane.xlu0 %904
          %v906 = vsel %vm902, %v899, 0.0
          %907 = vadd.xlane.f32.xlu0 %v906
          %v908 = vpop.xlane.xlu0 %907
          %v909 = vrcp.pop 32.0
          %v910 = vmul.f32 %v905, %v909
          %v911 = vmul.f32 %v908, %v909
          %v912 = vsub.f32 %v898, %v910
          %v913 = vsub.f32 %v899, %v911
          %v914 = vmul.f32 %v912, %v912
          %v915 = vmul.f32 %v913, %v913
          %v916 = vsel %vm902, %v914, 0.0
          %917 = vadd.xlane.f32.xlu0 %v916
          %v918 = vpop.xlane.xlu0 %917
          %v919 = vsel %vm902, %v915, 0.0
          %920 = vadd.xlane.f32.xlu0 %v919
          %v921 = vpop.xlane.xlu0 %920
          %v922 = vmul.f32 %v918, %v909
          %v923 = vmul.f32 %v921, %v909
          %v924 = vadd.f32 %v922, 1e-12
          %v925 = vadd.f32 %v923, 1e-12
          %v926 = vrsqrt.pop %v924
          %v927 = vrsqrt.pop %v925
          %v928 = vmul.f32 %v912, %v926
          %v929 = vmul.f32 %v913, %v927
          %v931 = vlaneseq
          %v932 = vshrl.u32 %v931, 7
          %v933 = vsub.s32 0, %v932
          %v934 = vrot.slane %v900, %v933
          %v936 = vmul.f32 %v928, %v934
          %v937 = vmul.f32 %v929, %v934
          %v939 = vlaneseq
          %v940 = vshrl.u32 %v939, 7
          %v941 = vsub.s32 0, %v940
          %v942 = vrot.slane %v901, %v941
          %v944 = vadd.f32 %v936, %v942
          %v945 = vadd.f32 %v937, %v942
          %946 = vst.msk [vmem:[#allocation2] sm:$0xff] %vm902, %v944
          %947 = vst.msk [vmem:[#allocation2 + $0x8] sm:$0xff] %vm902, %v945
        $region128: #{tpu_custom_call.1} parent=91 // pred_fallthru
          _
        %v948 = vld [vmem:[#allocation2] sm:$0xff]
        %v949 = vld [vmem:[#allocation2 + $0x8] sm:$0xff]
        %v950 = vpack.c.bf16 %v949, %v948
        %v951 = vld [vmem:[%s864] sm:$0xf]
        %v952 = vld [vmem:[%s864 + $0x4] sm:$0xf]
        %v953 = vld [vmem:[%s864 + $0x8] sm:$0xf]
        %v954 = vld [vmem:[%s864 + $0xc] sm:$0xf]
        %v955 = vld [vmem:[%s743] sm:$0x1]
        %v957 = vlaneseq
        %v958 = vshrl.u32 %v957, 7
        %v959 = vsub.s32 0, %v958
        %v960 = vrot.slane %v955, %v959
        %v966 = vunpack.c.l.b16 %v951
        %v967 = vunpack.c.l.b16 %v952
        %v968 = vunpack.c.l.b16 %v953
        %v969 = vunpack.c.l.b16 %v954
        %v970 = vpack.c.b16 %v967, %v966
        %v971 = vpack.c.b16 %v969, %v968
        %vm974 = vcmask 261120
        %v976 = vsel %vm974, %v950, 0
        %978 = vmatprep.subr.bf16.mxu0 0
        %979 = vmatpush1.bf16.msra.mxu0 0
        %980 = vmatprep.subr.bf16.mxu0 0
        %981 = vmatpush1.bf16.msra.mxu0 0
        %982 = vmatprep.subr.bf16.mxu0 0
        %983 = vmatpush1.bf16.msra.mxu0 0
        %984 = vmatprep.subr.bf16.mxu0 0
        %985 = vmatpush1.bf16.msra.mxu0 0
        %986 = vmatprep.subr.bf16.mxu0 0
        %987 = vmatpush1.bf16.msra.mxu0 0
        %988 = vmatprep.subr.bf16.mxu0 0
        %989 = vmatpush1.bf16.msra.mxu0 0
        %990 = vmatprep.subr.bf16.mxu0 0
        %991 = vmatpush1.bf16.msra.mxu0 %v971
        %992 = vmatprep.subr.bf16.mxu0 0
        %993 = vmatpush1.bf16.msra.mxu0 %v970
        %994 = vmatprep.subr.bf16.mxu0 0
        %995 = vmatpush2.bf16.msra.mxu0 0
        %996 = vmatprep.subr.bf16.mxu0 0
        %997 = vmatpush2.bf16.msra.mxu0 0
        %998 = vmatprep.subr.bf16.mxu0 0
        %999 = vmatpush2.bf16.msra.mxu0 0
        %1000 = vmatprep.subr.bf16.mxu0 0
        %1001 = vmatpush2.bf16.msra.mxu0 0
        %1002 = vmatprep.subr.bf16.mxu0 0
        %1003 = vmatpush2.bf16.msra.mxu0 0
        %1004 = vmatprep.subr.bf16.mxu0 0
        %1005 = vmatpush2.bf16.msra.mxu0 0
        %1006 = vmatprep.subr.bf16.mxu0 0
        %1007 = vmatpush2.bf16.msra.mxu0 0
        %1008 = vmatprep.subr.bf16.mxu0 0
        %1009 = vmatpush2.bf16.msra.mxu0 0
        %1010 = vmatprep.mubr.bf16.mxu0 0
        %1011 = vmatmul.mubr.bf16.gmra.mxu0 %v976
        %v1012 = vpop.f32.mrf.mxu0
        %v1013 = vadd.f32 %v960, %v1012
        %v1014 = vpop.f32.mrf.mxu0
        %v1015 = vpop.f32.mrf.mxu0
        %v1016 = vadd.f32 %v960, %v1015
        %v1017 = vpop.f32.mrf.mxu0
        %1018 = vdwg.mxu0
        %v1019 = vmul.f32 %v1013, 0.35355338
        %v1020 = vmul.f32 %v1016, 0.35355338
        %v1021 = vpack.c.bf16 %v1020, %v1019
        %v1022 = vpack.c.bf16 %v1016, %v1013
        %v1023 = vld [vmem:[#allocation6] sm:$0x1]
        %1025 = vrot.lane.b32.xlu0 %v1021, 120
        %v1026 = vpop.permute.xlu0 %1025
        %1027 = vrot.lane.b32.xlu0 %v1021, 112
        %v1028 = vpop.permute.xlu0 %1027
        %1029 = vrot.lane.b32.xlu0 %v1021, 104
        %v1030 = vpop.permute.xlu0 %1029
        %1032 = vrot.lane.b32.xlu0 %v1022, 120
        %v1033 = vpop.permute.xlu0 %1032
        %1034 = vrot.lane.b32.xlu0 %v1022, 112
        %v1035 = vpop.permute.xlu0 %1034
        %1036 = vrot.lane.b32.xlu0 %v1022, 104
        %v1037 = vpop.permute.xlu0 %1036
        %v1039 = vlaneseq
        %v1040 = vshrl.u32 %v1039, 7
        %v1041 = vsub.s32 0, %v1040
        %v1042 = vrot.slane %v1023, %v1041
        %1044 = vrot.lane.b32.xlu0 %v1022, 96
        %v1045 = vpop.permute.xlu0 %1044
        %vm1046 = vcmask 64512
        %v1048 = vsel %vm1046, %v1021, 0
        %v1051 = vsel %vm1046, %v1045, 0
        %1053 = vmatprep.subr.bf16.mxu0 0
        %1054 = vmatpush1.bf16.xpose.msra.mxu0 0
        %1055 = vmatprep.subr.bf16.mxu0 0
        %1056 = vmatpush1.bf16.xpose.msra.mxu0 0
        %1057 = vmatprep.subr.bf16.mxu0 0
        %1058 = vmatpush1.bf16.xpose.msra.mxu0 0
        %1059 = vmatprep.subr.bf16.mxu0 0
        %1060 = vmatpush1.bf16.xpose.msra.mxu0 0
        %1061 = vmatprep.subr.bf16.mxu0 0
        %1062 = vmatpush1.bf16.xpose.msra.mxu0 0
        %1063 = vmatprep.subr.bf16.mxu0 0
        %1064 = vmatpush1.bf16.xpose.msra.mxu0 0
        %1065 = vmatprep.subr.bf16.mxu0 0
        %1066 = vmatpush1.bf16.xpose.msra.mxu0 0
        %1067 = vmatprep.subr.bf16.mxu0 0
        %1068 = vmatpush1.bf16.xpose.msra.mxu0 %v1051
        %1069 = vmatprep.subr.bf16.mxu0 0
        %1070 = vmatpush2.bf16.xpose.msra.mxu0 0
        %1071 = vmatprep.subr.bf16.mxu0 0
        %1072 = vmatpush2.bf16.xpose.msra.mxu0 0
        %1073 = vmatprep.subr.bf16.mxu0 0
        %1074 = vmatpush2.bf16.xpose.msra.mxu0 0
        %1075 = vmatprep.subr.bf16.mxu0 0
        %1076 = vmatpush2.bf16.xpose.msra.mxu0 0
        %1077 = vmatprep.subr.bf16.mxu0 0
        %1078 = vmatpush2.bf16.xpose.msra.mxu0 0
        %1079 = vmatprep.subr.bf16.mxu0 0
        %1080 = vmatpush2.bf16.xpose.msra.mxu0 0
        %1081 = vmatprep.subr.bf16.mxu0 0
        %1082 = vmatpush2.bf16.xpose.msra.mxu0 0
        %1083 = vmatprep.subr.bf16.mxu0 0
        %1084 = vmatpush2.bf16.xpose.msra.mxu0 0
        %1085 = vmatprep.mubr.bf16.mxu0 0
        %1086 = vmatmul.mubr.bf16.gmra.mxu0 %v1048
        %v1087 = vpop.f32.mrf.mxu0
        %v1088 = vadd.f32 %v1042, %v1087
        %v1089 = vpop.f32.mrf.mxu0
        %v1090 = vpop.f32.mrf.mxu0
        %v1091 = vpop.f32.mrf.mxu0
        %1092 = vdwg.mxu0
        %1093 = vrot.lane.b32.xlu0 %v1033, 96
        %v1094 = vpop.permute.xlu0 %1093
        %v1096 = vsel %vm1046, %v1026, 0
        %v1099 = vsel %vm1046, %v1094, 0
        %1101 = vmatprep.subr.bf16.mxu0 0
        %1102 = vmatpush1.bf16.xpose.msra.mxu0 0
        %1103 = vmatprep.subr.bf16.mxu0 0
        %1104 = vmatpush1.bf16.xpose.msra.mxu0 0
        %1105 = vmatprep.subr.bf16.mxu0 0
        %1106 = vmatpush1.bf16.xpose.msra.mxu0 0
        %1107 = vmatprep.subr.bf16.mxu0 0
        %1108 = vmatpush1.bf16.xpose.msra.mxu0 0
        %1109 = vmatprep.subr.bf16.mxu0 0
        %1110 = vmatpush1.bf16.xpose.msra.mxu0 0
        %1111 = vmatprep.subr.bf16.mxu0 0
        %1112 = vmatpush1.bf16.xpose.msra.mxu0 0
        %1113 = vmatprep.subr.bf16.mxu0 0
        %1114 = vmatpush1.bf16.xpose.msra.mxu0 0
        %1115 = vmatprep.subr.bf16.mxu0 0
        %1116 = vmatpush1.bf16.xpose.msra.mxu0 %v1099
        %1117 = vmatprep.subr.bf16.mxu0 0
        %1118 = vmatpush2.bf16.xpose.msra.mxu0 0
        %1119 = vmatprep.subr.bf16.mxu0 0
        %1120 = vmatpush2.bf16.xpose.msra.mxu0 0
        %1121 = vmatprep.subr.bf16.mxu0 0
        %1122 = vmatpush2.bf16.xpose.msra.mxu0 0
        %1123 = vmatprep.subr.bf16.mxu0 0
        %1124 = vmatpush2.bf16.xpose.msra.mxu0 0
        %1125 = vmatprep.subr.bf16.mxu0 0
        %1126 = vmatpush2.bf16.xpose.msra.mxu0 0
        %1127 = vmatprep.subr.bf16.mxu0 0
        %1128 = vmatpush2.bf16.xpose.msra.mxu0 0
        %1129 = vmatprep.subr.bf16.mxu0 0
        %1130 = vmatpush2.bf16.xpose.msra.mxu0 0
        %1131 = vmatprep.subr.bf16.mxu0 0
        %1132 = vmatpush2.bf16.xpose.msra.mxu0 0
        %1133 = vmatprep.mubr.bf16.mxu0 0
        %1134 = vmatmul.mubr.bf16.gmra.mxu0 %v1096
        %v1135 = vpop.f32.mrf.mxu0
        %v1136 = vadd.f32 %v1042, %v1135
        %v1137 = vpop.f32.mrf.mxu0
        %v1138 = vpop.f32.mrf.mxu0
        %v1139 = vpop.f32.mrf.mxu0
        %1140 = vdwg.mxu0
        %1141 = vrot.lane.b32.xlu0 %v1035, 96
        %v1142 = vpop.permute.xlu0 %1141
        %v1144 = vsel %vm1046, %v1028, 0
        %v1147 = vsel %vm1046, %v1142, 0
        %1149 = vmatprep.subr.bf16.mxu0 0
        %1150 = vmatpush1.bf16.xpose.msra.mxu0 0
        %1151 = vmatprep.subr.bf16.mxu0 0
        %1152 = vmatpush1.bf16.xpose.msra.mxu0 0
        %1153 = vmatprep.subr.bf16.mxu0 0
        %1154 = vmatpush1.bf16.xpose.msra.mxu0 0
        %1155 = vmatprep.subr.bf16.mxu0 0
        %1156 = vmatpush1.bf16.xpose.msra.mxu0 0
        %1157 = vmatprep.subr.bf16.mxu0 0
        %1158 = vmatpush1.bf16.xpose.msra.mxu0 0
        %1159 = vmatprep.subr.bf16.mxu0 0
        %1160 = vmatpush1.bf16.xpose.msra.mxu0 0
        %1161 = vmatprep.subr.bf16.mxu0 0
        %1162 = vmatpush1.bf16.xpose.msra.mxu0 0
        %1163 = vmatprep.subr.bf16.mxu0 0
        %1164 = vmatpush1.bf16.xpose.msra.mxu0 %v1147
        %1165 = vmatprep.subr.bf16.mxu0 0
        %1166 = vmatpush2.bf16.xpose.msra.mxu0 0
        %1167 = vmatprep.subr.bf16.mxu0 0
        %1168 = vmatpush2.bf16.xpose.msra.mxu0 0
        %1169 = vmatprep.subr.bf16.mxu0 0
        %1170 = vmatpush2.bf16.xpose.msra.mxu0 0
        %1171 = vmatprep.subr.bf16.mxu0 0
        %1172 = vmatpush2.bf16.xpose.msra.mxu0 0
        %1173 = vmatprep.subr.bf16.mxu0 0
        %1174 = vmatpush2.bf16.xpose.msra.mxu0 0
        %1175 = vmatprep.subr.bf16.mxu0 0
        %1176 = vmatpush2.bf16.xpose.msra.mxu0 0
        %1177 = vmatprep.subr.bf16.mxu0 0
        %1178 = vmatpush2.bf16.xpose.msra.mxu0 0
        %1179 = vmatprep.subr.bf16.mxu0 0
        %1180 = vmatpush2.bf16.xpose.msra.mxu0 0
        %1181 = vmatprep.mubr.bf16.mxu0 0
        %1182 = vmatmul.mubr.bf16.gmra.mxu0 %v1144
        %v1183 = vpop.f32.mrf.mxu0
        %v1184 = vadd.f32 %v1042, %v1183
        %v1185 = vpop.f32.mrf.mxu0
        %v1186 = vpop.f32.mrf.mxu0
        %v1187 = vpop.f32.mrf.mxu0
        %1188 = vdwg.mxu0
        %1189 = vrot.lane.b32.xlu0 %v1037, 96
        %v1190 = vpop.permute.xlu0 %1189
        %v1192 = vsel %vm1046, %v1030, 0
        %v1195 = vsel %vm1046, %v1190, 0
        %1197 = vmatprep.subr.bf16.mxu0 0
        %1198 = vmatpush1.bf16.xpose.msra.mxu0 0
        %1199 = vmatprep.subr.bf16.mxu0 0
        %1200 = vmatpush1.bf16.xpose.msra.mxu0 0
        %1201 = vmatprep.subr.bf16.mxu0 0
        %1202 = vmatpush1.bf16.xpose.msra.mxu0 0
        %1203 = vmatprep.subr.bf16.mxu0 0
        %1204 = vmatpush1.bf16.xpose.msra.mxu0 0
        %1205 = vmatprep.subr.bf16.mxu0 0
        %1206 = vmatpush1.bf16.xpose.msra.mxu0 0
        %1207 = vmatprep.subr.bf16.mxu0 0
        %1208 = vmatpush1.bf16.xpose.msra.mxu0 0
        %1209 = vmatprep.subr.bf16.mxu0 0
        %1210 = vmatpush1.bf16.xpose.msra.mxu0 0
        %1211 = vmatprep.subr.bf16.mxu0 0
        %1212 = vmatpush1.bf16.xpose.msra.mxu0 %v1195
        %1213 = vmatprep.subr.bf16.mxu0 0
        %1214 = vmatpush2.bf16.xpose.msra.mxu0 0
        %1215 = vmatprep.subr.bf16.mxu0 0
        %1216 = vmatpush2.bf16.xpose.msra.mxu0 0
        %1217 = vmatprep.subr.bf16.mxu0 0
        %1218 = vmatpush2.bf16.xpose.msra.mxu0 0
        %1219 = vmatprep.subr.bf16.mxu0 0
        %1220 = vmatpush2.bf16.xpose.msra.mxu0 0
        %1221 = vmatprep.subr.bf16.mxu0 0
        %1222 = vmatpush2.bf16.xpose.msra.mxu0 0
        %1223 = vmatprep.subr.bf16.mxu0 0
        %1224 = vmatpush2.bf16.xpose.msra.mxu0 0
        %1225 = vmatprep.subr.bf16.mxu0 0
        %1226 = vmatpush2.bf16.xpose.msra.mxu0 0
        %1227 = vmatprep.subr.bf16.mxu0 0
        %1228 = vmatpush2.bf16.xpose.msra.mxu0 0
        %1229 = vmatprep.mubr.bf16.mxu0 0
        %1230 = vmatmul.mubr.bf16.gmra.mxu0 %v1192
        %v1231 = vpop.f32.mrf.mxu0
        %v1232 = vadd.f32 %v1042, %v1231
        %v1233 = vpop.f32.mrf.mxu0
        %v1234 = vpop.f32.mrf.mxu0
        %v1235 = vpop.f32.mrf.mxu0
        %1236 = vdwg.mxu0
        %v1237 = vsel %vm1046, %v1088, -inf
        %1238 = vmax.xlane.f32.xlu0 %v1237
        %v1239 = vpop.xlane.xlu0 %1238
        %v1240 = vsel %vm1046, %v1136, -inf
        %1241 = vmax.xlane.f32.xlu0 %v1240
        %v1242 = vpop.xlane.xlu0 %1241
        %v1243 = vsel %vm1046, %v1184, -inf
        %1244 = vmax.xlane.f32.xlu0 %v1243
        %v1245 = vpop.xlane.xlu0 %1244
        %v1246 = vsel %vm1046, %v1232, -inf
        %1247 = vmax.xlane.f32.xlu0 %v1246
        %v1248 = vpop.xlane.xlu0 %1247
        %v1249 = vsub.f32 %v1088, %v1239
        %v1250 = vsub.f32 %v1136, %v1242
        %v1251 = vsub.f32 %v1184, %v1245
        %v1252 = vsub.f32 %v1232, %v1248
        %v1253 = vmul.f32 %v1249, 1.442695
        %v1254 = vpow.pop %v1253
        %v1255 = vmul.f32 %v1250, 1.442695
        %v1256 = vpow.pop %v1255
        %v1257 = vmul.f32 %v1251, 1.442695
        %v1258 = vpow.pop %v1257
        %v1259 = vmul.f32 %v1252, 1.442695
        %v1260 = vpow.pop %v1259
        %v1261 = vsel %vm1046, %v1254, 0.0
        %1262 = vadd.xlane.f32.xlu0 %v1261
        %v1263 = vpop.xlane.xlu0 %1262
        %v1264 = vsel %vm1046, %v1256, 0.0
        %1265 = vadd.xlane.f32.xlu0 %v1264
        %v1266 = vpop.xlane.xlu0 %1265
        %v1267 = vsel %vm1046, %v1258, 0.0
        %1268 = vadd.xlane.f32.xlu0 %v1267
        %v1269 = vpop.xlane.xlu0 %1268
        %v1270 = vsel %vm1046, %v1260, 0.0
        %1271 = vadd.xlane.f32.xlu0 %v1270
        %v1272 = vpop.xlane.xlu0 %1271
        %v1273 = vrcp.pop %v1263
        %v1274 = vrcp.pop %v1266
        %v1275 = vrcp.pop %v1269
        %v1276 = vrcp.pop %v1272
        %v1277 = vmul.f32 %v1254, %v1273
        %v1278 = vmul.f32 %v1256, %v1274
        %v1279 = vmul.f32 %v1258, %v1275
        %v1280 = vmul.f32 %v1260, %v1276
        %v1281 = vpack.c.bf16 %v1277, %v1277
        %v1282 = vpack.c.bf16 %v1278, %v1278
        %v1283 = vpack.c.bf16 %v1279, %v1279
        %v1284 = vpack.c.bf16 %v1280, %v1280
        %1285 = vrot.lane.b32.xlu0 %v1022, 64
        %v1286 = vpop.permute.xlu0 %1285
        %v1288 = vsel %vm1046, %v1281, 0
        %vm1290 = vcmask 1043456
        %v1292 = vsel %vm1290, %v1286, 0
        %1294 = vmatprep.subr.bf16.mxu0 0
        %1295 = vmatpush1.bf16.msra.mxu0 0
        %1296 = vmatprep.subr.bf16.mxu0 0
        %1297 = vmatpush1.bf16.msra.mxu0 0
        %1298 = vmatprep.subr.bf16.mxu0 0
        %1299 = vmatpush1.bf16.msra.mxu0 0
        %1300 = vmatprep.subr.bf16.mxu0 0
        %1301 = vmatpush1.bf16.msra.mxu0 0
        %1302 = vmatprep.subr.bf16.mxu0 0
        %1303 = vmatpush1.bf16.msra.mxu0 0
        %1304 = vmatprep.subr.bf16.mxu0 0
        %1305 = vmatpush1.bf16.msra.mxu0 0
        %1306 = vmatprep.subr.bf16.mxu0 0
        %1307 = vmatpush1.bf16.msra.mxu0 0
        %1308 = vmatprep.subr.bf16.mxu0 0
        %1309 = vmatpush1.bf16.msra.mxu0 %v1292
        %1310 = vmatprep.subr.bf16.mxu0 0
        %1311 = vmatpush2.bf16.msra.mxu0 0
        %1312 = vmatprep.subr.bf16.mxu0 0
        %1313 = vmatpush2.bf16.msra.mxu0 0
        %1314 = vmatprep.subr.bf16.mxu0 0
        %1315 = vmatpush2.bf16.msra.mxu0 0
        %1316 = vmatprep.subr.bf16.mxu0 0
        %1317 = vmatpush2.bf16.msra.mxu0 0
        %1318 = vmatprep.subr.bf16.mxu0 0
        %1319 = vmatpush2.bf16.msra.mxu0 0
        %1320 = vmatprep.subr.bf16.mxu0 0
        %1321 = vmatpush2.bf16.msra.mxu0 0
        %1322 = vmatprep.subr.bf16.mxu0 0
        %1323 = vmatpush2.bf16.msra.mxu0 0
        %1324 = vmatprep.subr.bf16.mxu0 0
        %1325 = vmatpush2.bf16.msra.mxu0 0
        %1326 = vmatprep.mubr.bf16.mxu0 0
        %1327 = vmatmul.mubr.bf16.gmra.mxu0 %v1288
        %v1328 = vpop.f32.mrf.mxu0
        %v1329 = vadd.f32 0.0, %v1328
        %v1330 = vpop.f32.mrf.mxu0
        %v1331 = vpop.f32.mrf.mxu0
        %v1332 = vpop.f32.mrf.mxu0
        %1333 = vdwg.mxu0
        %1334 = vrot.lane.b32.xlu0 %v1033, 64
        %v1335 = vpop.permute.xlu0 %1334
        %v1337 = vsel %vm1046, %v1282, 0
        %v1340 = vsel %vm1290, %v1335, 0
        %1342 = vmatprep.subr.bf16.mxu0 0
        %1343 = vmatpush1.bf16.msra.mxu0 0
        %1344 = vmatprep.subr.bf16.mxu0 0
        %1345 = vmatpush1.bf16.msra.mxu0 0
        %1346 = vmatprep.subr.bf16.mxu0 0
        %1347 = vmatpush1.bf16.msra.mxu0 0
        %1348 = vmatprep.subr.bf16.mxu0 0
        %1349 = vmatpush1.bf16.msra.mxu0 0
        %1350 = vmatprep.subr.bf16.mxu0 0
        %1351 = vmatpush1.bf16.msra.mxu0 0
        %1352 = vmatprep.subr.bf16.mxu0 0
        %1353 = vmatpush1.bf16.msra.mxu0 0
        %1354 = vmatprep.subr.bf16.mxu0 0
        %1355 = vmatpush1.bf16.msra.mxu0 0
        %1356 = vmatprep.subr.bf16.mxu0 0
        %1357 = vmatpush1.bf16.msra.mxu0 %v1340
        %1358 = vmatprep.subr.bf16.mxu0 0
        %1359 = vmatpush2.bf16.msra.mxu0 0
        %1360 = vmatprep.subr.bf16.mxu0 0
        %1361 = vmatpush2.bf16.msra.mxu0 0
        %1362 = vmatprep.subr.bf16.mxu0 0
        %1363 = vmatpush2.bf16.msra.mxu0 0
        %1364 = vmatprep.subr.bf16.mxu0 0
        %1365 = vmatpush2.bf16.msra.mxu0 0
        %1366 = vmatprep.subr.bf16.mxu0 0
        %1367 = vmatpush2.bf16.msra.mxu0 0
        %1368 = vmatprep.subr.bf16.mxu0 0
        %1369 = vmatpush2.bf16.msra.mxu0 0
        %1370 = vmatprep.subr.bf16.mxu0 0
        %1371 = vmatpush2.bf16.msra.mxu0 0
        %1372 = vmatprep.subr.bf16.mxu0 0
        %1373 = vmatpush2.bf16.msra.mxu0 0
        %1374 = vmatprep.mubr.bf16.mxu0 0
        %1375 = vmatmul.mubr.bf16.gmra.mxu0 %v1337
        %v1376 = vpop.f32.mrf.mxu0
        %v1377 = vadd.f32 0.0, %v1376
        %v1378 = vpop.f32.mrf.mxu0
        %v1379 = vpop.f32.mrf.mxu0
        %v1380 = vpop.f32.mrf.mxu0
        %1381 = vdwg.mxu0
        %1382 = vrot.lane.b32.xlu0 %v1035, 64
        %v1383 = vpop.permute.xlu0 %1382
        %v1385 = vsel %vm1046, %v1283, 0
        %v1388 = vsel %vm1290, %v1383, 0
        %1390 = vmatprep.subr.bf16.mxu0 0
        %1391 = vmatpush1.bf16.msra.mxu0 0
        %1392 = vmatprep.subr.bf16.mxu0 0
        %1393 = vmatpush1.bf16.msra.mxu0 0
        %1394 = vmatprep.subr.bf16.mxu0 0
        %1395 = vmatpush1.bf16.msra.mxu0 0
        %1396 = vmatprep.subr.bf16.mxu0 0
        %1397 = vmatpush1.bf16.msra.mxu0 0
        %1398 = vmatprep.subr.bf16.mxu0 0
        %1399 = vmatpush1.bf16.msra.mxu0 0
        %1400 = vmatprep.subr.bf16.mxu0 0
        %1401 = vmatpush1.bf16.msra.mxu0 0
        %1402 = vmatprep.subr.bf16.mxu0 0
        %1403 = vmatpush1.bf16.msra.mxu0 0
        %1404 = vmatprep.subr.bf16.mxu0 0
        %1405 = vmatpush1.bf16.msra.mxu0 %v1388
        %1406 = vmatprep.subr.bf16.mxu0 0
        %1407 = vmatpush2.bf16.msra.mxu0 0
        %1408 = vmatprep.subr.bf16.mxu0 0
        %1409 = vmatpush2.bf16.msra.mxu0 0
        %1410 = vmatprep.subr.bf16.mxu0 0
        %1411 = vmatpush2.bf16.msra.mxu0 0
        %1412 = vmatprep.subr.bf16.mxu0 0
        %1413 = vmatpush2.bf16.msra.mxu0 0
        %1414 = vmatprep.subr.bf16.mxu0 0
        %1415 = vmatpush2.bf16.msra.mxu0 0
        %1416 = vmatprep.subr.bf16.mxu0 0
        %1417 = vmatpush2.bf16.msra.mxu0 0
        %1418 = vmatprep.subr.bf16.mxu0 0
        %1419 = vmatpush2.bf16.msra.mxu0 0
        %1420 = vmatprep.subr.bf16.mxu0 0
        %1421 = vmatpush2.bf16.msra.mxu0 0
        %1422 = vmatprep.mubr.bf16.mxu0 0
        %1423 = vmatmul.mubr.bf16.gmra.mxu0 %v1385
        %v1424 = vpop.f32.mrf.mxu0
        %v1425 = vadd.f32 0.0, %v1424
        %v1426 = vpop.f32.mrf.mxu0
        %v1427 = vpop.f32.mrf.mxu0
        %v1428 = vpop.f32.mrf.mxu0
        %1429 = vdwg.mxu0
        %1430 = vrot.lane.b32.xlu0 %v1037, 64
        %v1431 = vpop.permute.xlu0 %1430
        %v1433 = vsel %vm1046, %v1284, 0
        %v1436 = vsel %vm1290, %v1431, 0
        %1438 = vmatprep.subr.bf16.mxu0 0
        %1439 = vmatpush1.bf16.msra.mxu0 0
        %1440 = vmatprep.subr.bf16.mxu0 0
        %1441 = vmatpush1.bf16.msra.mxu0 0
        %1442 = vmatprep.subr.bf16.mxu0 0
        %1443 = vmatpush1.bf16.msra.mxu0 0
        %1444 = vmatprep.subr.bf16.mxu0 0
        %1445 = vmatpush1.bf16.msra.mxu0 0
        %1446 = vmatprep.subr.bf16.mxu0 0
        %1447 = vmatpush1.bf16.msra.mxu0 0
        %1448 = vmatprep.subr.bf16.mxu0 0
        %1449 = vmatpush1.bf16.msra.mxu0 0
        %1450 = vmatprep.subr.bf16.mxu0 0
        %1451 = vmatpush1.bf16.msra.mxu0 0
        %1452 = vmatprep.subr.bf16.mxu0 0
        %1453 = vmatpush1.bf16.msra.mxu0 %v1436
        %1454 = vmatprep.subr.bf16.mxu0 0
        %1455 = vmatpush2.bf16.msra.mxu0 0
        %1456 = vmatprep.subr.bf16.mxu0 0
        %1457 = vmatpush2.bf16.msra.mxu0 0
        %1458 = vmatprep.subr.bf16.mxu0 0
        %1459 = vmatpush2.bf16.msra.mxu0 0
        %1460 = vmatprep.subr.bf16.mxu0 0
        %1461 = vmatpush2.bf16.msra.mxu0 0
        %1462 = vmatprep.subr.bf16.mxu0 0
        %1463 = vmatpush2.bf16.msra.mxu0 0
        %1464 = vmatprep.subr.bf16.mxu0 0
        %1465 = vmatpush2.bf16.msra.mxu0 0
        %1466 = vmatprep.subr.bf16.mxu0 0
        %1467 = vmatpush2.bf16.msra.mxu0 0
        %1468 = vmatprep.subr.bf16.mxu0 0
        %1469 = vmatpush2.bf16.msra.mxu0 0
        %1470 = vmatprep.mubr.bf16.mxu0 0
        %1471 = vmatmul.mubr.bf16.gmra.mxu0 %v1433
        %v1472 = vpop.f32.mrf.mxu0
        %v1473 = vadd.f32 0.0, %v1472
        %v1474 = vpop.f32.mrf.mxu0
        %v1475 = vpop.f32.mrf.mxu0
        %v1476 = vpop.f32.mrf.mxu0
        %1477 = vdwg.mxu0
        %1479 = vrot.lane.b32.xlu0 %v1377, 8
        %v1480 = vpop.permute.xlu0 %1479
        %1483 = vrot.lane.b32.xlu0 %v1425, 16
        %v1484 = vpop.permute.xlu0 %1483
        %1487 = vrot.lane.b32.xlu0 %v1473, 24
        %v1488 = vpop.permute.xlu0 %1487
        %v1490 = vsel %vm1046, %v1329, %v1480
        %vm1491 = vcmask 130048
        %v1492 = vsel %vm1491, %v1490, %v1484
        %vm1493 = vcmask 195584
        %v1494 = vsel %vm1493, %v1492, %v1488
        %s1495 = scalar_lea.vmem [#allocation6], 1
        %v1496 = vld [vmem:[%s1495] sm:$0x1]
        %v1498 = vlaneseq
        %v1499 = vshrl.u32 %v1498, 7
        %v1500 = vsub.s32 0, %v1499
        %v1501 = vrot.slane %v1496, %v1500
        %v1503 = vrot.slane %v1021, 4
        %v1504 = vrot.slane %v1022, 4
        %1505 = vrot.lane.b32.xlu0 %v1504, 96
        %v1506 = vpop.permute.xlu0 %1505
        %v1508 = vsel %vm1046, %v1503, 0
        %v1511 = vsel %vm1046, %v1506, 0
        %1513 = vmatprep.subr.bf16.mxu0 0
        %1514 = vmatpush1.bf16.xpose.msra.mxu0 0
        %1515 = vmatprep.subr.bf16.mxu0 0
        %1516 = vmatpush1.bf16.xpose.msra.mxu0 0
        %1517 = vmatprep.subr.bf16.mxu0 0
        %1518 = vmatpush1.bf16.xpose.msra.mxu0 0
        %1519 = vmatprep.subr.bf16.mxu0 0
        %1520 = vmatpush1.bf16.xpose.msra.mxu0 0
        %1521 = vmatprep.subr.bf16.mxu0 0
        %1522 = vmatpush1.bf16.xpose.msra.mxu0 0
        %1523 = vmatprep.subr.bf16.mxu0 0
        %1524 = vmatpush1.bf16.xpose.msra.mxu0 0
        %1525 = vmatprep.subr.bf16.mxu0 0
        %1526 = vmatpush1.bf16.xpose.msra.mxu0 0
        %1527 = vmatprep.subr.bf16.mxu0 0
        %1528 = vmatpush1.bf16.xpose.msra.mxu0 %v1511
        %1529 = vmatprep.subr.bf16.mxu0 0
        %1530 = vmatpush2.bf16.xpose.msra.mxu0 0
        %1531 = vmatprep.subr.bf16.mxu0 0
        %1532 = vmatpush2.bf16.xpose.msra.mxu0 0
        %1533 = vmatprep.subr.bf16.mxu0 0
        %1534 = vmatpush2.bf16.xpose.msra.mxu0 0
        %1535 = vmatprep.subr.bf16.mxu0 0
        %1536 = vmatpush2.bf16.xpose.msra.mxu0 0
        %1537 = vmatprep.subr.bf16.mxu0 0
        %1538 = vmatpush2.bf16.xpose.msra.mxu0 0
        %1539 = vmatprep.subr.bf16.mxu0 0
        %1540 = vmatpush2.bf16.xpose.msra.mxu0 0
        %1541 = vmatprep.subr.bf16.mxu0 0
        %1542 = vmatpush2.bf16.xpose.msra.mxu0 0
        %1543 = vmatprep.subr.bf16.mxu0 0
        %1544 = vmatpush2.bf16.xpose.msra.mxu0 0
        %1545 = vmatprep.mubr.bf16.mxu0 0
        %1546 = vmatmul.mubr.bf16.gmra.mxu0 %v1508
        %v1547 = vpop.f32.mrf.mxu0
        %v1548 = vadd.f32 %v1501, %v1547
        %v1549 = vpop.f32.mrf.mxu0
        %v1550 = vpop.f32.mrf.mxu0
        %v1551 = vpop.f32.mrf.mxu0
        %1552 = vdwg.mxu0
        %v1553 = vrot.slane %v1026, 4
        %v1554 = vrot.slane %v1033, 4
        %1555 = vrot.lane.b32.xlu0 %v1554, 96
        %v1556 = vpop.permute.xlu0 %1555
        %v1558 = vsel %vm1046, %v1553, 0
        %v1561 = vsel %vm1046, %v1556, 0
        %1563 = vmatprep.subr.bf16.mxu0 0
        %1564 = vmatpush1.bf16.xpose.msra.mxu0 0
        %1565 = vmatprep.subr.bf16.mxu0 0
        %1566 = vmatpush1.bf16.xpose.msra.mxu0 0
        %1567 = vmatprep.subr.bf16.mxu0 0
        %1568 = vmatpush1.bf16.xpose.msra.mxu0 0
        %1569 = vmatprep.subr.bf16.mxu0 0
        %1570 = vmatpush1.bf16.xpose.msra.mxu0 0
        %1571 = vmatprep.subr.bf16.mxu0 0
        %1572 = vmatpush1.bf16.xpose.msra.mxu0 0
        %1573 = vmatprep.subr.bf16.mxu0 0
        %1574 = vmatpush1.bf16.xpose.msra.mxu0 0
        %1575 = vmatprep.subr.bf16.mxu0 0
        %1576 = vmatpush1.bf16.xpose.msra.mxu0 0
        %1577 = vmatprep.subr.bf16.mxu0 0
        %1578 = vmatpush1.bf16.xpose.msra.mxu0 %v1561
        %1579 = vmatprep.subr.bf16.mxu0 0
        %1580 = vmatpush2.bf16.xpose.msra.mxu0 0
        %1581 = vmatprep.subr.bf16.mxu0 0
        %1582 = vmatpush2.bf16.xpose.msra.mxu0 0
        %1583 = vmatprep.subr.bf16.mxu0 0
        %1584 = vmatpush2.bf16.xpose.msra.mxu0 0
        %1585 = vmatprep.subr.bf16.mxu0 0
        %1586 = vmatpush2.bf16.xpose.msra.mxu0 0
        %1587 = vmatprep.subr.bf16.mxu0 0
        %1588 = vmatpush2.bf16.xpose.msra.mxu0 0
        %1589 = vmatprep.subr.bf16.mxu0 0
        %1590 = vmatpush2.bf16.xpose.msra.mxu0 0
        %1591 = vmatprep.subr.bf16.mxu0 0
        %1592 = vmatpush2.bf16.xpose.msra.mxu0 0
        %1593 = vmatprep.subr.bf16.mxu0 0
        %1594 = vmatpush2.bf16.xpose.msra.mxu0 0
        %1595 = vmatprep.mubr.bf16.mxu0 0
        %1596 = vmatmul.mubr.bf16.gmra.mxu0 %v1558
        %v1597 = vpop.f32.mrf.mxu0
        %v1598 = vadd.f32 %v1501, %v1597
        %v1599 = vpop.f32.mrf.mxu0
        %v1600 = vpop.f32.mrf.mxu0
        %v1601 = vpop.f32.mrf.mxu0
        %1602 = vdwg.mxu0
        %v1603 = vrot.slane %v1028, 4
        %v1604 = vrot.slane %v1035, 4
        %1605 = vrot.lane.b32.xlu0 %v1604, 96
        %v1606 = vpop.permute.xlu0 %1605
        %v1608 = vsel %vm1046, %v1603, 0
        %v1611 = vsel %vm1046, %v1606, 0
        %1613 = vmatprep.subr.bf16.mxu0 0
        %1614 = vmatpush1.bf16.xpose.msra.mxu0 0
        %1615 = vmatprep.subr.bf16.mxu0 0
        %1616 = vmatpush1.bf16.xpose.msra.mxu0 0
        %1617 = vmatprep.subr.bf16.mxu0 0
        %1618 = vmatpush1.bf16.xpose.msra.mxu0 0
        %1619 = vmatprep.subr.bf16.mxu0 0
        %1620 = vmatpush1.bf16.xpose.msra.mxu0 0
        %1621 = vmatprep.subr.bf16.mxu0 0
        %1622 = vmatpush1.bf16.xpose.msra.mxu0 0
        %1623 = vmatprep.subr.bf16.mxu0 0
        %1624 = vmatpush1.bf16.xpose.msra.mxu0 0
        %1625 = vmatprep.subr.bf16.mxu0 0
        %1626 = vmatpush1.bf16.xpose.msra.mxu0 0
        %1627 = vmatprep.subr.bf16.mxu0 0
        %1628 = vmatpush1.bf16.xpose.msra.mxu0 %v1611
        %1629 = vmatprep.subr.bf16.mxu0 0
        %1630 = vmatpush2.bf16.xpose.msra.mxu0 0
        %1631 = vmatprep.subr.bf16.mxu0 0
        %1632 = vmatpush2.bf16.xpose.msra.mxu0 0
        %1633 = vmatprep.subr.bf16.mxu0 0
        %1634 = vmatpush2.bf16.xpose.msra.mxu0 0
        %1635 = vmatprep.subr.bf16.mxu0 0
        %1636 = vmatpush2.bf16.xpose.msra.mxu0 0
        %1637 = vmatprep.subr.bf16.mxu0 0
        %1638 = vmatpush2.bf16.xpose.msra.mxu0 0
        %1639 = vmatprep.subr.bf16.mxu0 0
        %1640 = vmatpush2.bf16.xpose.msra.mxu0 0
        %1641 = vmatprep.subr.bf16.mxu0 0
        %1642 = vmatpush2.bf16.xpose.msra.mxu0 0
        %1643 = vmatprep.subr.bf16.mxu0 0
        %1644 = vmatpush2.bf16.xpose.msra.mxu0 0
        %1645 = vmatprep.mubr.bf16.mxu0 0
        %1646 = vmatmul.mubr.bf16.gmra.mxu0 %v1608
        %v1647 = vpop.f32.mrf.mxu0
        %v1648 = vadd.f32 %v1501, %v1647
        %v1649 = vpop.f32.mrf.mxu0
        %v1650 = vpop.f32.mrf.mxu0
        %v1651 = vpop.f32.mrf.mxu0
        %1652 = vdwg.mxu0
        %v1653 = vrot.slane %v1030, 4
        %v1654 = vrot.slane %v1037, 4
        %1655 = vrot.lane.b32.xlu0 %v1654, 96
        %v1656 = vpop.permute.xlu0 %1655
        %v1658 = vsel %vm1046, %v1653, 0
        %v1661 = vsel %vm1046, %v1656, 0
        %1663 = vmatprep.subr.bf16.mxu0 0
        %1664 = vmatpush1.bf16.xpose.msra.mxu0 0
        %1665 = vmatprep.subr.bf16.mxu0 0
        %1666 = vmatpush1.bf16.xpose.msra.mxu0 0
        %1667 = vmatprep.subr.bf16.mxu0 0
        %1668 = vmatpush1.bf16.xpose.msra.mxu0 0
        %1669 = vmatprep.subr.bf16.mxu0 0
        %1670 = vmatpush1.bf16.xpose.msra.mxu0 0
        %1671 = vmatprep.subr.bf16.mxu0 0
        %1672 = vmatpush1.bf16.xpose.msra.mxu0 0
        %1673 = vmatprep.subr.bf16.mxu0 0
        %1674 = vmatpush1.bf16.xpose.msra.mxu0 0
        %1675 = vmatprep.subr.bf16.mxu0 0
        %1676 = vmatpush1.bf16.xpose.msra.mxu0 0
        %1677 = vmatprep.subr.bf16.mxu0 0
        %1678 = vmatpush1.bf16.xpose.msra.mxu0 %v1661
        %1679 = vmatprep.subr.bf16.mxu0 0
        %1680 = vmatpush2.bf16.xpose.msra.mxu0 0
        %1681 = vmatprep.subr.bf16.mxu0 0
        %1682 = vmatpush2.bf16.xpose.msra.mxu0 0
        %1683 = vmatprep.subr.bf16.mxu0 0
        %1684 = vmatpush2.bf16.xpose.msra.mxu0 0
        %1685 = vmatprep.subr.bf16.mxu0 0
        %1686 = vmatpush2.bf16.xpose.msra.mxu0 0
        %1687 = vmatprep.subr.bf16.mxu0 0
        %1688 = vmatpush2.bf16.xpose.msra.mxu0 0
        %1689 = vmatprep.subr.bf16.mxu0 0
        %1690 = vmatpush2.bf16.xpose.msra.mxu0 0
        %1691 = vmatprep.subr.bf16.mxu0 0
        %1692 = vmatpush2.bf16.xpose.msra.mxu0 0
        %1693 = vmatprep.subr.bf16.mxu0 0
        %1694 = vmatpush2.bf16.xpose.msra.mxu0 0
        %1695 = vmatprep.mubr.bf16.mxu0 0
        %1696 = vmatmul.mubr.bf16.gmra.mxu0 %v1658
        %v1697 = vpop.f32.mrf.mxu0
        %v1698 = vadd.f32 %v1501, %v1697
        %v1699 = vpop.f32.mrf.mxu0
        %v1700 = vpop.f32.mrf.mxu0
        %v1701 = vpop.f32.mrf.mxu0
        %1702 = vdwg.mxu0
        %v1703 = vsel %vm1046, %v1548, -inf
        %1704 = vmax.xlane.f32.xlu0 %v1703
        %v1705 = vpop.xlane.xlu0 %1704
        %v1706 = vsel %vm1046, %v1598, -inf
        %1707 = vmax.xlane.f32.xlu0 %v1706
        %v1708 = vpop.xlane.xlu0 %1707
        %v1709 = vsel %vm1046, %v1648, -inf
        %1710 = vmax.xlane.f32.xlu0 %v1709
        %v1711 = vpop.xlane.xlu0 %1710
        %v1712 = vsel %vm1046, %v1698, -inf
        %1713 = vmax.xlane.f32.xlu0 %v1712
        %v1714 = vpop.xlane.xlu0 %1713
        %v1715 = vsub.f32 %v1548, %v1705
        %v1716 = vsub.f32 %v1598, %v1708
        %v1717 = vsub.f32 %v1648, %v1711
        %v1718 = vsub.f32 %v1698, %v1714
        %v1719 = vmul.f32 %v1715, 1.442695
        %v1720 = vpow.pop %v1719
        %v1721 = vmul.f32 %v1716, 1.442695
        %v1722 = vpow.pop %v1721
        %v1723 = vmul.f32 %v1717, 1.442695
        %v1724 = vpow.pop %v1723
        %v1725 = vmul.f32 %v1718, 1.442695
        %v1726 = vpow.pop %v1725
        %v1727 = vsel %vm1046, %v1720, 0.0
        %1728 = vadd.xlane.f32.xlu0 %v1727
        %v1729 = vpop.xlane.xlu0 %1728
        %v1730 = vsel %vm1046, %v1722, 0.0
        %1731 = vadd.xlane.f32.xlu0 %v1730
        %v1732 = vpop.xlane.xlu0 %1731
        %v1733 = vsel %vm1046, %v1724, 0.0
        %1734 = vadd.xlane.f32.xlu0 %v1733
        %v1735 = vpop.xlane.xlu0 %1734
        %v1736 = vsel %vm1046, %v1726, 0.0
        %1737 = vadd.xlane.f32.xlu0 %v1736
        %v1738 = vpop.xlane.xlu0 %1737
        %v1739 = vrcp.pop %v1729
        %v1740 = vrcp.pop %v1732
        %v1741 = vrcp.pop %v1735
        %v1742 = vrcp.pop %v1738
        %v1743 = vmul.f32 %v1720, %v1739
        %v1744 = vmul.f32 %v1722, %v1740
        %v1745 = vmul.f32 %v1724, %v1741
        %v1746 = vmul.f32 %v1726, %v1742
        %v1747 = vpack.c.bf16 %v1743, %v1743
        %v1748 = vpack.c.bf16 %v1744, %v1744
        %v1749 = vpack.c.bf16 %v1745, %v1745
        %v1750 = vpack.c.bf16 %v1746, %v1746
        %1751 = vrot.lane.b32.xlu0 %v1504, 64
        %v1752 = vpop.permute.xlu0 %1751
        %v1754 = vsel %vm1046, %v1747, 0
        %v1757 = vsel %vm1290, %v1752, 0
        %1759 = vmatprep.subr.bf16.mxu0 0
        %1760 = vmatpush1.bf16.msra.mxu0 0
        %1761 = vmatprep.subr.bf16.mxu0 0
        %1762 = vmatpush1.bf16.msra.mxu0 0
        %1763 = vmatprep.subr.bf16.mxu0 0
        %1764 = vmatpush1.bf16.msra.mxu0 0
        %1765 = vmatprep.subr.bf16.mxu0 0
        %1766 = vmatpush1.bf16.msra.mxu0 0
        %1767 = vmatprep.subr.bf16.mxu0 0
        %1768 = vmatpush1.bf16.msra.mxu0 0
        %1769 = vmatprep.subr.bf16.mxu0 0
        %1770 = vmatpush1.bf16.msra.mxu0 0
        %1771 = vmatprep.subr.bf16.mxu0 0
        %1772 = vmatpush1.bf16.msra.mxu0 0
        %1773 = vmatprep.subr.bf16.mxu0 0
        %1774 = vmatpush1.bf16.msra.mxu0 %v1757
        %1775 = vmatprep.subr.bf16.mxu0 0
        %1776 = vmatpush2.bf16.msra.mxu0 0
        %1777 = vmatprep.subr.bf16.mxu0 0
        %1778 = vmatpush2.bf16.msra.mxu0 0
        %1779 = vmatprep.subr.bf16.mxu0 0
        %1780 = vmatpush2.bf16.msra.mxu0 0
        %1781 = vmatprep.subr.bf16.mxu0 0
        %1782 = vmatpush2.bf16.msra.mxu0 0
        %1783 = vmatprep.subr.bf16.mxu0 0
        %1784 = vmatpush2.bf16.msra.mxu0 0
        %1785 = vmatprep.subr.bf16.mxu0 0
        %1786 = vmatpush2.bf16.msra.mxu0 0
        %1787 = vmatprep.subr.bf16.mxu0 0
        %1788 = vmatpush2.bf16.msra.mxu0 0
        %1789 = vmatprep.subr.bf16.mxu0 0
        %1790 = vmatpush2.bf16.msra.mxu0 0
        %1791 = vmatprep.mubr.bf16.mxu0 0
        %1792 = vmatmul.mubr.bf16.gmra.mxu0 %v1754
        %v1793 = vpop.f32.mrf.mxu0
        %v1794 = vadd.f32 0.0, %v1793
        %v1795 = vpop.f32.mrf.mxu0
        %v1796 = vpop.f32.mrf.mxu0
        %v1797 = vpop.f32.mrf.mxu0
        %1798 = vdwg.mxu0
        %1799 = vrot.lane.b32.xlu0 %v1554, 64
        %v1800 = vpop.permute.xlu0 %1799
        %v1802 = vsel %vm1046, %v1748, 0
        %v1805 = vsel %vm1290, %v1800, 0
        %1807 = vmatprep.subr.bf16.mxu0 0
        %1808 = vmatpush1.bf16.msra.mxu0 0
        %1809 = vmatprep.subr.bf16.mxu0 0
        %1810 = vmatpush1.bf16.msra.mxu0 0
        %1811 = vmatprep.subr.bf16.mxu0 0
        %1812 = vmatpush1.bf16.msra.mxu0 0
        %1813 = vmatprep.subr.bf16.mxu0 0
        %1814 = vmatpush1.bf16.msra.mxu0 0
        %1815 = vmatprep.subr.bf16.mxu0 0
        %1816 = vmatpush1.bf16.msra.mxu0 0
        %1817 = vmatprep.subr.bf16.mxu0 0
        %1818 = vmatpush1.bf16.msra.mxu0 0
        %1819 = vmatprep.subr.bf16.mxu0 0
        %1820 = vmatpush1.bf16.msra.mxu0 0
        %1821 = vmatprep.subr.bf16.mxu0 0
        %1822 = vmatpush1.bf16.msra.mxu0 %v1805
        %1823 = vmatprep.subr.bf16.mxu0 0
        %1824 = vmatpush2.bf16.msra.mxu0 0
        %1825 = vmatprep.subr.bf16.mxu0 0
        %1826 = vmatpush2.bf16.msra.mxu0 0
        %1827 = vmatprep.subr.bf16.mxu0 0
        %1828 = vmatpush2.bf16.msra.mxu0 0
        %1829 = vmatprep.subr.bf16.mxu0 0
        %1830 = vmatpush2.bf16.msra.mxu0 0
        %1831 = vmatprep.subr.bf16.mxu0 0
        %1832 = vmatpush2.bf16.msra.mxu0 0
        %1833 = vmatprep.subr.bf16.mxu0 0
        %1834 = vmatpush2.bf16.msra.mxu0 0
        %1835 = vmatprep.subr.bf16.mxu0 0
        %1836 = vmatpush2.bf16.msra.mxu0 0
        %1837 = vmatprep.subr.bf16.mxu0 0
        %1838 = vmatpush2.bf16.msra.mxu0 0
        %1839 = vmatprep.mubr.bf16.mxu0 0
        %1840 = vmatmul.mubr.bf16.gmra.mxu0 %v1802
        %v1841 = vpop.f32.mrf.mxu0
        %v1842 = vadd.f32 0.0, %v1841
        %v1843 = vpop.f32.mrf.mxu0
        %v1844 = vpop.f32.mrf.mxu0
        %v1845 = vpop.f32.mrf.mxu0
        %1846 = vdwg.mxu0
        %1847 = vrot.lane.b32.xlu0 %v1604, 64
        %v1848 = vpop.permute.xlu0 %1847
        %v1850 = vsel %vm1046, %v1749, 0
        %v1853 = vsel %vm1290, %v1848, 0
        %1855 = vmatprep.subr.bf16.mxu0 0
        %1856 = vmatpush1.bf16.msra.mxu0 0
        %1857 = vmatprep.subr.bf16.mxu0 0
        %1858 = vmatpush1.bf16.msra.mxu0 0
        %1859 = vmatprep.subr.bf16.mxu0 0
        %1860 = vmatpush1.bf16.msra.mxu0 0
        %1861 = vmatprep.subr.bf16.mxu0 0
        %1862 = vmatpush1.bf16.msra.mxu0 0
        %1863 = vmatprep.subr.bf16.mxu0 0
        %1864 = vmatpush1.bf16.msra.mxu0 0
        %1865 = vmatprep.subr.bf16.mxu0 0
        %1866 = vmatpush1.bf16.msra.mxu0 0
        %1867 = vmatprep.subr.bf16.mxu0 0
        %1868 = vmatpush1.bf16.msra.mxu0 0
        %1869 = vmatprep.subr.bf16.mxu0 0
        %1870 = vmatpush1.bf16.msra.mxu0 %v1853
        %1871 = vmatprep.subr.bf16.mxu0 0
        %1872 = vmatpush2.bf16.msra.mxu0 0
        %1873 = vmatprep.subr.bf16.mxu0 0
        %1874 = vmatpush2.bf16.msra.mxu0 0
        %1875 = vmatprep.subr.bf16.mxu0 0
        %1876 = vmatpush2.bf16.msra.mxu0 0
        %1877 = vmatprep.subr.bf16.mxu0 0
        %1878 = vmatpush2.bf16.msra.mxu0 0
        %1879 = vmatprep.subr.bf16.mxu0 0
        %1880 = vmatpush2.bf16.msra.mxu0 0
        %1881 = vmatprep.subr.bf16.mxu0 0
        %1882 = vmatpush2.bf16.msra.mxu0 0
        %1883 = vmatprep.subr.bf16.mxu0 0
        %1884 = vmatpush2.bf16.msra.mxu0 0
        %1885 = vmatprep.subr.bf16.mxu0 0
        %1886 = vmatpush2.bf16.msra.mxu0 0
        %1887 = vmatprep.mubr.bf16.mxu0 0
        %1888 = vmatmul.mubr.bf16.gmra.mxu0 %v1850
        %v1889 = vpop.f32.mrf.mxu0
        %v1890 = vadd.f32 0.0, %v1889
        %v1891 = vpop.f32.mrf.mxu0
        %v1892 = vpop.f32.mrf.mxu0
        %v1893 = vpop.f32.mrf.mxu0
        %1894 = vdwg.mxu0
        %1895 = vrot.lane.b32.xlu0 %v1654, 64
        %v1896 = vpop.permute.xlu0 %1895
        %v1898 = vsel %vm1046, %v1750, 0
        %v1901 = vsel %vm1290, %v1896, 0
        %1903 = vmatprep.subr.bf16.mxu0 0
        %1904 = vmatpush1.bf16.msra.mxu0 0
        %1905 = vmatprep.subr.bf16.mxu0 0
        %1906 = vmatpush1.bf16.msra.mxu0 0
        %1907 = vmatprep.subr.bf16.mxu0 0
        %1908 = vmatpush1.bf16.msra.mxu0 0
        %1909 = vmatprep.subr.bf16.mxu0 0
        %1910 = vmatpush1.bf16.msra.mxu0 0
        %1911 = vmatprep.subr.bf16.mxu0 0
        %1912 = vmatpush1.bf16.msra.mxu0 0
        %1913 = vmatprep.subr.bf16.mxu0 0
        %1914 = vmatpush1.bf16.msra.mxu0 0
        %1915 = vmatprep.subr.bf16.mxu0 0
        %1916 = vmatpush1.bf16.msra.mxu0 0
        %1917 = vmatprep.subr.bf16.mxu0 0
        %1918 = vmatpush1.bf16.msra.mxu0 %v1901
        %1919 = vmatprep.subr.bf16.mxu0 0
        %1920 = vmatpush2.bf16.msra.mxu0 0
        %1921 = vmatprep.subr.bf16.mxu0 0
        %1922 = vmatpush2.bf16.msra.mxu0 0
        %1923 = vmatprep.subr.bf16.mxu0 0
        %1924 = vmatpush2.bf16.msra.mxu0 0
        %1925 = vmatprep.subr.bf16.mxu0 0
        %1926 = vmatpush2.bf16.msra.mxu0 0
        %1927 = vmatprep.subr.bf16.mxu0 0
        %1928 = vmatpush2.bf16.msra.mxu0 0
        %1929 = vmatprep.subr.bf16.mxu0 0
        %1930 = vmatpush2.bf16.msra.mxu0 0
        %1931 = vmatprep.subr.bf16.mxu0 0
        %1932 = vmatpush2.bf16.msra.mxu0 0
        %1933 = vmatprep.subr.bf16.mxu0 0
        %1934 = vmatpush2.bf16.msra.mxu0 0
        %1935 = vmatprep.mubr.bf16.mxu0 0
        %1936 = vmatmul.mubr.bf16.gmra.mxu0 %v1898
        %v1937 = vpop.f32.mrf.mxu0
        %v1938 = vadd.f32 0.0, %v1937
        %v1939 = vpop.f32.mrf.mxu0
        %v1940 = vpop.f32.mrf.mxu0
        %v1941 = vpop.f32.mrf.mxu0
        %1942 = vdwg.mxu0
        %1944 = vrot.lane.b32.xlu0 %v1842, 8
        %v1945 = vpop.permute.xlu0 %1944
        %1948 = vrot.lane.b32.xlu0 %v1890, 16
        %v1949 = vpop.permute.xlu0 %1948
        %1952 = vrot.lane.b32.xlu0 %v1938, 24
        %v1953 = vpop.permute.xlu0 %1952
        %v1955 = vsel %vm1046, %v1794, %v1945
        %v1956 = vsel %vm1491, %v1955, %v1949
        %v1957 = vsel %vm1493, %v1956, %v1953
        %v1958 = vpack.c.bf16 %v1957, %v1494
        %v1959 = vld [vmem:[%s869] sm:$0xf]
        %v1960 = vld [vmem:[%s869 + $0x4] sm:$0xf]
        %v1961 = vld [vmem:[%s869 + $0x8] sm:$0xf]
        %v1962 = vld [vmem:[%s869 + $0xc] sm:$0xf]
        %v1963 = vld [vmem:[%s751] sm:$0x1]
        %v1965 = vlaneseq
        %v1966 = vshrl.u32 %v1965, 7
        %v1967 = vsub.s32 0, %v1966
        %v1968 = vrot.slane %v1963, %v1967
        %v1974 = vunpack.c.l.b16 %v1959
        %v1975 = vunpack.c.l.b16 %v1960
        %v1976 = vunpack.c.l.b16 %v1961
        %v1977 = vunpack.c.l.b16 %v1962
        %v1978 = vpack.c.b16 %v1975, %v1974
        %v1979 = vpack.c.b16 %v1977, %v1976
        %v1983 = vsel %vm974, %v1958, 0
        %1985 = vmatprep.subr.bf16.mxu0 0
        %1986 = vmatpush1.bf16.msra.mxu0 0
        %1987 = vmatprep.subr.bf16.mxu0 0
        %1988 = vmatpush1.bf16.msra.mxu0 0
        %1989 = vmatprep.subr.bf16.mxu0 0
        %1990 = vmatpush1.bf16.msra.mxu0 0
        %1991 = vmatprep.subr.bf16.mxu0 0
        %1992 = vmatpush1.bf16.msra.mxu0 0
        %1993 = vmatprep.subr.bf16.mxu0 0
        %1994 = vmatpush1.bf16.msra.mxu0 0
        %1995 = vmatprep.subr.bf16.mxu0 0
        %1996 = vmatpush1.bf16.msra.mxu0 0
        %1997 = vmatprep.subr.bf16.mxu0 0
        %1998 = vmatpush1.bf16.msra.mxu0 %v1979
        %1999 = vmatprep.subr.bf16.mxu0 0
        %2000 = vmatpush1.bf16.msra.mxu0 %v1978
        %2001 = vmatprep.subr.bf16.mxu0 0
        %2002 = vmatpush2.bf16.msra.mxu0 0
        %2003 = vmatprep.subr.bf16.mxu0 0
        %2004 = vmatpush2.bf16.msra.mxu0 0
        %2005 = vmatprep.subr.bf16.mxu0 0
        %2006 = vmatpush2.bf16.msra.mxu0 0
        %2007 = vmatprep.subr.bf16.mxu0 0
        %2008 = vmatpush2.bf16.msra.mxu0 0
        %2009 = vmatprep.subr.bf16.mxu0 0
        %2010 = vmatpush2.bf16.msra.mxu0 0
        %2011 = vmatprep.subr.bf16.mxu0 0
        %2012 = vmatpush2.bf16.msra.mxu0 0
        %2013 = vmatprep.subr.bf16.mxu0 0
        %2014 = vmatpush2.bf16.msra.mxu0 0
        %2015 = vmatprep.subr.bf16.mxu0 0
        %2016 = vmatpush2.bf16.msra.mxu0 0
        %2017 = vmatprep.mubr.bf16.mxu0 0
        %2018 = vmatmul.mubr.bf16.gmra.mxu0 %v1983
        %v2019 = vpop.f32.mrf.mxu0
        %v2020 = vadd.f32 %v1968, %v2019
        %v2021 = vpop.f32.mrf.mxu0
        %v2022 = vpop.f32.mrf.mxu0
        %v2023 = vadd.f32 %v1968, %v2022
        %v2024 = vpop.f32.mrf.mxu0
        %2025 = vdwg.mxu0
        %v2026 = vadd.f32 %v2020, %v948
        %v2027 = vadd.f32 %v2023, %v949
        %v2028 = vld [vmem:[%s759] sm:$0x1]
        %v2029 = vld [vmem:[%s767] sm:$0x1]
        %v2030 = vsel %vm974, %v2026, 0.0
        %2031 = vadd.xlane.f32.xlu0 %v2030
        %v2032 = vpop.xlane.xlu0 %2031
        %v2033 = vsel %vm974, %v2027, 0.0
        %2034 = vadd.xlane.f32.xlu0 %v2033
        %v2035 = vpop.xlane.xlu0 %2034
        %v2036 = vrcp.pop 32.0
        %v2037 = vmul.f32 %v2032, %v2036
        %v2038 = vmul.f32 %v2035, %v2036
        %v2039 = vsub.f32 %v2026, %v2037
        %v2040 = vsub.f32 %v2027, %v2038
        %v2041 = vmul.f32 %v2039, %v2039
        %v2042 = vmul.f32 %v2040, %v2040
        %v2043 = vsel %vm974, %v2041, 0.0
        %2044 = vadd.xlane.f32.xlu0 %v2043
        %v2045 = vpop.xlane.xlu0 %2044
        %v2046 = vsel %vm974, %v2042, 0.0
        %2047 = vadd.xlane.f32.xlu0 %v2046
        %v2048 = vpop.xlane.xlu0 %2047
        %v2049 = vmul.f32 %v2045, %v2036
        %v2050 = vmul.f32 %v2048, %v2036
        %v2051 = vadd.f32 %v2049, 1e-12
        %v2052 = vadd.f32 %v2050, 1e-12
        %v2053 = vrsqrt.pop %v2051
        %v2054 = vrsqrt.pop %v2052
        %v2055 = vmul.f32 %v2039, %v2053
        %v2056 = vmul.f32 %v2040, %v2054
        %v2058 = vlaneseq
        %v2059 = vshrl.u32 %v2058, 7
        %v2060 = vsub.s32 0, %v2059
        %v2061 = vrot.slane %v2028, %v2060
        %v2063 = vmul.f32 %v2055, %v2061
        %v2064 = vmul.f32 %v2056, %v2061
        %v2066 = vlaneseq
        %v2067 = vshrl.u32 %v2066, 7
        %v2068 = vsub.s32 0, %v2067
        %v2069 = vrot.slane %v2029, %v2068
        %v2071 = vadd.f32 %v2063, %v2069
        %v2072 = vadd.f32 %v2064, %v2069
        %v2073 = vpack.c.bf16 %v2072, %v2071
        %v2074 = vld [vmem:[%s874] sm:$0xf]
        %v2075 = vld [vmem:[%s874 + $0x4] sm:$0xf]
        %v2076 = vld [vmem:[%s874 + $0x8] sm:$0xf]
        %v2077 = vld [vmem:[%s874 + $0xc] sm:$0xf]
        %v2078 = vld [vmem:[%s877] sm:$0x1]
        %v2080 = vlaneseq
        %v2081 = vshrl.u32 %v2080, 7
        %v2082 = vsub.s32 0, %v2081
        %v2083 = vrot.slane %v2078, %v2082
        %v2089 = vunpack.c.l.b16 %v2074
        %v2090 = vunpack.c.l.b16 %v2075
        %v2091 = vunpack.c.l.b16 %v2076
        %v2092 = vunpack.c.l.b16 %v2077
        %v2093 = vpack.c.b16 %v2090, %v2089
        %v2094 = vpack.c.b16 %v2092, %v2091
        %v2098 = vsel %vm974, %v2073, 0
        %2100 = vmatprep.subr.bf16.mxu0 0
        %2101 = vmatpush1.bf16.msra.mxu0 0
        %2102 = vmatprep.subr.bf16.mxu0 0
        %2103 = vmatpush1.bf16.msra.mxu0 0
        %2104 = vmatprep.subr.bf16.mxu0 0
        %2105 = vmatpush1.bf16.msra.mxu0 0
        %2106 = vmatprep.subr.bf16.mxu0 0
        %2107 = vmatpush1.bf16.msra.mxu0 0
        %2108 = vmatprep.subr.bf16.mxu0 0
        %2109 = vmatpush1.bf16.msra.mxu0 0
        %2110 = vmatprep.subr.bf16.mxu0 0
        %2111 = vmatpush1.bf16.msra.mxu0 0
        %2112 = vmatprep.subr.bf16.mxu0 0
        %2113 = vmatpush1.bf16.msra.mxu0 %v2094
        %2114 = vmatprep.subr.bf16.mxu0 0
        %2115 = vmatpush1.bf16.msra.mxu0 %v2093
        %2116 = vmatprep.subr.bf16.mxu0 0
        %2117 = vmatpush2.bf16.msra.mxu0 0
        %2118 = vmatprep.subr.bf16.mxu0 0
        %2119 = vmatpush2.bf16.msra.mxu0 0
        %2120 = vmatprep.subr.bf16.mxu0 0
        %2121 = vmatpush2.bf16.msra.mxu0 0
        %2122 = vmatprep.subr.bf16.mxu0 0
        %2123 = vmatpush2.bf16.msra.mxu0 0
        %2124 = vmatprep.subr.bf16.mxu0 0
        %2125 = vmatpush2.bf16.msra.mxu0 0
        %2126 = vmatprep.subr.bf16.mxu0 0
        %2127 = vmatpush2.bf16.msra.mxu0 0
        %2128 = vmatprep.subr.bf16.mxu0 0
        %2129 = vmatpush2.bf16.msra.mxu0 0
        %2130 = vmatprep.subr.bf16.mxu0 0
        %2131 = vmatpush2.bf16.msra.mxu0 0
        %2132 = vmatprep.mubr.bf16.mxu0 0
        %2133 = vmatmul.mubr.bf16.gmra.mxu0 %v2098
        %v2134 = vpop.f32.mrf.mxu0
        %v2135 = vadd.f32 %v2083, %v2134
        %v2136 = vpop.f32.mrf.mxu0
        %v2137 = vpop.f32.mrf.mxu0
        %v2138 = vadd.f32 %v2083, %v2137
        %v2139 = vpop.f32.mrf.mxu0
        %2140 = vdwg.mxu0
        %v2141 = vmul.f32 %v2135, 0.5
        %v2142 = vmul.f32 %v2138, 0.5
        %v2143 = vmul.f32 %v2135, 0.044715
        %v2144 = vmul.f32 %v2138, 0.044715
        %v2145 = vmul.f32 %v2143, %v2135
        %v2146 = vmul.f32 %v2144, %v2138
        %v2147 = vmul.f32 %v2145, %v2135
        %v2148 = vmul.f32 %v2146, %v2138
        %v2149 = vadd.f32 %v2135, %v2147
        %v2150 = vadd.f32 %v2138, %v2148
        %v2151 = vmul.f32 %v2149, 0.7978846
        %v2152 = vmul.f32 %v2150, 0.7978846
        %v2153 = vtanh.pop %v2151
        %v2154 = vtanh.pop %v2152
        %v2155 = vadd.f32 %v2153, 1.0
        %v2156 = vadd.f32 %v2154, 1.0
        %v2157 = vmul.f32 %v2141, %v2155
        %v2158 = vmul.f32 %v2142, %v2156
        %v2159 = vpack.c.bf16 %v2158, %v2157
        %v2160 = vld [vmem:[%s882] sm:$0xf]
        %v2161 = vld [vmem:[%s882 + $0x4] sm:$0xf]
        %v2162 = vld [vmem:[%s882 + $0x8] sm:$0xf]
        %v2163 = vld [vmem:[%s882 + $0xc] sm:$0xf]
        %v2164 = vld [vmem:[%s882 + $0x10] sm:$0xf]
        %v2165 = vld [vmem:[%s882 + $0x14] sm:$0xf]
        %v2166 = vld [vmem:[%s882 + $0x18] sm:$0xf]
        %v2167 = vld [vmem:[%s882 + $0x1c] sm:$0xf]
        %v2168 = vld [vmem:[%s885] sm:$0x1]
        %v2170 = vlaneseq
        %v2171 = vshrl.u32 %v2170, 7
        %v2172 = vsub.s32 0, %v2171
        %v2173 = vrot.slane %v2168, %v2172
        %v2183 = vunpack.c.l.b16 %v2160
        %v2184 = vunpack.c.l.b16 %v2161
        %v2185 = vunpack.c.l.b16 %v2162
        %v2186 = vunpack.c.l.b16 %v2163
        %v2187 = vunpack.c.l.b16 %v2164
        %v2188 = vunpack.c.l.b16 %v2165
        %v2189 = vunpack.c.l.b16 %v2166
        %v2190 = vunpack.c.l.b16 %v2167
        %v2191 = vpack.c.b16 %v2184, %v2183
        %v2192 = vpack.c.b16 %v2186, %v2185
        %v2193 = vpack.c.b16 %v2188, %v2187
        %v2194 = vpack.c.b16 %v2190, %v2189
        %vm2199 = vcmask 523264
        %v2201 = vsel %vm2199, %v2159, 0
        %2203 = vmatprep.subr.bf16.mxu0 0
        %2204 = vmatpush1.bf16.msra.mxu0 0
        %2205 = vmatprep.subr.bf16.mxu0 0
        %2206 = vmatpush1.bf16.msra.mxu0 0
        %2207 = vmatprep.subr.bf16.mxu0 0
        %2208 = vmatpush1.bf16.msra.mxu0 0
        %2209 = vmatprep.subr.bf16.mxu0 0
        %2210 = vmatpush1.bf16.msra.mxu0 0
        %2211 = vmatprep.subr.bf16.mxu0 0
        %2212 = vmatpush1.bf16.msra.mxu0 %v2194
        %2213 = vmatprep.subr.bf16.mxu0 0
        %2214 = vmatpush1.bf16.msra.mxu0 %v2193
        %2215 = vmatprep.subr.bf16.mxu0 0
        %2216 = vmatpush1.bf16.msra.mxu0 %v2192
        %2217 = vmatprep.subr.bf16.mxu0 0
        %2218 = vmatpush1.bf16.msra.mxu0 %v2191
        %2219 = vmatprep.subr.bf16.mxu0 0
        %2220 = vmatpush2.bf16.msra.mxu0 0
        %2221 = vmatprep.subr.bf16.mxu0 0
        %2222 = vmatpush2.bf16.msra.mxu0 0
        %2223 = vmatprep.subr.bf16.mxu0 0
        %2224 = vmatpush2.bf16.msra.mxu0 0
        %2225 = vmatprep.subr.bf16.mxu0 0
        %2226 = vmatpush2.bf16.msra.mxu0 0
        %2227 = vmatprep.subr.bf16.mxu0 0
        %2228 = vmatpush2.bf16.msra.mxu0 0
        %2229 = vmatprep.subr.bf16.mxu0 0
        %2230 = vmatpush2.bf16.msra.mxu0 0
        %2231 = vmatprep.subr.bf16.mxu0 0
        %2232 = vmatpush2.bf16.msra.mxu0 0
        %2233 = vmatprep.subr.bf16.mxu0 0
        %2234 = vmatpush2.bf16.msra.mxu0 0
        %2235 = vmatprep.mubr.bf16.mxu0 0
        %2236 = vmatmul.mubr.bf16.gmra.mxu0 %v2201
        %v2237 = vpop.f32.mrf.mxu0
        %v2238 = vadd.f32 %v2173, %v2237
        %v2239 = vpop.f32.mrf.mxu0
        %v2240 = vpop.f32.mrf.mxu0
        %v2241 = vadd.f32 %v2173, %v2240
        %v2242 = vpop.f32.mrf.mxu0
        %2243 = vdwg.mxu0
        %v2244 = vadd.f32 %v2238, %v2071
        %v2245 = vadd.f32 %v2241, %v2072
        %v2246 = vld [vmem:[%s888] sm:$0x1]
        %v2247 = vld [vmem:[%s891] sm:$0x1]
        %v2248 = vsel %vm974, %v2244, 0.0
        %2249 = vadd.xlane.f32.xlu0 %v2248
        %v2250 = vpop.xlane.xlu0 %2249
        %v2251 = vsel %vm974, %v2245, 0.0
        %2252 = vadd.xlane.f32.xlu0 %v2251
        %v2253 = vpop.xlane.xlu0 %2252
        %v2254 = vmul.f32 %v2250, %v2036
        %v2255 = vmul.f32 %v2253, %v2036
        %v2256 = vsub.f32 %v2244, %v2254
        %v2257 = vsub.f32 %v2245, %v2255
        %v2258 = vmul.f32 %v2256, %v2256
        %v2259 = vmul.f32 %v2257, %v2257
        %v2260 = vsel %vm974, %v2258, 0.0
        %2261 = vadd.xlane.f32.xlu0 %v2260
        %v2262 = vpop.xlane.xlu0 %2261
        %v2263 = vsel %vm974, %v2259, 0.0
        %2264 = vadd.xlane.f32.xlu0 %v2263
        %v2265 = vpop.xlane.xlu0 %2264
        %v2266 = vmul.f32 %v2262, %v2036
        %v2267 = vmul.f32 %v2265, %v2036
        %v2268 = vadd.f32 %v2266, 1e-12
        %v2269 = vadd.f32 %v2267, 1e-12
        %v2270 = vrsqrt.pop %v2268
        %v2271 = vrsqrt.pop %v2269
        %v2272 = vmul.f32 %v2256, %v2270
        %v2273 = vmul.f32 %v2257, %v2271
        %v2275 = vlaneseq
        %v2276 = vshrl.u32 %v2275, 7
        %v2277 = vsub.s32 0, %v2276
        %v2278 = vrot.slane %v2246, %v2277
        %v2280 = vmul.f32 %v2272, %v2278
        %v2281 = vmul.f32 %v2273, %v2278
        %v2283 = vlaneseq
        %v2284 = vshrl.u32 %v2283, 7
        %v2285 = vsub.s32 0, %v2284
        %v2286 = vrot.slane %v2247, %v2285
        %v2288 = vadd.f32 %v2280, %v2286
        %v2289 = vadd.f32 %v2281, %v2286
        %2290 = vst.msk [vmem:[#allocation2] sm:$0xff] %vm974, %v2288
        %2291 = vst.msk [vmem:[#allocation2 + $0x8] sm:$0xff] %vm974, %v2289
        %p2292 = scmp.eq.s32.totalorder %s38, 1
        // Predicated region
        $region129: #{tpu_custom_call.1} parent=91 // pred_check
          %p2293 = pneg %p2292
        $region130: #{tpu_custom_call.1} parent=91 // pred_check_branch
          %2295 = sbr.rel (%p2293) target = $region132
        $region131: #{tpu_custom_call.1} parent=91 // pred_region
          %v2296 = vpack.c.bf16 %v2289, %v2288
          %v2297 = vld [vmem:[%s16] sm:$0xf]
          %v2298 = vld [vmem:[%s16 + $0x4] sm:$0xf]
          %v2299 = vld [vmem:[%s16 + $0x8] sm:$0xf]
          %v2300 = vld [vmem:[%s16 + $0xc] sm:$0xf]
          %v2301 = vld [vmem:[%s17] sm:$0x1]
          %v2303 = vlaneseq
          %v2304 = vshrl.u32 %v2303, 7
          %v2305 = vsub.s32 0, %v2304
          %v2306 = vrot.slane %v2301, %v2305
          %v2312 = vunpack.c.l.b16 %v2297
          %v2313 = vunpack.c.l.b16 %v2298
          %v2314 = vunpack.c.l.b16 %v2299
          %v2315 = vunpack.c.l.b16 %v2300
          %v2316 = vpack.c.b16 %v2313, %v2312
          %v2317 = vpack.c.b16 %v2315, %v2314
          %v2321 = vsel %vm974, %v2296, 0
          %2323 = vmatprep.subr.bf16.mxu0 0
          %2324 = vmatpush1.bf16.msra.mxu0 0
          %2325 = vmatprep.subr.bf16.mxu0 0
          %2326 = vmatpush1.bf16.msra.mxu0 0
          %2327 = vmatprep.subr.bf16.mxu0 0
          %2328 = vmatpush1.bf16.msra.mxu0 0
          %2329 = vmatprep.subr.bf16.mxu0 0
          %2330 = vmatpush1.bf16.msra.mxu0 0
          %2331 = vmatprep.subr.bf16.mxu0 0
          %2332 = vmatpush1.bf16.msra.mxu0 0
          %2333 = vmatprep.subr.bf16.mxu0 0
          %2334 = vmatpush1.bf16.msra.mxu0 0
          %2335 = vmatprep.subr.bf16.mxu0 0
          %2336 = vmatpush1.bf16.msra.mxu0 %v2317
          %2337 = vmatprep.subr.bf16.mxu0 0
          %2338 = vmatpush1.bf16.msra.mxu0 %v2316
          %2339 = vmatprep.subr.bf16.mxu0 0
          %2340 = vmatpush2.bf16.msra.mxu0 0
          %2341 = vmatprep.subr.bf16.mxu0 0
          %2342 = vmatpush2.bf16.msra.mxu0 0
          %2343 = vmatprep.subr.bf16.mxu0 0
          %2344 = vmatpush2.bf16.msra.mxu0 0
          %2345 = vmatprep.subr.bf16.mxu0 0
          %2346 = vmatpush2.bf16.msra.mxu0 0
          %2347 = vmatprep.subr.bf16.mxu0 0
          %2348 = vmatpush2.bf16.msra.mxu0 0
          %2349 = vmatprep.subr.bf16.mxu0 0
          %2350 = vmatpush2.bf16.msra.mxu0 0
          %2351 = vmatprep.subr.bf16.mxu0 0
          %2352 = vmatpush2.bf16.msra.mxu0 0
          %2353 = vmatprep.subr.bf16.mxu0 0
          %2354 = vmatpush2.bf16.msra.mxu0 0
          %2355 = vmatprep.mubr.bf16.mxu0 0
          %2356 = vmatmul.mubr.bf16.gmra.mxu0 %v2321
          %v2357 = vpop.f32.mrf.mxu0
          %v2358 = vadd.f32 %v2306, %v2357
          %v2359 = vpop.f32.mrf.mxu0
          %v2360 = vpop.f32.mrf.mxu0
          %v2361 = vadd.f32 %v2306, %v2360
          %v2362 = vpop.f32.mrf.mxu0
          %2363 = vdwg.mxu0
          %2364 = vst [vmem:[#allocation15] sm:$0xff] %v2358
          %2365 = vst [vmem:[#allocation15 + $0x8] sm:$0xff] %v2361
        $region132: #{tpu_custom_call.1} parent=91 // pred_fallthru
          _
        // Predicated region
        $region133: #{tpu_custom_call.1} parent=91 // pred_check
          %p2366 = pneg %p511
        $region134: #{tpu_custom_call.1} parent=91 // pred_check_branch
          %2368 = sbr.rel (%p2366) target = $region136
        $region135: #{tpu_custom_call.1} parent=91 // pred_region
          %s2369 = smul.u32 2, %s37
          %s2371 = ssub.s32 256, 256
          %2372 = vsyncadd [#allocation5], %s2371
          %s2373 = smul.addr %s2369, 128
          %s2374 = scalar_lea.hbm %s18, %s2373
          %s2375 = sshll.u32 [#allocation15], 4
          %s2376 = int_to_ptr.vmem [resolvable:$true] %s2375
          %2381 = dma.vmem_to_hbm [thread:$0]  %s2376, 256, %s2374, [#allocation5], 128, 128, 8
        $region136: #{tpu_custom_call.1} parent=91 // pred_fallthru
          _
        // Predicated region
        $region137: #{tpu_custom_call.1} parent=91 // pred_check
          %p2382 = pneg %p511
        $region138: #{tpu_custom_call.1} parent=91 // pred_check_branch
          %2384 = sbr.rel (%p2382) target = $region140
        $region139: #{tpu_custom_call.1} parent=91 // pred_region
          %2385 = dma.done [#allocation5], 256
        $region140: #{tpu_custom_call.1} parent=91 // pred_fallthru
          _
      $region92: #{tpu_custom_call.1} parent=5 // pred_fallthru
        _
      %p2386 = scmp.le.s32.totalorder 2, %s28
      // Predicated region
      $region141: #{tpu_custom_call.1} parent=5 // pred_check
        %p2387 = pneg %p2386
      $region142: #{tpu_custom_call.1} parent=5 // pred_check_branch
        %2389 = sbr.rel (%p2387) target = $region144
      $region143: #{tpu_custom_call.1} parent=5 // pred_region
        %s2390 = ssub.s32 %s28, 2
      $region144: #{tpu_custom_call.1} parent=5 // pred_fallthru
        _
    $region6: #{tpu_custom_call.1} parent=1 // loop_footer
      %s32 = sadd.s32 1, %s28
    $region7: #{tpu_custom_call.1} parent=1 // loop_footer_branch
      %27 = sbr.rel target = $region3
    $region8: #{tpu_custom_call.1} parent=1 // loop_exit
      _
    %2391 = vsyncpa [#allocation4], 1
    %s2392 = scalar_lea.sflag [#allocation4], 1
    %2393 = vsyncpa %s2392, 1
    %2394 = vsyncpa [#allocation7], 1
    %2395 = vsyncpa [#allocation10], 1
    %2396 = vsyncpa [#allocation5], 1
    %s2397 = scalar_lea.sflag [#allocation5], 1
    %2398 = vsyncpa %s2397, 1

</llo_original>
